<compile_context>
chip_gen: v7x
topology: tpu7x:2x2x1
jax: 0.10.0
libtpu: 0.0.40
codegen_flags: <defaults>
</compile_context>

<pallas_src>
import functools

import jax
import jax.numpy as jnp
from jax.experimental import pallas as pl
from jax.experimental.pallas import tpu as pltpu

LATENT = 10
LATENT_PAD = 128            # lane-dense latent width inside the fused kernel
CONV_NP = 128               # lane-dense padded output-channel width


# ---------------------------------------------------------------------------
# helpers
# ---------------------------------------------------------------------------
def _round_up(x, m):
    return (x + m - 1) // m * m


def _tpu_generation():
    try:
        kind = jax.devices()[0].device_kind.lower()
    except Exception:
        kind = ""
    if "v5" in kind:
        return "v5"
    if "v7" in kind:
        return "v7"
    return "v6"


_GEN = _tpu_generation()


def _pick_tm(M):
    """Row tile: full rows on 1-TC parts; split in two on v7x so both TCs work."""
    mp8 = _round_up(max(M, 1), 8)
    if _GEN == "v7" and mp8 >= 16:
        tm = _round_up((mp8 + 1) // 2, 8)
    else:
        tm = mp8
    return min(tm, 512)


# ---------------------------------------------------------------------------
# fused matmul + bias + activation kernel (single full-K step, no accumulator)
# ---------------------------------------------------------------------------
def _mm_bias_act_kernel(x_ref, w_ref, b_ref, o_ref, *, activation):
    y = jnp.dot(x_ref[...], w_ref[...], preferred_element_type=jnp.float32)
    y = y + b_ref[...]
    if activation == "relu":
        y = jnp.maximum(y, 0.0)
    elif activation == "sigmoid":
        y = jax.nn.sigmoid(y)
    o_ref[...] = y.astype(o_ref.dtype)


def matmul_bias_act(x, w_pad, b_pad, activation="none"):
    """act(x @ w + b).  w_pad:(K,Np) and b_pad:(1,Np) are pre-padded lane-dense
    (Np % 128 == 0); K is NOT padded (full-K single-step matmul)."""
    M, K = x.shape
    Kw, Np = w_pad.shape
    assert K == Kw and b_pad.shape == (1, Np) and Np % 128 == 0
    tm = _pick_tm(M)
    tn = min(Np, 128 if _GEN == "v5" else 256)
    Mp = _round_up(M, tm)
    xp = x if Mp == M else jnp.pad(x, ((0, Mp - M), (0, 0)))
    grid = (Mp // tm, Np // tn)
    out = pl.pallas_call(
        functools.partial(_mm_bias_act_kernel, activation=activation),
        out_shape=jax.ShapeDtypeStruct((Mp, Np), jnp.float32),
        grid=grid,
        in_specs=[
            pl.BlockSpec((tm, K), lambda i, j: (i, 0)),
            pl.BlockSpec((K, tn), lambda i, j: (0, j)),
            pl.BlockSpec((1, tn), lambda i, j: (0, j)),
        ],
        out_specs=pl.BlockSpec((tm, tn), lambda i, j: (i, j)),
        compiler_params=pltpu.CompilerParams(
            dimension_semantics=("parallel", "parallel")),
    )(xp, w_pad, b_pad)
    return out[:M] if Mp != M else out


# ---------------------------------------------------------------------------
# Conv2d(kernel=3, stride=2, padding=1) as a patches-matmul (NHWC, lane = Cout)
# ---------------------------------------------------------------------------
def conv2d_s2p1(x_nhwc, wmat_pad, b_pad, c_out, activation):
    B, H, W, Cin = x_nhwc.shape
    OH, OW = H // 2, W // 2
    xp = jnp.pad(x_nhwc, ((0, 0), (1, 1), (1, 1), (0, 0)))
    # TODO(synk): fuse this 3x3 shifted-slice gather into the Pallas kernel
    # (pl.ds windows) for large images; at 28x28 the staged patches are <0.3MB.
    taps = [xp[:, kh:kh + 2 * OH:2, kw:kw + 2 * OW:2, :]
            for kh in range(3) for kw in range(3)]
    patches = jnp.concatenate(taps, axis=-1).reshape(B * OH * OW, 9 * Cin)
    y = matmul_bias_act(patches, wmat_pad, b_pad, activation)
    return y[:, :c_out].reshape(B, OH, OW, c_out)


# ---------------------------------------------------------------------------
# ConvTranspose2d(k=3, s=2, p=1, output_padding=1) via sub-pixel formulation:
# 2x2-tap matmul -> 4*Cout phase channels -> depth-to-space.
# ---------------------------------------------------------------------------
def conv_transpose2d_s2p1op1(x_nhwc, wmat_pad, b_pad, c_out, activation):
    B, H, W, Cin = x_nhwc.shape
    xp = jnp.pad(x_nhwc, ((0, 0), (0, 1), (0, 1), (0, 0)))
    taps = [xp[:, dh:dh + H, dw:dw + W, :] for dh in (0, 1) for dw in (0, 1)]
    patches = jnp.concatenate(taps, axis=-1).reshape(B * H * W, 4 * Cin)
    y = matmul_bias_act(patches, wmat_pad, b_pad, activation)
    y = y[:, :4 * c_out].reshape(B, H, W, 2, 2, c_out)
    return y.transpose(0, 1, 3, 2, 4, 5).reshape(B, 2 * H, 2 * W, c_out)


# ---------------------------------------------------------------------------
# fused latent path: enc -> (mu|logvar) -> reparameterize -> dec (+ReLU)
# ---------------------------------------------------------------------------
def _latent_kernel(flat_ref, eps_ref, enc_w_ref, enc_b_ref, mulv_w_ref,
                   mulv_b_ref, dec_w_ref, dec_b_ref,
                   enc_o_ref, mulv_o_ref, z_o_ref, dec_o_ref):
    flat = flat_ref[...]
    encoded = jnp.dot(flat, enc_w_ref[...], preferred_element_type=jnp.float32)
    encoded = encoded + enc_b_ref[...]
    enc_o_ref[...] = encoded

    mulv = jnp.dot(encoded, mulv_w_ref[...], preferred_element_type=jnp.float32)
    mulv = mulv + mulv_b_ref[...]
    mulv_o_ref[...] = mulv

    mu = mulv[:, :LATENT_PAD]
    logvar = mulv[:, LATENT_PAD:]
    # z = mu + exp(0.5*logvar) * eps  (eps padded lanes are zero -> z pad = 0)
    z = mu + jnp.exp(0.5 * logvar) * eps_ref[...]
    z_o_ref[...] = z

    dec = jnp.dot(z, dec_w_ref[...], preferred_element_type=jnp.float32)
    dec_o_ref[...] = jnp.maximum(dec + dec_b_ref[...], 0.0)


def latent_path(flat, eps, pp):
    B, K = flat.shape
    Bp = _round_up(B, 8)
    flat_p = flat if Bp == B else jnp.pad(flat, ((0, Bp - B), (0, 0)))
    eps_p = jnp.pad(eps, ((0, Bp - B), (0, LATENT_PAD - LATENT)))
    dec_dim = pp["dec_w"].shape[1]

    out_shapes = (
        jax.ShapeDtypeStruct((Bp, LATENT_PAD), jnp.float32),       # encoded
        jax.ShapeDtypeStruct((Bp, 2 * LATENT_PAD), jnp.float32),   # mu | logvar
        jax.ShapeDtypeStruct((Bp, LATENT_PAD), jnp.float32),       # z
        jax.ShapeDtypeStruct((Bp, dec_dim), jnp.float32),          # dec hidden
    )

    def full(shape):
        return pl.BlockSpec(shape, lambda i: (0, 0))

    enc_o, mulv_o, z_o, dec_o = pl.pallas_call(
        _latent_kernel,
        out_shape=out_shapes,
        grid=(1,),
        in_specs=[
            full((Bp, K)), full((Bp, LATENT_PAD)),
            full(pp["enc_w"].shape), full(pp["enc_b"].shape),
            full(pp["mulv_w"].shape), full(pp["mulv_b"].shape),
            full(pp["dec_w"].shape), full(pp["dec_b"].shape),
        ],
        out_specs=[full(s.shape) for s in out_shapes],
        compiler_params=pltpu.CompilerParams(dimension_semantics=("arbitrary",)),
    )(flat_p, eps_p, pp["enc_w"], pp["enc_b"], pp["mulv_w"], pp["mulv_b"],
      pp["dec_w"], pp["dec_b"])

    encoded = enc_o[:B, :LATENT]
    mu = mulv_o[:B, :LATENT]
    logvar = mulv_o[:B, LATENT_PAD:LATENT_PAD + LATENT]
    z = z_o[:B, :LATENT]
    dec = dec_o[:B]
    return encoded, mu, logvar, z, dec


# ---------------------------------------------------------------------------
# one-time weight reformatting (hoisted out of the per-call forward path)
# ---------------------------------------------------------------------------
def _conv_wmat(w_oihw):
    # (Cout, Cin, 3, 3) -> (9*Cin, Cout), row = kh*3*Cin + kw*Cin + c
    return jnp.transpose(w_oihw, (2, 3, 1, 0)).reshape(-1, w_oihw.shape[0])


def _deconv_wmat(w_iohw):
    Cin, Cout = w_iohw.shape[0], w_iohw.shape[1]
    wm = jnp.zeros((4, Cin, 4, Cout), w_iohw.dtype)

    def put(wm_, tap, phase, kh, kw):
        return wm_.at[tap, :, phase, :].set(w_iohw[:, :, kh, kw])

    # phase p = 2*ri + rj (output row/col parity); tap t = 2*dh + dw
    wm = put(wm, 0, 0, 1, 1)                       # (even, even)
    wm = put(wm, 0, 1, 1, 2); wm = put(wm, 1, 1, 1, 0)   # (even, odd)
    wm = put(wm, 0, 2, 2, 1); wm = put(wm, 2, 2, 0, 1)   # (odd, even)
    wm = put(wm, 0, 3, 2, 2); wm = put(wm, 1, 3, 2, 0)   # (odd, odd)
    wm = put(wm, 2, 3, 0, 2); wm = put(wm, 3, 3, 0, 0)
    return wm.reshape(4 * Cin, 4 * Cout)


def _pad_cols(w, np_):
    return jnp.pad(w, ((0, 0), (0, np_ - w.shape[1])))


def _pad_bias(b, np_):
    return jnp.pad(b, (0, np_ - b.shape[0])).reshape(1, np_)


def prepare_params(p):
    pp = {}
    # encoder convs (lane-dense Cout padding done once)
    pp["conv1_w"] = _pad_cols(_conv_wmat(p["conv1_w"]), CONV_NP)
    pp["conv1_b"] = _pad_bias(p["conv1_b"], CONV_NP)
    pp["conv2_w"] = _pad_cols(_conv_wmat(p["conv2_w"]), CONV_NP)
    pp["conv2_b"] = _pad_bias(p["conv2_b"], CONV_NP)
    # fused latent path weights (latent dim lives in a 128-wide slab)
    pp["enc_w"] = _pad_cols(p["enc_w"].T, LATENT_PAD)                  # (392,128)
    pp["enc_b"] = _pad_bias(p["enc_b"], LATENT_PAD)
    mulv_w = jnp.zeros((LATENT_PAD, 2 * LATENT_PAD), jnp.float32)
    mulv_w = mulv_w.at[:LATENT, :LATENT].set(p["mu_w"].T)
    mulv_w = mulv_w.at[:LATENT, LATENT_PAD:LATENT_PAD + LATENT].set(p["lv_w"].T)
    pp["mulv_w"] = mulv_w
    mulv_b = jnp.zeros((1, 2 * LATENT_PAD), jnp.float32)
    mulv_b = mulv_b.at[0, :LATENT].set(p["mu_b"])
    mulv_b = mulv_b.at[0, LATENT_PAD:LATENT_PAD + LATENT].set(p["lv_b"])
    pp["mulv_b"] = mulv_b
    dec_w = jnp.zeros((LATENT_PAD, p["dec_w"].shape[0]), jnp.float32)
    pp["dec_w"] = dec_w.at[:LATENT, :].set(p["dec_w"].T)               # (128,392)
    pp["dec_b"] = p["dec_b"].reshape(1, -1)
    # decoder deconvs (sub-pixel phase weights, bias tiled across 4 phases)
    pp["dec1_w"] = _pad_cols(_deconv_wmat(p["dec1_w"]), CONV_NP)
    pp["dec1_b"] = _pad_bias(jnp.tile(p["dec1_b"], 4), CONV_NP)
    pp["dec2_w"] = _pad_cols(_deconv_wmat(p["dec2_w"]), CONV_NP)
    pp["dec2_b"] = _pad_bias(jnp.tile(p["dec2_b"], 4), CONV_NP)
    return pp


# ---------------------------------------------------------------------------
# VAE forward (NCHW module I/O, NHWC internally) — 5 pallas_calls total
# ---------------------------------------------------------------------------
def vae_forward(pp, x_nchw, eps):
    B = x_nchw.shape[0]
    x = jnp.transpose(x_nchw, (0, 2, 3, 1))                             # NHWC
    h = conv2d_s2p1(x, pp["conv1_w"], pp["conv1_b"], 16, "relu")        # (B,14,14,16)
    h = conv2d_s2p1(h, pp["conv2_w"], pp["conv2_b"], 8, "relu")         # (B, 7, 7, 8)
    flat = jnp.transpose(h, (0, 3, 1, 2)).reshape(B, -1)                # torch Flatten order
    encoded, mu, logvar, z, d = latent_path(flat, eps, pp)              # fused kernel
    d = jnp.transpose(d.reshape(B, 8, 7, 7), (0, 2, 3, 1))              # (B,7,7,8) NHWC
    d = conv_transpose2d_s2p1op1(d, pp["dec1_w"], pp["dec1_b"], 16, "relu")     # (B,14,14,16)
    d = conv_transpose2d_s2p1op1(d, pp["dec2_w"], pp["dec2_b"], 1, "sigmoid")   # (B,28,28,1)
    decoded = jnp.transpose(d, (0, 3, 1, 2))                            # NCHW
    return encoded, decoded, mu, logvar, z


def init_params(key):
    ks = jax.random.split(key, 16)

    def rnd(k, shape, scale=0.1):
        return scale * jax.random.normal(k, shape, jnp.float32)

    return {
        "conv1_w": rnd(ks[0], (16, 1, 3, 3)),  "conv1_b": rnd(ks[1], (16,)),
        "conv2_w": rnd(ks[2], (8, 16, 3, 3)),  "conv2_b": rnd(ks[3], (8,)),
        "enc_w":   rnd(ks[4], (10, 392)),      "enc_b":   rnd(ks[5], (10,)),
        "mu_w":    rnd(ks[6], (10, 10)),       "mu_b":    rnd(ks[7], (10,)),
        "lv_w":    rnd(ks[8], (10, 10)),       "lv_b":    rnd(ks[9], (10,)),
        "dec_w":   rnd(ks[10], (392, 10)),     "dec_b":   rnd(ks[11], (392,)),
        "dec1_w":  rnd(ks[12], (8, 16, 3, 3)), "dec1_b":  rnd(ks[13], (16,)),
        "dec2_w":  rnd(ks[14], (16, 1, 3, 3)), "dec2_b":  rnd(ks[15], (1,)),
    }


# ---------------------------------------------------------------------------
# pure-JAX reference (numerical sanity check for the Pallas path)
# ---------------------------------------------------------------------------
def _conv2d_ref(x, w, b):
    y = jax.lax.conv_general_dilated(
        x, w, window_strides=(2, 2), padding=((1, 1), (1, 1)),
        dimension_numbers=("NCHW", "OIHW", "NCHW"),
        precision=jax.lax.Precision.HIGHEST)
    return y + b[None, :, None, None]


def _conv_transpose2d_ref(x, w, b):
    # PyTorch ConvTranspose2d(k=3, s=2, p=1, output_padding=1)
    wf = jnp.flip(w, axis=(2, 3)).transpose(1, 0, 2, 3)   # (Cout, Cin, 3, 3)
    y = jax.lax.conv_general_dilated(
        x, wf, window_strides=(1, 1), padding=((1, 2), (1, 2)),
        lhs_dilation=(2, 2), dimension_numbers=("NCHW", "OIHW", "NCHW"),
        precision=jax.lax.Precision.HIGHEST)
    return y + b[None, :, None, None]


def reference_forward(params, x_nchw, z):
    p = params
    hp = jax.lax.Precision.HIGHEST
    B = x_nchw.shape[0]
    h = jax.nn.relu(_conv2d_ref(x_nchw, p["conv1_w"], p["conv1_b"]))
    h = jax.nn.relu(_conv2d_ref(h, p["conv2_w"], p["conv2_b"]))
    flat = h.reshape(B, -1)
    encoded = jnp.dot(flat, p["enc_w"].T, precision=hp) + p["enc_b"]
    mu = jnp.dot(encoded, p["mu_w"].T, precision=hp) + p["mu_b"]
    logvar = jnp.dot(encoded, p["lv_w"].T, precision=hp) + p["lv_b"]
    d = jax.nn.relu(jnp.dot(z, p["dec_w"].T, precision=hp) + p["dec_b"])
    d = d.reshape(B, 8, 7, 7)
    d = jax.nn.relu(_conv_transpose2d_ref(d, p["dec1_w"], p["dec1_b"]))
    d = jax.nn.sigmoid(_conv_transpose2d_ref(d, p["dec2_w"], p["dec2_b"]))
    return encoded, d, mu, logvar


if __name__ == "__main__":
    root = jax.random.PRNGKey(0)
    k_x, k_eps, k_params = jax.random.split(root, 3)

    B = 2
    x = jax.random.normal(k_x, (B, 1, 28, 28), jnp.float32)
    params = init_params(k_params)
    prepared = prepare_params(params)          # one-time weight reformatting

    # TODO(synk): eps could be drawn on-chip (pltpu.prng_*) on real hardware,
    # but those primitives have no interpret/CPU lowering, so draw it here.
    eps = jax.random.normal(k_eps, (B, LATENT), jnp.float32)

    fwd = jax.jit(vae_forward)
    encoded, decoded, mu, logvar, z = fwd(prepared, x, eps)
    jax.block_until_ready((encoded, decoded, mu, logvar, z))

    # Sanity-check against the pure-JAX reference (same z, same eps draw).
    ref_enc, ref_dec, ref_mu, ref_lv = reference_forward(params, x, z)
    checks = (("encoded", encoded, ref_enc), ("mu", mu, ref_mu),
              ("logvar", logvar, ref_lv), ("decoded", decoded, ref_dec))
    for name, got, ref in checks:
        err = float(jnp.max(jnp.abs(got - ref)))
        if err > 2e-2:
            raise AssertionError(f"{name} mismatch vs reference, max|err|={err}")

    assert encoded.shape == (B, 10) and decoded.shape == (B, 1, 28, 28)
    assert mu.shape == (B, 10) and logvar.shape == (B, 10)
    print("KERNEL_OK")
</pallas_src>

<mosaic_0001>
module attributes {stable_mosaic.version = 11 : i64} {
  func.func @_mm_bias_act_kernel(%arg0: i32, %arg1: i32, %arg2: memref<392x9xf32, #tpu.memory_space<vmem>>, %arg3: memref<9x128xf32, #tpu.memory_space<vmem>>, %arg4: memref<1x128xf32, #tpu.memory_space<vmem>>, %arg5: memref<392x128xf32, #tpu.memory_space<vmem>>) attributes {dimension_semantics = [#tpu.dimension_semantics<parallel>, #tpu.dimension_semantics<parallel>], iteration_bounds = array<i64: 1, 1>, scalar_prefetch = 0 : i64, scratch_operands = 0 : i64, tpu.core_type = #tpu.core_type<tc>, window_params = [{transform_indices = @transform_0, window_bounds = array<i64: 392, 9>}, {transform_indices = @transform_1, window_bounds = array<i64: 9, 128>}, {transform_indices = @transform_2, window_bounds = array<i64: 1, 128>}, {transform_indices = @transform_3, window_bounds = array<i64: 392, 128>}]} {
    %c0 = arith.constant 0 : index
    %c0_0 = arith.constant 0 : index
    %0 = vector.load %arg2[%c0, %c0_0] : memref<392x9xf32, #tpu.memory_space<vmem>>, vector<392x9xf32>
    %c0_1 = arith.constant 0 : index
    %c0_2 = arith.constant 0 : index
    %1 = vector.load %arg3[%c0_1, %c0_2] : memref<9x128xf32, #tpu.memory_space<vmem>>, vector<9x128xf32>
    %cst = arith.constant dense<0.000000e+00> : vector<392x128xf32>
    %2 = tpu.matmul %0, %1, %cst {dimension_numbers = #tpu.dot_dimension_numbers<[1], [0], [0], [1], [0, 0, 1, 1], [], []>} : vector<392x9xf32>, vector<9x128xf32>, vector<392x128xf32> -> vector<392x128xf32>
    %c0_3 = arith.constant 0 : index
    %c0_4 = arith.constant 0 : index
    %3 = vector.load %arg4[%c0_3, %c0_4] : memref<1x128xf32, #tpu.memory_space<vmem>>, vector<1x128xf32>
    %4 = vector.broadcast %3 : vector<1x128xf32> to vector<392x128xf32>
    %5 = arith.addf %2, %4 : vector<392x128xf32>
    %cst_5 = arith.constant 0.000000e+00 : f32
    %6 = vector.broadcast %cst_5 : f32 to vector<392x128xf32>
    %7 = arith.maximumf %5, %6 : vector<392x128xf32>
    %c0_6 = arith.constant 0 : index
    %c0_7 = arith.constant 0 : index
    %8 = vector.load %arg5[%c0_6, %c0_7] : memref<392x128xf32, #tpu.memory_space<vmem>>, vector<392x128xf32>
    tpu.vector_store %arg5[%c0_6, %c0_7], %7 {strides = array<i32>} : memref<392x128xf32, #tpu.memory_space<vmem>>, vector<392x128xf32>,
    return
  }
  func.func @transform_0(%arg0: i32, %arg1: i32) -> (i32, i32) {
    %c0_i32 = arith.constant 0 : i32
    %c0_i32_0 = arith.constant 0 : i32
    return %arg0, %c0_i32 : i32, i32
  }
  func.func @transform_1(%arg0: i32, %arg1: i32) -> (i32, i32) {
    %c0_i32 = arith.constant 0 : i32
    %c0_i32_0 = arith.constant 0 : i32
    return %c0_i32, %arg1 : i32, i32
  }
  func.func @transform_2(%arg0: i32, %arg1: i32) -> (i32, i32) {
    %c0_i32 = arith.constant 0 : i32
    %c0_i32_0 = arith.constant 0 : i32
    return %c0_i32, %arg1 : i32, i32
  }
  func.func @transform_3(%arg0: i32, %arg1: i32) -> (i32, i32) {
    %c0_i32 = arith.constant 0 : i32
    return %arg0, %arg1 : i32, i32
  }
}

module attributes {stable_mosaic.version = 11 : i64} {
  func.func @_mm_bias_act_kernel(%arg0: i32, %arg1: i32, %arg2: memref<104x144xf32, #tpu.memory_space<vmem>>, %arg3: memref<144x128xf32, #tpu.memory_space<vmem>>, %arg4: memref<1x128xf32, #tpu.memory_space<vmem>>, %arg5: memref<104x128xf32, #tpu.memory_space<vmem>>) attributes {dimension_semantics = [#tpu.dimension_semantics<parallel>, #tpu.dimension_semantics<parallel>], iteration_bounds = array<i64: 1, 1>, scalar_prefetch = 0 : i64, scratch_operands = 0 : i64, tpu.core_type = #tpu.core_type<tc>, window_params = [{transform_indices = @transform_0, window_bounds = array<i64: 104, 144>}, {transform_indices = @transform_1, window_bounds = array<i64: 144, 128>}, {transform_indices = @transform_2, window_bounds = array<i64: 1, 128>}, {transform_indices = @transform_3, window_bounds = array<i64: 104, 128>}]} {
    %c0 = arith.constant 0 : index
    %c0_0 = arith.constant 0 : index
    %0 = vector.load %arg2[%c0, %c0_0] : memref<104x144xf32, #tpu.memory_space<vmem>>, vector<104x144xf32>
    %c0_1 = arith.constant 0 : index
    %c0_2 = arith.constant 0 : index
    %1 = vector.load %arg3[%c0_1, %c0_2] : memref<144x128xf32, #tpu.memory_space<vmem>>, vector<144x128xf32>
    %cst = arith.constant dense<0.000000e+00> : vector<104x128xf32>
    %2 = tpu.matmul %0, %1, %cst {dimension_numbers = #tpu.dot_dimension_numbers<[1], [0], [0], [1], [0, 0, 1, 1], [], []>} : vector<104x144xf32>, vector<144x128xf32>, vector<104x128xf32> -> vector<104x128xf32>
    %c0_3 = arith.constant 0 : index
    %c0_4 = arith.constant 0 : index
    %3 = vector.load %arg4[%c0_3, %c0_4] : memref<1x128xf32, #tpu.memory_space<vmem>>, vector<1x128xf32>
    %4 = vector.broadcast %3 : vector<1x128xf32> to vector<104x128xf32>
    %5 = arith.addf %2, %4 : vector<104x128xf32>
    %cst_5 = arith.constant 0.000000e+00 : f32
    %6 = vector.broadcast %cst_5 : f32 to vector<104x128xf32>
    %7 = arith.maximumf %5, %6 : vector<104x128xf32>
    %c0_6 = arith.constant 0 : index
    %c0_7 = arith.constant 0 : index
    %8 = vector.load %arg5[%c0_6, %c0_7] : memref<104x128xf32, #tpu.memory_space<vmem>>, vector<104x128xf32>
    tpu.vector_store %arg5[%c0_6, %c0_7], %7 {strides = array<i32>} : memref<104x128xf32, #tpu.memory_space<vmem>>, vector<104x128xf32>,
    return
  }
  func.func @transform_0(%arg0: i32, %arg1: i32) -> (i32, i32) {
    %c0_i32 = arith.constant 0 : i32
    %c0_i32_0 = arith.constant 0 : i32
    return %arg0, %c0_i32 : i32, i32
  }
  func.func @transform_1(%arg0: i32, %arg1: i32) -> (i32, i32) {
    %c0_i32 = arith.constant 0 : i32
    %c0_i32_0 = arith.constant 0 : i32
    return %c0_i32, %arg1 : i32, i32
  }
  func.func @transform_2(%arg0: i32, %arg1: i32) -> (i32, i32) {
    %c0_i32 = arith.constant 0 : i32
    %c0_i32_0 = arith.constant 0 : i32
    return %c0_i32, %arg1 : i32, i32
  }
  func.func @transform_3(%arg0: i32, %arg1: i32) -> (i32, i32) {
    %c0_i32 = arith.constant 0 : i32
    return %arg0, %arg1 : i32, i32
  }
}

module attributes {stable_mosaic.version = 11 : i64} {
  func.func @_latent_kernel(%arg0: i32, %arg1: memref<8x392xf32, #tpu.memory_space<vmem>>, %arg2: memref<8x128xf32, #tpu.memory_space<vmem>>, %arg3: memref<392x128xf32, #tpu.memory_space<vmem>>, %arg4: memref<1x128xf32, #tpu.memory_space<vmem>>, %arg5: memref<128x256xf32, #tpu.memory_space<vmem>>, %arg6: memref<1x256xf32, #tpu.memory_space<vmem>>, %arg7: memref<128x392xf32, #tpu.memory_space<vmem>>, %arg8: memref<1x392xf32, #tpu.memory_space<vmem>>, %arg9: memref<8x128xf32, #tpu.memory_space<vmem>>, %arg10: memref<8x256xf32, #tpu.memory_space<vmem>>, %arg11: memref<8x128xf32, #tpu.memory_space<vmem>>, %arg12: memref<8x392xf32, #tpu.memory_space<vmem>>) attributes {dimension_semantics = [#tpu.dimension_semantics<arbitrary>], iteration_bounds = array<i64: 1>, scalar_prefetch = 0 : i64, scratch_operands = 0 : i64, tpu.core_type = #tpu.core_type<tc>, window_params = [{pipeline_mode = #tpu.pipeline_mode<synchronous>, transform_indices = @transform_0, window_bounds = array<i64: 8, 392>}, {pipeline_mode = #tpu.pipeline_mode<synchronous>, transform_indices = @transform_1, window_bounds = array<i64: 8, 128>}, {pipeline_mode = #tpu.pipeline_mode<synchronous>, transform_indices = @transform_2, window_bounds = array<i64: 392, 128>}, {pipeline_mode = #tpu.pipeline_mode<synchronous>, transform_indices = @transform_3, window_bounds = array<i64: 1, 128>}, {pipeline_mode = #tpu.pipeline_mode<synchronous>, transform_indices = @transform_4, window_bounds = array<i64: 128, 256>}, {pipeline_mode = #tpu.pipeline_mode<synchronous>, transform_indices = @transform_5, window_bounds = array<i64: 1, 256>}, {pipeline_mode = #tpu.pipeline_mode<synchronous>, transform_indices = @transform_6, window_bounds = array<i64: 128, 392>}, {pipeline_mode = #tpu.pipeline_mode<synchronous>, transform_indices = @transform_7, window_bounds = array<i64: 1, 392>}, {pipeline_mode = #tpu.pipeline_mode<synchronous>, transform_indices = @transform_8, window_bounds = array<i64: 8, 128>}, {pipeline_mode = #tpu.pipeline_mode<synchronous>, transform_indices = @transform_9, window_bounds = array<i64: 8, 256>}, {pipeline_mode = #tpu.pipeline_mode<synchronous>, transform_indices = @transform_10, window_bounds = array<i64: 8, 128>}, {pipeline_mode = #tpu.pipeline_mode<synchronous>, transform_indices = @transform_11, window_bounds = array<i64: 8, 392>}]} {
    %c0 = arith.constant 0 : index
    %c0_0 = arith.constant 0 : index
    %0 = vector.load %arg1[%c0, %c0_0] : memref<8x392xf32, #tpu.memory_space<vmem>>, vector<8x392xf32>
    %c0_1 = arith.constant 0 : index
    %c0_2 = arith.constant 0 : index
    %1 = vector.load %arg3[%c0_1, %c0_2] : memref<392x128xf32, #tpu.memory_space<vmem>>, vector<392x128xf32>
    %cst = arith.constant dense<0.000000e+00> : vector<8x128xf32>
    %2 = tpu.matmul %0, %1, %cst {dimension_numbers = #tpu.dot_dimension_numbers<[1], [0], [0], [1], [0, 0, 1, 1], [], []>} : vector<8x392xf32>, vector<392x128xf32>, vector<8x128xf32> -> vector<8x128xf32>
    %c0_3 = arith.constant 0 : index
    %c0_4 = arith.constant 0 : index
    %3 = vector.load %arg4[%c0_3, %c0_4] : memref<1x128xf32, #tpu.memory_space<vmem>>, vector<1x128xf32>
    %4 = vector.broadcast %3 : vector<1x128xf32> to vector<8x128xf32>
    %5 = arith.addf %2, %4 : vector<8x128xf32>
    %c0_5 = arith.constant 0 : index
    %c0_6 = arith.constant 0 : index
    %6 = vector.load %arg9[%c0_5, %c0_6] : memref<8x128xf32, #tpu.memory_space<vmem>>, vector<8x128xf32>
    tpu.vector_store %arg9[%c0_5, %c0_6], %5 {strides = array<i32>} : memref<8x128xf32, #tpu.memory_space<vmem>>, vector<8x128xf32>,
    %c0_7 = arith.constant 0 : index
    %c0_8 = arith.constant 0 : index
    %7 = vector.load %arg5[%c0_7, %c0_8] : memref<128x256xf32, #tpu.memory_space<vmem>>, vector<128x256xf32>
    %cst_9 = arith.constant dense<0.000000e+00> : vector<8x256xf32>
    %8 = tpu.matmul %5, %7, %cst_9 {dimension_numbers = #tpu.dot_dimension_numbers<[1], [0], [0], [1], [0, 0, 1, 1], [], []>} : vector<8x128xf32>, vector<128x256xf32>, vector<8x256xf32> -> vector<8x256xf32>
    %c0_10 = arith.constant 0 : index
    %c0_11 = arith.constant 0 : index
    %9 = vector.load %arg6[%c0_10, %c0_11] : memref<1x256xf32, #tpu.memory_space<vmem>>, vector<1x256xf32>
    %10 = vector.broadcast %9 : vector<1x256xf32> to vector<8x256xf32>
    %11 = arith.addf %8, %10 : vector<8x256xf32>
    %c0_12 = arith.constant 0 : index
    %c0_13 = arith.constant 0 : index
    %12 = vector.load %arg10[%c0_12, %c0_13] : memref<8x256xf32, #tpu.memory_space<vmem>>, vector<8x256xf32>
    tpu.vector_store %arg10[%c0_12, %c0_13], %11 {strides = array<i32>} : memref<8x256xf32, #tpu.memory_space<vmem>>, vector<8x256xf32>,
    %13 = vector.extract_strided_slice %11 {offsets = [0, 0], sizes = [8, 128], strides = [1, 1]} : vector<8x256xf32> to vector<8x128xf32>
    %14 = vector.extract_strided_slice %11 {offsets = [0, 128], sizes = [8, 128], strides = [1, 1]} : vector<8x256xf32> to vector<8x128xf32>
    %cst_14 = arith.constant 5.000000e-01 : f32
    %15 = vector.broadcast %cst_14 : f32 to vector<8x128xf32>
    %16 = arith.mulf %15, %14 : vector<8x128xf32>
    %17 = math.exp %16 : vector<8x128xf32>
    %c0_15 = arith.constant 0 : index
    %c0_16 = arith.constant 0 : index
    %18 = vector.load %arg2[%c0_15, %c0_16] : memref<8x128xf32, #tpu.memory_space<vmem>>, vector<8x128xf32>
    %19 = arith.mulf %17, %18 : vector<8x128xf32>
    %20 = arith.addf %13, %19 : vector<8x128xf32>
    %c0_17 = arith.constant 0 : index
    %c0_18 = arith.constant 0 : index
    %21 = vector.load %arg11[%c0_17, %c0_18] : memref<8x128xf32, #tpu.memory_space<vmem>>, vector<8x128xf32>
    tpu.vector_store %arg11[%c0_17, %c0_18], %20 {strides = array<i32>} : memref<8x128xf32, #tpu.memory_space<vmem>>, vector<8x128xf32>,
    %c0_19 = arith.constant 0 : index
    %c0_20 = arith.constant 0 : index
    %22 = vector.load %arg7[%c0_19, %c0_20] : memref<128x392xf32, #tpu.memory_space<vmem>>, vector<128x392xf32>
    %cst_21 = arith.constant dense<0.000000e+00> : vector<8x392xf32>
    %23 = tpu.matmul %20, %22, %cst_21 {dimension_numbers = #tpu.dot_dimension_numbers<[1], [0], [0], [1], [0, 0, 1, 1], [], []>} : vector<8x128xf32>, vector<128x392xf32>, vector<8x392xf32> -> vector<8x392xf32>
    %c0_22 = arith.constant 0 : index
    %c0_23 = arith.constant 0 : index
    %24 = vector.load %arg8[%c0_22, %c0_23] : memref<1x392xf32, #tpu.memory_space<vmem>>, vector<1x392xf32>
    %25 = vector.broadcast %24 : vector<1x392xf32> to vector<8x392xf32>
    %26 = arith.addf %23, %25 : vector<8x392xf32>
    %cst_24 = arith.constant 0.000000e+00 : f32
    %27 = vector.broadcast %cst_24 : f32 to vector<8x392xf32>
    %28 = arith.maximumf %26, %27 : vector<8x392xf32>
    %c0_25 = arith.constant 0 : index
    %c0_26 = arith.constant 0 : index
    %29 = vector.load %arg12[%c0_25, %c0_26] : memref<8x392xf32, #tpu.memory_space<vmem>>, vector<8x392xf32>
    tpu.vector_store %arg12[%c0_25, %c0_26], %28 {strides = array<i32>} : memref<8x392xf32, #tpu.memory_space<vmem>>, vector<8x392xf32>,
    return
  }
  func.func @transform_0(%arg0: i32) -> (i32, i32) {
    %c0_i32 = arith.constant 0 : i32
    %c0_i32_0 = arith.constant 0 : i32
    %c0_i32_1 = arith.constant 0 : i32
    return %c0_i32, %c0_i32_0 : i32, i32
  }
  func.func @transform_1(%arg0: i32) -> (i32, i32) {
    %c0_i32 = arith.constant 0 : i32
    %c0_i32_0 = arith.constant 0 : i32
    %c0_i32_1 = arith.constant 0 : i32
    return %c0_i32, %c0_i32_0 : i32, i32
  }
  func.func @transform_2(%arg0: i32) -> (i32, i32) {
    %c0_i32 = arith.constant 0 : i32
    %c0_i32_0 = arith.constant 0 : i32
    %c0_i32_1 = arith.constant 0 : i32
    return %c0_i32, %c0_i32_0 : i32, i32
  }
  func.func @transform_3(%arg0: i32) -> (i32, i32) {
    %c0_i32 = arith.constant 0 : i32
    %c0_i32_0 = arith.constant 0 : i32
    %c0_i32_1 = arith.constant 0 : i32
    return %c0_i32, %c0_i32_0 : i32, i32
  }
  func.func @transform_4(%arg0: i32) -> (i32, i32) {
    %c0_i32 = arith.constant 0 : i32
    %c0_i32_0 = arith.constant 0 : i32
    %c0_i32_1 = arith.constant 0 : i32
    return %c0_i32, %c0_i32_0 : i32, i32
  }
  func.func @transform_5(%arg0: i32) -> (i32, i32) {
    %c0_i32 = arith.constant 0 : i32
    %c0_i32_0 = arith.constant 0 : i32
    %c0_i32_1 = arith.constant 0 : i32
    return %c0_i32, %c0_i32_0 : i32, i32
  }
  func.func @transform_6(%arg0: i32) -> (i32, i32) {
    %c0_i32 = arith.constant 0 : i32
    %c0_i32_0 = arith.constant 0 : i32
    %c0_i32_1 = arith.constant 0 : i32
    return %c0_i32, %c0_i32_0 : i32, i32
  }
  func.func @transform_7(%arg0: i32) -> (i32, i32) {
    %c0_i32 = arith.constant 0 : i32
    %c0_i32_0 = arith.constant 0 : i32
    %c0_i32_1 = arith.constant 0 : i32
    return %c0_i32, %c0_i32_0 : i32, i32
  }
  func.func @transform_8(%arg0: i32) -> (i32, i32) {
    %c0_i32 = arith.constant 0 : i32
    %c0_i32_0 = arith.constant 0 : i32
    %c0_i32_1 = arith.constant 0 : i32
    return %c0_i32, %c0_i32_0 : i32, i32
  }
  func.func @transform_9(%arg0: i32) -> (i32, i32) {
    %c0_i32 = arith.constant 0 : i32
    %c0_i32_0 = arith.constant 0 : i32
    %c0_i32_1 = arith.constant 0 : i32
    return %c0_i32, %c0_i32_0 : i32, i32
  }
  func.func @transform_10(%arg0: i32) -> (i32, i32) {
    %c0_i32 = arith.constant 0 : i32
    %c0_i32_0 = arith.constant 0 : i32
    %c0_i32_1 = arith.constant 0 : i32
    return %c0_i32, %c0_i32_0 : i32, i32
  }
  func.func @transform_11(%arg0: i32) -> (i32, i32) {
    %c0_i32 = arith.constant 0 : i32
    %c0_i32_0 = arith.constant 0 : i32
    %c0_i32_1 = arith.constant 0 : i32
    return %c0_i32, %c0_i32_0 : i32, i32
  }
}

module attributes {stable_mosaic.version = 11 : i64} {
  func.func @_mm_bias_act_kernel(%arg0: i32, %arg1: i32, %arg2: memref<104x32xf32, #tpu.memory_space<vmem>>, %arg3: memref<32x128xf32, #tpu.memory_space<vmem>>, %arg4: memref<1x128xf32, #tpu.memory_space<vmem>>, %arg5: memref<104x128xf32, #tpu.memory_space<vmem>>) attributes {dimension_semantics = [#tpu.dimension_semantics<parallel>, #tpu.dimension_semantics<parallel>], iteration_bounds = array<i64: 1, 1>, scalar_prefetch = 0 : i64, scratch_operands = 0 : i64, tpu.core_type = #tpu.core_type<tc>, window_params = [{transform_indices = @transform_0, window_bounds = array<i64: 104, 32>}, {transform_indices = @transform_1, window_bounds = array<i64: 32, 128>}, {transform_indices = @transform_2, window_bounds = array<i64: 1, 128>}, {transform_indices = @transform_3, window_bounds = array<i64: 104, 128>}]} {
    %c0 = arith.constant 0 : index
    %c0_0 = arith.constant 0 : index
    %0 = vector.load %arg2[%c0, %c0_0] : memref<104x32xf32, #tpu.memory_space<vmem>>, vector<104x32xf32>
    %c0_1 = arith.constant 0 : index
    %c0_2 = arith.constant 0 : index
    %1 = vector.load %arg3[%c0_1, %c0_2] : memref<32x128xf32, #tpu.memory_space<vmem>>, vector<32x128xf32>
    %cst = arith.constant dense<0.000000e+00> : vector<104x128xf32>
    %2 = tpu.matmul %0, %1, %cst {dimension_numbers = #tpu.dot_dimension_numbers<[1], [0], [0], [1], [0, 0, 1, 1], [], []>} : vector<104x32xf32>, vector<32x128xf32>, vector<104x128xf32> -> vector<104x128xf32>
    %c0_3 = arith.constant 0 : index
    %c0_4 = arith.constant 0 : index
    %3 = vector.load %arg4[%c0_3, %c0_4] : memref<1x128xf32, #tpu.memory_space<vmem>>, vector<1x128xf32>
    %4 = vector.broadcast %3 : vector<1x128xf32> to vector<104x128xf32>
    %5 = arith.addf %2, %4 : vector<104x128xf32>
    %cst_5 = arith.constant 0.000000e+00 : f32
    %6 = vector.broadcast %cst_5 : f32 to vector<104x128xf32>
    %7 = arith.maximumf %5, %6 : vector<104x128xf32>
    %c0_6 = arith.constant 0 : index
    %c0_7 = arith.constant 0 : index
    %8 = vector.load %arg5[%c0_6, %c0_7] : memref<104x128xf32, #tpu.memory_space<vmem>>, vector<104x128xf32>
    tpu.vector_store %arg5[%c0_6, %c0_7], %7 {strides = array<i32>} : memref<104x128xf32, #tpu.memory_space<vmem>>, vector<104x128xf32>,
    return
  }
  func.func @transform_0(%arg0: i32, %arg1: i32) -> (i32, i32) {
    %c0_i32 = arith.constant 0 : i32
    %c0_i32_0 = arith.constant 0 : i32
    return %arg0, %c0_i32 : i32, i32
  }
  func.func @transform_1(%arg0: i32, %arg1: i32) -> (i32, i32) {
    %c0_i32 = arith.constant 0 : i32
    %c0_i32_0 = arith.constant 0 : i32
    return %c0_i32, %arg1 : i32, i32
  }
  func.func @transform_2(%arg0: i32, %arg1: i32) -> (i32, i32) {
    %c0_i32 = arith.constant 0 : i32
    %c0_i32_0 = arith.constant 0 : i32
    return %c0_i32, %arg1 : i32, i32
  }
  func.func @transform_3(%arg0: i32, %arg1: i32) -> (i32, i32) {
    %c0_i32 = arith.constant 0 : i32
    return %arg0, %arg1 : i32, i32
  }
}

module attributes {stable_mosaic.version = 11 : i64} {
  func.func @_mm_bias_act_kernel(%arg0: i32, %arg1: i32, %arg2: memref<392x64xf32, #tpu.memory_space<vmem>>, %arg3: memref<64x128xf32, #tpu.memory_space<vmem>>, %arg4: memref<1x128xf32, #tpu.memory_space<vmem>>, %arg5: memref<392x128xf32, #tpu.memory_space<vmem>>) attributes {dimension_semantics = [#tpu.dimension_semantics<parallel>, #tpu.dimension_semantics<parallel>], iteration_bounds = array<i64: 1, 1>, scalar_prefetch = 0 : i64, scratch_operands = 0 : i64, tpu.core_type = #tpu.core_type<tc>, window_params = [{transform_indices = @transform_0, window_bounds = array<i64: 392, 64>}, {transform_indices = @transform_1, window_bounds = array<i64: 64, 128>}, {transform_indices = @transform_2, window_bounds = array<i64: 1, 128>}, {transform_indices = @transform_3, window_bounds = array<i64: 392, 128>}]} {
    %c0 = arith.constant 0 : index
    %c0_0 = arith.constant 0 : index
    %0 = vector.load %arg2[%c0, %c0_0] : memref<392x64xf32, #tpu.memory_space<vmem>>, vector<392x64xf32>
    %c0_1 = arith.constant 0 : index
    %c0_2 = arith.constant 0 : index
    %1 = vector.load %arg3[%c0_1, %c0_2] : memref<64x128xf32, #tpu.memory_space<vmem>>, vector<64x128xf32>
    %cst = arith.constant dense<0.000000e+00> : vector<392x128xf32>
    %2 = tpu.matmul %0, %1, %cst {dimension_numbers = #tpu.dot_dimension_numbers<[1], [0], [0], [1], [0, 0, 1, 1], [], []>} : vector<392x64xf32>, vector<64x128xf32>, vector<392x128xf32> -> vector<392x128xf32>
    %c0_3 = arith.constant 0 : index
    %c0_4 = arith.constant 0 : index
    %3 = vector.load %arg4[%c0_3, %c0_4] : memref<1x128xf32, #tpu.memory_space<vmem>>, vector<1x128xf32>
    %4 = vector.broadcast %3 : vector<1x128xf32> to vector<392x128xf32>
    %5 = arith.addf %2, %4 : vector<392x128xf32>
    %6 = arith.negf %5 : vector<392x128xf32>
    %7 = math.exp %6 : vector<392x128xf32>
    %cst_5 = arith.constant 1.000000e+00 : f32
    %8 = vector.broadcast %cst_5 : f32 to vector<392x128xf32>
    %9 = arith.addf %8, %7 : vector<392x128xf32>
    %10 = arith.divf %8, %9 : vector<392x128xf32>
    %c0_6 = arith.constant 0 : index
    %c0_7 = arith.constant 0 : index
    %11 = vector.load %arg5[%c0_6, %c0_7] : memref<392x128xf32, #tpu.memory_space<vmem>>, vector<392x128xf32>
    tpu.vector_store %arg5[%c0_6, %c0_7], %10 {strides = array<i32>} : memref<392x128xf32, #tpu.memory_space<vmem>>, vector<392x128xf32>,
    return
  }
  func.func @transform_0(%arg0: i32, %arg1: i32) -> (i32, i32) {
    %c0_i32 = arith.constant 0 : i32
    %c0_i32_0 = arith.constant 0 : i32
    return %arg0, %c0_i32 : i32, i32
  }
  func.func @transform_1(%arg0: i32, %arg1: i32) -> (i32, i32) {
    %c0_i32 = arith.constant 0 : i32
    %c0_i32_0 = arith.constant 0 : i32
    return %c0_i32, %arg1 : i32, i32
  }
  func.func @transform_2(%arg0: i32, %arg1: i32) -> (i32, i32) {
    %c0_i32 = arith.constant 0 : i32
    %c0_i32_0 = arith.constant 0 : i32
    return %c0_i32, %arg1 : i32, i32
  }
  func.func @transform_3(%arg0: i32, %arg1: i32) -> (i32, i32) {
    %c0_i32 = arith.constant 0 : i32
    return %arg0, %arg1 : i32, i32
  }
}

</mosaic_0001>

<llo_original>
// kernel: vae_forward.5
$region0: #{vae_forward.5}
  #allocation0 [shape = 'u32[]', space=smem, size = 0x4, offset = 0x4, fixed_abs, tag = 'smem constant byte address 0x4 - core index']
  #allocation1 [shape = 'u32[144,128]{1,0:T(1,128)}', space=vmem, size = 0x12000, scoped, tag = 'internal scratch']
  %s0 = inlined_call_operand.vmem [shape: f32[392,9], index: 0, kind: input, shape index: {}]
  %s1 = inlined_call_operand.vmem [shape: f32[9,128], index: 1, kind: input, shape index: {}]
  %s2 = inlined_call_operand.vmem [shape: f32[1,128], index: 2, kind: input, shape index: {}]
  %s3 = inlined_call_operand.vmem [shape: f32[392,128], index: 3, kind: output, shape index: {}]
  %s4 = sld [smem:[#allocation0]]
  $region22: #{vae_forward.5} parent=0
    _
  %s6 = ssub.s32 1, %s4
  %s7 = scalar_select 0, %s6, %s4
  // Predicated region
  $region2: #{vae_forward.5} parent=0 // pred_check
    _
  $region3: #{vae_forward.5} parent=0 // pred_check_branch
    %9 = sbr.rel (0) target = $region5
  $region4: #{vae_forward.5} parent=0 // pred_region
    _
  $region5: #{vae_forward.5} parent=0 // pred_fallthru
    _
  // Predicated region
  $region6: #{vae_forward.5} parent=0 // pred_check
    _
  $region7: #{vae_forward.5} parent=0 // pred_check_branch
    %11 = sbr.rel (0) target = $region9
  $region8: #{vae_forward.5} parent=0 // pred_region
    _
  $region9: #{vae_forward.5} parent=0 // pred_fallthru
    _
  // Predicated region
  $region10: #{vae_forward.5} parent=0 // pred_check
    _
  $region11: #{vae_forward.5} parent=0 // pred_check_branch
    %13 = sbr.rel (0) target = $region13
  $region12: #{vae_forward.5} parent=0 // pred_region
    _
  $region13: #{vae_forward.5} parent=0 // pred_fallthru
    _
  %v14 = vld [vmem:[%s0] sm:$0xff]
  %v15 = vld [vmem:[%s0 + $0x8] sm:$0xff]
  %v16 = vld [vmem:[%s0 + $0x10] sm:$0xff]
  %v17 = vld [vmem:[%s0 + $0x18] sm:$0xff]
  %v18 = vld [vmem:[%s0 + $0x20] sm:$0xff]
  %v19 = vld [vmem:[%s0 + $0x28] sm:$0xff]
  %v20 = vld [vmem:[%s0 + $0x30] sm:$0xff]
  %v21 = vld [vmem:[%s0 + $0x38] sm:$0xff]
  %v22 = vld [vmem:[%s0 + $0x40] sm:$0xff]
  %v23 = vld [vmem:[%s0 + $0x48] sm:$0xff]
  %v24 = vld [vmem:[%s0 + $0x50] sm:$0xff]
  %v25 = vld [vmem:[%s0 + $0x58] sm:$0xff]
  %v26 = vld [vmem:[%s0 + $0x60] sm:$0xff]
  %v27 = vld [vmem:[%s0 + $0x68] sm:$0xff]
  %v28 = vld [vmem:[%s0 + $0x70] sm:$0xff]
  %v29 = vld [vmem:[%s0 + $0x78] sm:$0xff]
  %v30 = vld [vmem:[%s0 + $0x80] sm:$0xff]
  %v31 = vld [vmem:[%s0 + $0x88] sm:$0xff]
  %v32 = vld [vmem:[%s0 + $0x90] sm:$0xff]
  %v33 = vld [vmem:[%s0 + $0x98] sm:$0xff]
  %v34 = vld [vmem:[%s0 + $0xa0] sm:$0xff]
  %v35 = vld [vmem:[%s0 + $0xa8] sm:$0xff]
  %v36 = vld [vmem:[%s0 + $0xb0] sm:$0xff]
  %v37 = vld [vmem:[%s0 + $0xb8] sm:$0xff]
  %v38 = vld [vmem:[%s0 + $0xc0] sm:$0xff]
  %v39 = vld [vmem:[%s0 + $0xc8] sm:$0xff]
  %v40 = vld [vmem:[%s0 + $0xd0] sm:$0xff]
  %v41 = vld [vmem:[%s0 + $0xd8] sm:$0xff]
  %v42 = vld [vmem:[%s0 + $0xe0] sm:$0xff]
  %v43 = vld [vmem:[%s0 + $0xe8] sm:$0xff]
  %v44 = vld [vmem:[%s0 + $0xf0] sm:$0xff]
  %v45 = vld [vmem:[%s0 + $0xf8] sm:$0xff]
  %v46 = vld [vmem:[%s0 + $0x100] sm:$0xff]
  %v47 = vld [vmem:[%s0 + $0x108] sm:$0xff]
  %v48 = vld [vmem:[%s0 + $0x110] sm:$0xff]
  %v49 = vld [vmem:[%s0 + $0x118] sm:$0xff]
  %v50 = vld [vmem:[%s0 + $0x120] sm:$0xff]
  %v51 = vld [vmem:[%s0 + $0x128] sm:$0xff]
  %v52 = vld [vmem:[%s0 + $0x130] sm:$0xff]
  %v53 = vld [vmem:[%s0 + $0x138] sm:$0xff]
  %v54 = vld [vmem:[%s0 + $0x140] sm:$0xff]
  %v55 = vld [vmem:[%s0 + $0x148] sm:$0xff]
  %v56 = vld [vmem:[%s0 + $0x150] sm:$0xff]
  %v57 = vld [vmem:[%s0 + $0x158] sm:$0xff]
  %v58 = vld [vmem:[%s0 + $0x160] sm:$0xff]
  %v59 = vld [vmem:[%s0 + $0x168] sm:$0xff]
  %v60 = vld [vmem:[%s0 + $0x170] sm:$0xff]
  %v61 = vld [vmem:[%s0 + $0x178] sm:$0xff]
  %v62 = vld [vmem:[%s0 + $0x180] sm:$0xff]
  %v63 = vld [vmem:[%s1] sm:$0xff]
  %v64 = vld [vmem:[%s1 + $0x8] sm:$0x1]
  %v65 = vld [vmem:[%s2] sm:$0x1]
  %v67 = vlaneseq
  %v68 = vshrl.u32 %v67, 7
  %v69 = vsub.s32 0, %v68
  %v70 = vrot.slane %v65, %v69
  %vm72 = vcmask 72704
  %v74 = vsel %vm72, %v14, 0
  %v77 = vsel %vm72, %v15, 0
  %v80 = vsel %vm72, %v16, 0
  %v83 = vsel %vm72, %v17, 0
  %v86 = vsel %vm72, %v18, 0
  %v89 = vsel %vm72, %v19, 0
  %v92 = vsel %vm72, %v20, 0
  %v95 = vsel %vm72, %v21, 0
  %v98 = vsel %vm72, %v22, 0
  %v101 = vsel %vm72, %v23, 0
  %v104 = vsel %vm72, %v24, 0
  %v107 = vsel %vm72, %v25, 0
  %v110 = vsel %vm72, %v26, 0
  %v113 = vsel %vm72, %v27, 0
  %v116 = vsel %vm72, %v28, 0
  %v119 = vsel %vm72, %v29, 0
  %v122 = vsel %vm72, %v30, 0
  %v125 = vsel %vm72, %v31, 0
  %v128 = vsel %vm72, %v32, 0
  %v131 = vsel %vm72, %v33, 0
  %v134 = vsel %vm72, %v34, 0
  %v137 = vsel %vm72, %v35, 0
  %v140 = vsel %vm72, %v36, 0
  %v143 = vsel %vm72, %v37, 0
  %v146 = vsel %vm72, %v38, 0
  %v149 = vsel %vm72, %v39, 0
  %v152 = vsel %vm72, %v40, 0
  %v155 = vsel %vm72, %v41, 0
  %v158 = vsel %vm72, %v42, 0
  %v161 = vsel %vm72, %v43, 0
  %v164 = vsel %vm72, %v44, 0
  %v167 = vsel %vm72, %v45, 0
  %v170 = vsel %vm72, %v46, 0
  %v173 = vsel %vm72, %v47, 0
  %v176 = vsel %vm72, %v48, 0
  %v179 = vsel %vm72, %v49, 0
  %v182 = vsel %vm72, %v50, 0
  %v185 = vsel %vm72, %v51, 0
  %v188 = vsel %vm72, %v52, 0
  %v191 = vsel %vm72, %v53, 0
  %v194 = vsel %vm72, %v54, 0
  %v197 = vsel %vm72, %v55, 0
  %v200 = vsel %vm72, %v56, 0
  %v203 = vsel %vm72, %v57, 0
  %v206 = vsel %vm72, %v58, 0
  %v209 = vsel %vm72, %v59, 0
  %v212 = vsel %vm72, %v60, 0
  %v215 = vsel %vm72, %v61, 0
  %v218 = vsel %vm72, %v62, 0
  %vm220 = vcmask 1040384
  %v222 = vsel %vm220, %v64, 0
  %224 = vmatprep.subr.mxu0 0.0
  %225 = vmatpush1.msra.mxu0 %v63
  %226 = vmatprep.subr.mxu0 0.0
  %227 = vmatpush1.msra.mxu0 %v222
  %228 = vmatprep.subr.mxu0 0.0
  %229 = vmatpush1.msra.mxu0 0.0
  %230 = vmatprep.subr.mxu0 0.0
  %231 = vmatpush1.msra.mxu0 0.0
  %232 = vmatprep.subr.mxu0 0.0
  %233 = vmatpush1.msra.mxu0 0.0
  %234 = vmatprep.subr.mxu0 0.0
  %235 = vmatpush1.msra.mxu0 0.0
  %236 = vmatprep.subr.mxu0 0.0
  %237 = vmatpush1.msra.mxu0 0.0
  %238 = vmatprep.subr.mxu0 0.0
  %239 = vmatpush1.msra.mxu0 0.0
  %240 = vmatprep.subr.mxu0 0.0
  %241 = vmatpush1.msra.mxu0 0.0
  %242 = vmatprep.subr.mxu0 0.0
  %243 = vmatpush1.msra.mxu0 0.0
  %244 = vmatprep.subr.mxu0 0.0
  %245 = vmatpush1.msra.mxu0 0.0
  %246 = vmatprep.subr.mxu0 0.0
  %247 = vmatpush1.msra.mxu0 0.0
  %248 = vmatprep.subr.mxu0 0.0
  %249 = vmatpush1.msra.mxu0 0.0
  %250 = vmatprep.subr.mxu0 0.0
  %251 = vmatpush1.msra.mxu0 0.0
  %252 = vmatprep.subr.mxu0 0.0
  %253 = vmatpush1.msra.mxu0 0.0
  %254 = vmatprep.subr.mxu0 0.0
  %255 = vmatpush1.msra.mxu0 0.0
  %256 = vmatprep.subr.mxu0 0.0
  %257 = vmatpush1.msra.mxu0 0.0
  %258 = vmatprep.subr.mxu0 0.0
  %259 = vmatpush1.msra.mxu0 0.0
  %260 = vmatprep.subr.mxu0 0.0
  %261 = vmatpush1.msra.mxu0 0.0
  %262 = vmatprep.subr.mxu0 0.0
  %263 = vmatpush1.msra.mxu0 0.0
  %264 = vmatprep.subr.mxu0 0.0
  %265 = vmatpush1.msra.mxu0 0.0
  %266 = vmatprep.subr.mxu0 0.0
  %267 = vmatpush1.msra.mxu0 0.0
  %268 = vmatprep.subr.mxu0 0.0
  %269 = vmatpush1.msra.mxu0 0.0
  %270 = vmatprep.subr.mxu0 0.0
  %271 = vmatpush1.msra.mxu0 0.0
  %272 = vmatprep.subr.mxu0 0.0
  %273 = vmatpush1.msra.mxu0 0.0
  %274 = vmatprep.subr.mxu0 0.0
  %275 = vmatpush1.msra.mxu0 0.0
  %276 = vmatprep.subr.mxu0 0.0
  %277 = vmatpush1.msra.mxu0 0.0
  %278 = vmatprep.subr.mxu0 0.0
  %279 = vmatpush1.msra.mxu0 0.0
  %280 = vmatprep.subr.mxu0 0.0
  %281 = vmatpush1.msra.mxu0 0.0
  %282 = vmatprep.subr.mxu0 0.0
  %283 = vmatpush1.msra.mxu0 0.0
  %284 = vmatprep.subr.mxu0 0.0
  %285 = vmatpush1.msra.mxu0 0.0
  %286 = vmatprep.subr.mxu0 0.0
  %287 = vmatpush1.msra.mxu0 0.0
  %288 = vmatprep.mubr.f32.mxu0 0.0
  %289 = vmatmul.mubr.f32.gmra.mrb[0].mxu0 %v74
  %v290 = vpop.f32.mrb[0].mxu0
  %v291 = vadd.f32 %v70, %v290
  %v292 = vpop.f32.mrb[0].mxu0
  %293 = vmatprep.mubr.f32.mxu0 0.0
  %294 = vmatmul.mubr.f32.gmra.mrb[0].mxu0 %v77
  %v295 = vpop.f32.mrb[0].mxu0
  %v296 = vadd.f32 %v70, %v295
  %v297 = vpop.f32.mrb[0].mxu0
  %298 = vmatprep.mubr.f32.mxu0 0.0
  %299 = vmatmul.mubr.f32.gmra.mrb[0].mxu0 %v80
  %v300 = vpop.f32.mrb[0].mxu0
  %v301 = vadd.f32 %v70, %v300
  %v302 = vpop.f32.mrb[0].mxu0
  %303 = vmatprep.mubr.f32.mxu0 0.0
  %304 = vmatmul.mubr.f32.gmra.mrb[0].mxu0 %v83
  %v305 = vpop.f32.mrb[0].mxu0
  %v306 = vadd.f32 %v70, %v305
  %v307 = vpop.f32.mrb[0].mxu0
  %308 = vmatprep.mubr.f32.mxu0 0.0
  %309 = vmatmul.mubr.f32.gmra.mrb[0].mxu0 %v86
  %v310 = vpop.f32.mrb[0].mxu0
  %v311 = vadd.f32 %v70, %v310
  %v312 = vpop.f32.mrb[0].mxu0
  %313 = vmatprep.mubr.f32.mxu0 0.0
  %314 = vmatmul.mubr.f32.gmra.mrb[0].mxu0 %v89
  %v315 = vpop.f32.mrb[0].mxu0
  %v316 = vadd.f32 %v70, %v315
  %v317 = vpop.f32.mrb[0].mxu0
  %318 = vmatprep.mubr.f32.mxu0 0.0
  %319 = vmatmul.mubr.f32.gmra.mrb[0].mxu0 %v92
  %v320 = vpop.f32.mrb[0].mxu0
  %v321 = vadd.f32 %v70, %v320
  %v322 = vpop.f32.mrb[0].mxu0
  %323 = vmatprep.mubr.f32.mxu0 0.0
  %324 = vmatmul.mubr.f32.gmra.mrb[0].mxu0 %v95
  %v325 = vpop.f32.mrb[0].mxu0
  %v326 = vadd.f32 %v70, %v325
  %v327 = vpop.f32.mrb[0].mxu0
  %328 = vmatprep.mubr.f32.mxu0 0.0
  %329 = vmatmul.mubr.f32.gmra.mrb[0].mxu0 %v98
  %v330 = vpop.f32.mrb[0].mxu0
  %v331 = vadd.f32 %v70, %v330
  %v332 = vpop.f32.mrb[0].mxu0
  %333 = vmatprep.mubr.f32.mxu0 0.0
  %334 = vmatmul.mubr.f32.gmra.mrb[0].mxu0 %v101
  %v335 = vpop.f32.mrb[0].mxu0
  %v336 = vadd.f32 %v70, %v335
  %v337 = vpop.f32.mrb[0].mxu0
  %338 = vmatprep.mubr.f32.mxu0 0.0
  %339 = vmatmul.mubr.f32.gmra.mrb[0].mxu0 %v104
  %v340 = vpop.f32.mrb[0].mxu0
  %v341 = vadd.f32 %v70, %v340
  %v342 = vpop.f32.mrb[0].mxu0
  %343 = vmatprep.mubr.f32.mxu0 0.0
  %344 = vmatmul.mubr.f32.gmra.mrb[0].mxu0 %v107
  %v345 = vpop.f32.mrb[0].mxu0
  %v346 = vadd.f32 %v70, %v345
  %v347 = vpop.f32.mrb[0].mxu0
  %348 = vmatprep.mubr.f32.mxu0 0.0
  %349 = vmatmul.mubr.f32.gmra.mrb[0].mxu0 %v110
  %v350 = vpop.f32.mrb[0].mxu0
  %v351 = vadd.f32 %v70, %v350
  %v352 = vpop.f32.mrb[0].mxu0
  %353 = vmatprep.mubr.f32.mxu0 0.0
  %354 = vmatmul.mubr.f32.gmra.mrb[0].mxu0 %v113
  %v355 = vpop.f32.mrb[0].mxu0
  %v356 = vadd.f32 %v70, %v355
  %v357 = vpop.f32.mrb[0].mxu0
  %358 = vmatprep.mubr.f32.mxu0 0.0
  %359 = vmatmul.mubr.f32.gmra.mrb[0].mxu0 %v116
  %v360 = vpop.f32.mrb[0].mxu0
  %v361 = vadd.f32 %v70, %v360
  %v362 = vpop.f32.mrb[0].mxu0
  %363 = vmatprep.mubr.f32.mxu0 0.0
  %364 = vmatmul.mubr.f32.gmra.mrb[0].mxu0 %v119
  %v365 = vpop.f32.mrb[0].mxu0
  %v366 = vadd.f32 %v70, %v365
  %v367 = vpop.f32.mrb[0].mxu0
  %368 = vmatprep.mubr.f32.mxu0 0.0
  %369 = vmatmul.mubr.f32.gmra.mrb[0].mxu0 %v122
  %v370 = vpop.f32.mrb[0].mxu0
  %v371 = vadd.f32 %v70, %v370
  %v372 = vpop.f32.mrb[0].mxu0
  %373 = vmatprep.mubr.f32.mxu0 0.0
  %374 = vmatmul.mubr.f32.gmra.mrb[0].mxu0 %v125
  %v375 = vpop.f32.mrb[0].mxu0
  %v376 = vadd.f32 %v70, %v375
  %v377 = vpop.f32.mrb[0].mxu0
  %378 = vmatprep.mubr.f32.mxu0 0.0
  %379 = vmatmul.mubr.f32.gmra.mrb[0].mxu0 %v128
  %v380 = vpop.f32.mrb[0].mxu0
  %v381 = vadd.f32 %v70, %v380
  %v382 = vpop.f32.mrb[0].mxu0
  %383 = vmatprep.mubr.f32.mxu0 0.0
  %384 = vmatmul.mubr.f32.gmra.mrb[0].mxu0 %v131
  %v385 = vpop.f32.mrb[0].mxu0
  %v386 = vadd.f32 %v70, %v385
  %v387 = vpop.f32.mrb[0].mxu0
  %388 = vmatprep.mubr.f32.mxu0 0.0
  %389 = vmatmul.mubr.f32.gmra.mrb[0].mxu0 %v134
  %v390 = vpop.f32.mrb[0].mxu0
  %v391 = vadd.f32 %v70, %v390
  %v392 = vpop.f32.mrb[0].mxu0
  %393 = vmatprep.mubr.f32.mxu0 0.0
  %394 = vmatmul.mubr.f32.gmra.mrb[0].mxu0 %v137
  %v395 = vpop.f32.mrb[0].mxu0
  %v396 = vadd.f32 %v70, %v395
  %v397 = vpop.f32.mrb[0].mxu0
  %398 = vmatprep.mubr.f32.mxu0 0.0
  %399 = vmatmul.mubr.f32.gmra.mrb[0].mxu0 %v140
  %v400 = vpop.f32.mrb[0].mxu0
  %v401 = vadd.f32 %v70, %v400
  %v402 = vpop.f32.mrb[0].mxu0
  %403 = vmatprep.mubr.f32.mxu0 0.0
  %404 = vmatmul.mubr.f32.gmra.mrb[0].mxu0 %v143
  %v405 = vpop.f32.mrb[0].mxu0
  %v406 = vadd.f32 %v70, %v405
  %v407 = vpop.f32.mrb[0].mxu0
  %408 = vmatprep.mubr.f32.mxu0 0.0
  %409 = vmatmul.mubr.f32.gmra.mrb[0].mxu0 %v146
  %v410 = vpop.f32.mrb[0].mxu0
  %v411 = vadd.f32 %v70, %v410
  %v412 = vpop.f32.mrb[0].mxu0
  %413 = vmatprep.mubr.f32.mxu0 0.0
  %414 = vmatmul.mubr.f32.gmra.mrb[0].mxu0 %v149
  %v415 = vpop.f32.mrb[0].mxu0
  %v416 = vadd.f32 %v70, %v415
  %v417 = vpop.f32.mrb[0].mxu0
  %418 = vmatprep.mubr.f32.mxu0 0.0
  %419 = vmatmul.mubr.f32.gmra.mrb[0].mxu0 %v152
  %v420 = vpop.f32.mrb[0].mxu0
  %v421 = vadd.f32 %v70, %v420
  %v422 = vpop.f32.mrb[0].mxu0
  %423 = vmatprep.mubr.f32.mxu0 0.0
  %424 = vmatmul.mubr.f32.gmra.mrb[0].mxu0 %v155
  %v425 = vpop.f32.mrb[0].mxu0
  %v426 = vadd.f32 %v70, %v425
  %v427 = vpop.f32.mrb[0].mxu0
  %428 = vmatprep.mubr.f32.mxu0 0.0
  %429 = vmatmul.mubr.f32.gmra.mrb[0].mxu0 %v158
  %v430 = vpop.f32.mrb[0].mxu0
  %v431 = vadd.f32 %v70, %v430
  %v432 = vpop.f32.mrb[0].mxu0
  %433 = vmatprep.mubr.f32.mxu0 0.0
  %434 = vmatmul.mubr.f32.gmra.mrb[0].mxu0 %v161
  %v435 = vpop.f32.mrb[0].mxu0
  %v436 = vadd.f32 %v70, %v435
  %v437 = vpop.f32.mrb[0].mxu0
  %438 = vmatprep.mubr.f32.mxu0 0.0
  %439 = vmatmul.mubr.f32.gmra.mrb[0].mxu0 %v164
  %v440 = vpop.f32.mrb[0].mxu0
  %v441 = vadd.f32 %v70, %v440
  %v442 = vpop.f32.mrb[0].mxu0
  %443 = vmatprep.mubr.f32.mxu0 0.0
  %444 = vmatmul.mubr.f32.gmra.mrb[0].mxu0 %v167
  %v445 = vpop.f32.mrb[0].mxu0
  %v446 = vadd.f32 %v70, %v445
  %v447 = vpop.f32.mrb[0].mxu0
  %448 = vmatprep.mubr.f32.mxu0 0.0
  %449 = vmatmul.mubr.f32.gmra.mrb[0].mxu0 %v170
  %v450 = vpop.f32.mrb[0].mxu0
  %v451 = vadd.f32 %v70, %v450
  %v452 = vpop.f32.mrb[0].mxu0
  %453 = vmatprep.mubr.f32.mxu0 0.0
  %454 = vmatmul.mubr.f32.gmra.mrb[0].mxu0 %v173
  %v455 = vpop.f32.mrb[0].mxu0
  %v456 = vadd.f32 %v70, %v455
  %v457 = vpop.f32.mrb[0].mxu0
  %458 = vmatprep.mubr.f32.mxu0 0.0
  %459 = vmatmul.mubr.f32.gmra.mrb[0].mxu0 %v176
  %v460 = vpop.f32.mrb[0].mxu0
  %v461 = vadd.f32 %v70, %v460
  %v462 = vpop.f32.mrb[0].mxu0
  %463 = vmatprep.mubr.f32.mxu0 0.0
  %464 = vmatmul.mubr.f32.gmra.mrb[0].mxu0 %v179
  %v465 = vpop.f32.mrb[0].mxu0
  %v466 = vadd.f32 %v70, %v465
  %v467 = vpop.f32.mrb[0].mxu0
  %468 = vmatprep.mubr.f32.mxu0 0.0
  %469 = vmatmul.mubr.f32.gmra.mrb[0].mxu0 %v182
  %v470 = vpop.f32.mrb[0].mxu0
  %v471 = vadd.f32 %v70, %v470
  %v472 = vpop.f32.mrb[0].mxu0
  %473 = vmatprep.mubr.f32.mxu0 0.0
  %474 = vmatmul.mubr.f32.gmra.mrb[0].mxu0 %v185
  %v475 = vpop.f32.mrb[0].mxu0
  %v476 = vadd.f32 %v70, %v475
  %v477 = vpop.f32.mrb[0].mxu0
  %478 = vmatprep.mubr.f32.mxu0 0.0
  %479 = vmatmul.mubr.f32.gmra.mrb[0].mxu0 %v188
  %v480 = vpop.f32.mrb[0].mxu0
  %v481 = vadd.f32 %v70, %v480
  %v482 = vpop.f32.mrb[0].mxu0
  %483 = vmatprep.mubr.f32.mxu0 0.0
  %484 = vmatmul.mubr.f32.gmra.mrb[0].mxu0 %v191
  %v485 = vpop.f32.mrb[0].mxu0
  %v486 = vadd.f32 %v70, %v485
  %v487 = vpop.f32.mrb[0].mxu0
  %488 = vmatprep.mubr.f32.mxu0 0.0
  %489 = vmatmul.mubr.f32.gmra.mrb[0].mxu0 %v194
  %v490 = vpop.f32.mrb[0].mxu0
  %v491 = vadd.f32 %v70, %v490
  %v492 = vpop.f32.mrb[0].mxu0
  %493 = vmatprep.mubr.f32.mxu0 0.0
  %494 = vmatmul.mubr.f32.gmra.mrb[0].mxu0 %v197
  %v495 = vpop.f32.mrb[0].mxu0
  %v496 = vadd.f32 %v70, %v495
  %v497 = vpop.f32.mrb[0].mxu0
  %498 = vmatprep.mubr.f32.mxu0 0.0
  %499 = vmatmul.mubr.f32.gmra.mrb[0].mxu0 %v200
  %v500 = vpop.f32.mrb[0].mxu0
  %v501 = vadd.f32 %v70, %v500
  %v502 = vpop.f32.mrb[0].mxu0
  %503 = vmatprep.mubr.f32.mxu0 0.0
  %504 = vmatmul.mubr.f32.gmra.mrb[0].mxu0 %v203
  %v505 = vpop.f32.mrb[0].mxu0
  %v506 = vadd.f32 %v70, %v505
  %v507 = vpop.f32.mrb[0].mxu0
  %508 = vmatprep.mubr.f32.mxu0 0.0
  %509 = vmatmul.mubr.f32.gmra.mrb[0].mxu0 %v206
  %v510 = vpop.f32.mrb[0].mxu0
  %v511 = vadd.f32 %v70, %v510
  %v512 = vpop.f32.mrb[0].mxu0
  %513 = vmatprep.mubr.f32.mxu0 0.0
  %514 = vmatmul.mubr.f32.gmra.mrb[0].mxu0 %v209
  %v515 = vpop.f32.mrb[0].mxu0
  %v516 = vadd.f32 %v70, %v515
  %v517 = vpop.f32.mrb[0].mxu0
  %518 = vmatprep.mubr.f32.mxu0 0.0
  %519 = vmatmul.mubr.f32.gmra.mrb[0].mxu0 %v212
  %v520 = vpop.f32.mrb[0].mxu0
  %v521 = vadd.f32 %v70, %v520
  %v522 = vpop.f32.mrb[0].mxu0
  %523 = vmatprep.mubr.f32.mxu0 0.0
  %524 = vmatmul.mubr.f32.gmra.mrb[0].mxu0 %v215
  %v525 = vpop.f32.mrb[0].mxu0
  %v526 = vadd.f32 %v70, %v525
  %v527 = vpop.f32.mrb[0].mxu0
  %528 = vmatprep.mubr.f32.mxu0 0.0
  %529 = vmatmul.mubr.f32.gmra.mrb[0].mxu0 %v218
  %v530 = vpop.f32.mrb[0].mxu0
  %v531 = vadd.f32 %v70, %v530
  %v532 = vpop.f32.mrb[0].mxu0
  %533 = vdwg.mxu0
  %v534 = vmax.f32 %v291, 0.0
  %v535 = vmax.f32 %v296, 0.0
  %v536 = vmax.f32 %v301, 0.0
  %v537 = vmax.f32 %v306, 0.0
  %v538 = vmax.f32 %v311, 0.0
  %v539 = vmax.f32 %v316, 0.0
  %v540 = vmax.f32 %v321, 0.0
  %v541 = vmax.f32 %v326, 0.0
  %v542 = vmax.f32 %v331, 0.0
  %v543 = vmax.f32 %v336, 0.0
  %v544 = vmax.f32 %v341, 0.0
  %v545 = vmax.f32 %v346, 0.0
  %v546 = vmax.f32 %v351, 0.0
  %v547 = vmax.f32 %v356, 0.0
  %v548 = vmax.f32 %v361, 0.0
  %v549 = vmax.f32 %v366, 0.0
  %v550 = vmax.f32 %v371, 0.0
  %v551 = vmax.f32 %v376, 0.0
  %v552 = vmax.f32 %v381, 0.0
  %v553 = vmax.f32 %v386, 0.0
  %v554 = vmax.f32 %v391, 0.0
  %v555 = vmax.f32 %v396, 0.0
  %v556 = vmax.f32 %v401, 0.0
  %v557 = vmax.f32 %v406, 0.0
  %v558 = vmax.f32 %v411, 0.0
  %v559 = vmax.f32 %v416, 0.0
  %v560 = vmax.f32 %v421, 0.0
  %v561 = vmax.f32 %v426, 0.0
  %v562 = vmax.f32 %v431, 0.0
  %v563 = vmax.f32 %v436, 0.0
  %v564 = vmax.f32 %v441, 0.0
  %v565 = vmax.f32 %v446, 0.0
  %v566 = vmax.f32 %v451, 0.0
  %v567 = vmax.f32 %v456, 0.0
  %v568 = vmax.f32 %v461, 0.0
  %v569 = vmax.f32 %v466, 0.0
  %v570 = vmax.f32 %v471, 0.0
  %v571 = vmax.f32 %v476, 0.0
  %v572 = vmax.f32 %v481, 0.0
  %v573 = vmax.f32 %v486, 0.0
  %v574 = vmax.f32 %v491, 0.0
  %v575 = vmax.f32 %v496, 0.0
  %v576 = vmax.f32 %v501, 0.0
  %v577 = vmax.f32 %v506, 0.0
  %v578 = vmax.f32 %v511, 0.0
  %v579 = vmax.f32 %v516, 0.0
  %v580 = vmax.f32 %v521, 0.0
  %v581 = vmax.f32 %v526, 0.0
  %v582 = vmax.f32 %v531, 0.0
  %583 = vst [vmem:[%s3] sm:$0xff] %v534
  %584 = vst [vmem:[%s3 + $0x8] sm:$0xff] %v535
  %585 = vst [vmem:[%s3 + $0x10] sm:$0xff] %v536
  %586 = vst [vmem:[%s3 + $0x18] sm:$0xff] %v537
  %587 = vst [vmem:[%s3 + $0x20] sm:$0xff] %v538
  %588 = vst [vmem:[%s3 + $0x28] sm:$0xff] %v539
  %589 = vst [vmem:[%s3 + $0x30] sm:$0xff] %v540
  %590 = vst [vmem:[%s3 + $0x38] sm:$0xff] %v541
  %591 = vst [vmem:[%s3 + $0x40] sm:$0xff] %v542
  %592 = vst [vmem:[%s3 + $0x48] sm:$0xff] %v543
  %593 = vst [vmem:[%s3 + $0x50] sm:$0xff] %v544
  %594 = vst [vmem:[%s3 + $0x58] sm:$0xff] %v545
  %595 = vst [vmem:[%s3 + $0x60] sm:$0xff] %v546
  %596 = vst [vmem:[%s3 + $0x68] sm:$0xff] %v547
  %597 = vst [vmem:[%s3 + $0x70] sm:$0xff] %v548
  %598 = vst [vmem:[%s3 + $0x78] sm:$0xff] %v549
  %599 = vst [vmem:[%s3 + $0x80] sm:$0xff] %v550
  %600 = vst [vmem:[%s3 + $0x88] sm:$0xff] %v551
  %601 = vst [vmem:[%s3 + $0x90] sm:$0xff] %v552
  %602 = vst [vmem:[%s3 + $0x98] sm:$0xff] %v553
  %603 = vst [vmem:[%s3 + $0xa0] sm:$0xff] %v554
  %604 = vst [vmem:[%s3 + $0xa8] sm:$0xff] %v555
  %605 = vst [vmem:[%s3 + $0xb0] sm:$0xff] %v556
  %606 = vst [vmem:[%s3 + $0xb8] sm:$0xff] %v557
  %607 = vst [vmem:[%s3 + $0xc0] sm:$0xff] %v558
  %608 = vst [vmem:[%s3 + $0xc8] sm:$0xff] %v559
  %609 = vst [vmem:[%s3 + $0xd0] sm:$0xff] %v560
  %610 = vst [vmem:[%s3 + $0xd8] sm:$0xff] %v561
  %611 = vst [vmem:[%s3 + $0xe0] sm:$0xff] %v562
  %612 = vst [vmem:[%s3 + $0xe8] sm:$0xff] %v563
  %613 = vst [vmem:[%s3 + $0xf0] sm:$0xff] %v564
  %614 = vst [vmem:[%s3 + $0xf8] sm:$0xff] %v565
  %615 = vst [vmem:[%s3 + $0x100] sm:$0xff] %v566
  %616 = vst [vmem:[%s3 + $0x108] sm:$0xff] %v567
  %617 = vst [vmem:[%s3 + $0x110] sm:$0xff] %v568
  %618 = vst [vmem:[%s3 + $0x118] sm:$0xff] %v569
  %619 = vst [vmem:[%s3 + $0x120] sm:$0xff] %v570
  %620 = vst [vmem:[%s3 + $0x128] sm:$0xff] %v571
  %621 = vst [vmem:[%s3 + $0x130] sm:$0xff] %v572
  %622 = vst [vmem:[%s3 + $0x138] sm:$0xff] %v573
  %623 = vst [vmem:[%s3 + $0x140] sm:$0xff] %v574
  %624 = vst [vmem:[%s3 + $0x148] sm:$0xff] %v575
  %625 = vst [vmem:[%s3 + $0x150] sm:$0xff] %v576
  %626 = vst [vmem:[%s3 + $0x158] sm:$0xff] %v577
  %627 = vst [vmem:[%s3 + $0x160] sm:$0xff] %v578
  %628 = vst [vmem:[%s3 + $0x168] sm:$0xff] %v579
  %629 = vst [vmem:[%s3 + $0x170] sm:$0xff] %v580
  %630 = vst [vmem:[%s3 + $0x178] sm:$0xff] %v581
  %631 = vst [vmem:[%s3 + $0x180] sm:$0xff] %v582
  // Predicated region
  $region14: #{vae_forward.5} parent=0 // pred_check
    _
  $region15: #{vae_forward.5} parent=0 // pred_check_branch
    %633 = sbr.rel (0) target = $region17
  $region16: #{vae_forward.5} parent=0 // pred_region
    _
  $region17: #{vae_forward.5} parent=0 // pred_fallthru
    _
  // Predicated region
  $region18: #{vae_forward.5} parent=0 // pred_check
    _
  $region19: #{vae_forward.5} parent=0 // pred_check_branch
    %635 = sbr.rel (0) target = $region21
  $region20: #{vae_forward.5} parent=0 // pred_region
    _
  $region21: #{vae_forward.5} parent=0 // pred_fallthru
    _

// kernel: vae_forward.6
$region0: #{vae_forward.6}
  #allocation0 [shape = 'u32[]', space=smem, size = 0x4, offset = 0x4, fixed_abs, tag = 'smem constant byte address 0x4 - core index']
  #allocation1 [shape = 'u32[144,128]{1,0:T(1,128)}', space=vmem, size = 0x12000, scoped, tag = 'internal scratch']
  %s0 = inlined_call_operand.vmem [shape: f32[104,144], index: 0, kind: input, shape index: {}]
  %s1 = inlined_call_operand.vmem [shape: f32[144,128], index: 1, kind: input, shape index: {}]
  %s2 = inlined_call_operand.vmem [shape: f32[1,128], index: 2, kind: input, shape index: {}]
  %s3 = inlined_call_operand.vmem [shape: f32[104,128], index: 3, kind: output, shape index: {}]
  %s4 = sld [smem:[#allocation0]]
  $region22: #{vae_forward.6} parent=0
    _
  %s6 = ssub.s32 1, %s4
  %s7 = scalar_select 0, %s6, %s4
  // Predicated region
  $region2: #{vae_forward.6} parent=0 // pred_check
    _
  $region3: #{vae_forward.6} parent=0 // pred_check_branch
    %9 = sbr.rel (0) target = $region5
  $region4: #{vae_forward.6} parent=0 // pred_region
    _
  $region5: #{vae_forward.6} parent=0 // pred_fallthru
    _
  // Predicated region
  $region6: #{vae_forward.6} parent=0 // pred_check
    _
  $region7: #{vae_forward.6} parent=0 // pred_check_branch
    %11 = sbr.rel (0) target = $region9
  $region8: #{vae_forward.6} parent=0 // pred_region
    _
  $region9: #{vae_forward.6} parent=0 // pred_fallthru
    _
  // Predicated region
  $region10: #{vae_forward.6} parent=0 // pred_check
    _
  $region11: #{vae_forward.6} parent=0 // pred_check_branch
    %13 = sbr.rel (0) target = $region13
  $region12: #{vae_forward.6} parent=0 // pred_region
    _
  $region13: #{vae_forward.6} parent=0 // pred_fallthru
    _
  %v14 = vld [vmem:[%s0] sm:$0xff]
  %v15 = vld [vmem:[%s0 + $0x8] sm:$0xff]
  %v16 = vld [vmem:[%s0 + $0x10] sm:$0xff]
  %v17 = vld [vmem:[%s0 + $0x18] sm:$0xff]
  %v18 = vld [vmem:[%s0 + $0x20] sm:$0xff]
  %v19 = vld [vmem:[%s0 + $0x28] sm:$0xff]
  %v20 = vld [vmem:[%s0 + $0x30] sm:$0xff]
  %v21 = vld [vmem:[%s0 + $0x38] sm:$0xff]
  %v22 = vld [vmem:[%s0 + $0x40] sm:$0xff]
  %v23 = vld [vmem:[%s0 + $0x48] sm:$0xff]
  %v24 = vld [vmem:[%s0 + $0x50] sm:$0xff]
  %v25 = vld [vmem:[%s0 + $0x58] sm:$0xff]
  %v26 = vld [vmem:[%s0 + $0x60] sm:$0xff]
  %v27 = vld [vmem:[%s0 + $0x68] sm:$0xff]
  %v28 = vld [vmem:[%s0 + $0x70] sm:$0xff]
  %v29 = vld [vmem:[%s0 + $0x78] sm:$0xff]
  %v30 = vld [vmem:[%s0 + $0x80] sm:$0xff]
  %v31 = vld [vmem:[%s0 + $0x88] sm:$0xff]
  %v32 = vld [vmem:[%s0 + $0x90] sm:$0xff]
  %v33 = vld [vmem:[%s0 + $0x98] sm:$0xff]
  %v34 = vld [vmem:[%s0 + $0xa0] sm:$0xff]
  %v35 = vld [vmem:[%s0 + $0xa8] sm:$0xff]
  %v36 = vld [vmem:[%s0 + $0xb0] sm:$0xff]
  %v37 = vld [vmem:[%s0 + $0xb8] sm:$0xff]
  %v38 = vld [vmem:[%s0 + $0xc0] sm:$0xff]
  %v39 = vld [vmem:[%s0 + $0xc8] sm:$0xff]
  %v40 = vld [vmem:[%s1] sm:$0xff]
  %v41 = vld [vmem:[%s1 + $0x8] sm:$0xff]
  %v42 = vld [vmem:[%s1 + $0x10] sm:$0xff]
  %v43 = vld [vmem:[%s1 + $0x18] sm:$0xff]
  %v44 = vld [vmem:[%s1 + $0x20] sm:$0xff]
  %v45 = vld [vmem:[%s1 + $0x28] sm:$0xff]
  %v46 = vld [vmem:[%s1 + $0x30] sm:$0xff]
  %v47 = vld [vmem:[%s1 + $0x38] sm:$0xff]
  %v48 = vld [vmem:[%s1 + $0x40] sm:$0xff]
  %v49 = vld [vmem:[%s1 + $0x48] sm:$0xff]
  %v50 = vld [vmem:[%s1 + $0x50] sm:$0xff]
  %v51 = vld [vmem:[%s1 + $0x58] sm:$0xff]
  %v52 = vld [vmem:[%s1 + $0x60] sm:$0xff]
  %v53 = vld [vmem:[%s1 + $0x68] sm:$0xff]
  %v54 = vld [vmem:[%s1 + $0x70] sm:$0xff]
  %v55 = vld [vmem:[%s1 + $0x78] sm:$0xff]
  %v56 = vld [vmem:[%s1 + $0x80] sm:$0xff]
  %v57 = vld [vmem:[%s1 + $0x88] sm:$0xff]
  %v58 = vld [vmem:[%s2] sm:$0x1]
  %v60 = vlaneseq
  %v61 = vshrl.u32 %v60, 7
  %v62 = vsub.s32 0, %v61
  %v63 = vrot.slane %v58, %v62
  %vm65 = vcmask 130048
  %v67 = vsel %vm65, %v15, 0
  %v70 = vsel %vm65, %v17, 0
  %v73 = vsel %vm65, %v19, 0
  %v76 = vsel %vm65, %v21, 0
  %v79 = vsel %vm65, %v23, 0
  %v82 = vsel %vm65, %v25, 0
  %v85 = vsel %vm65, %v27, 0
  %v88 = vsel %vm65, %v29, 0
  %v91 = vsel %vm65, %v31, 0
  %v94 = vsel %vm65, %v33, 0
  %v97 = vsel %vm65, %v35, 0
  %v100 = vsel %vm65, %v37, 0
  %v103 = vsel %vm65, %v39, 0
  %105 = vmatprep.subr.mxu0 0.0
  %106 = vmatpush1.msra.mxu0 %v40
  %107 = vmatprep.subr.mxu0 0.0
  %108 = vmatpush1.msra.mxu0 %v41
  %109 = vmatprep.subr.mxu0 0.0
  %110 = vmatpush1.msra.mxu0 %v42
  %111 = vmatprep.subr.mxu0 0.0
  %112 = vmatpush1.msra.mxu0 %v43
  %113 = vmatprep.subr.mxu0 0.0
  %114 = vmatpush1.msra.mxu0 %v44
  %115 = vmatprep.subr.mxu0 0.0
  %116 = vmatpush1.msra.mxu0 %v45
  %117 = vmatprep.subr.mxu0 0.0
  %118 = vmatpush1.msra.mxu0 %v46
  %119 = vmatprep.subr.mxu0 0.0
  %120 = vmatpush1.msra.mxu0 %v47
  %121 = vmatprep.subr.mxu0 0.0
  %122 = vmatpush1.msra.mxu0 %v48
  %123 = vmatprep.subr.mxu0 0.0
  %124 = vmatpush1.msra.mxu0 %v49
  %125 = vmatprep.subr.mxu0 0.0
  %126 = vmatpush1.msra.mxu0 %v50
  %127 = vmatprep.subr.mxu0 0.0
  %128 = vmatpush1.msra.mxu0 %v51
  %129 = vmatprep.subr.mxu0 0.0
  %130 = vmatpush1.msra.mxu0 %v52
  %131 = vmatprep.subr.mxu0 0.0
  %132 = vmatpush1.msra.mxu0 %v53
  %133 = vmatprep.subr.mxu0 0.0
  %134 = vmatpush1.msra.mxu0 %v54
  %135 = vmatprep.subr.mxu0 0.0
  %136 = vmatpush1.msra.mxu0 %v55
  %137 = vmatprep.subr.mxu0 0.0
  %138 = vmatpush1.msra.mxu0 %v56
  %139 = vmatprep.subr.mxu0 0.0
  %140 = vmatpush1.msra.mxu0 %v57
  %141 = vmatprep.subr.mxu0 0.0
  %142 = vmatpush1.msra.mxu0 0.0
  %143 = vmatprep.subr.mxu0 0.0
  %144 = vmatpush1.msra.mxu0 0.0
  %145 = vmatprep.subr.mxu0 0.0
  %146 = vmatpush1.msra.mxu0 0.0
  %147 = vmatprep.subr.mxu0 0.0
  %148 = vmatpush1.msra.mxu0 0.0
  %149 = vmatprep.subr.mxu0 0.0
  %150 = vmatpush1.msra.mxu0 0.0
  %151 = vmatprep.subr.mxu0 0.0
  %152 = vmatpush1.msra.mxu0 0.0
  %153 = vmatprep.subr.mxu0 0.0
  %154 = vmatpush1.msra.mxu0 0.0
  %155 = vmatprep.subr.mxu0 0.0
  %156 = vmatpush1.msra.mxu0 0.0
  %157 = vmatprep.subr.mxu0 0.0
  %158 = vmatpush1.msra.mxu0 0.0
  %159 = vmatprep.subr.mxu0 0.0
  %160 = vmatpush1.msra.mxu0 0.0
  %161 = vmatprep.subr.mxu0 0.0
  %162 = vmatpush1.msra.mxu0 0.0
  %163 = vmatprep.subr.mxu0 0.0
  %164 = vmatpush1.msra.mxu0 0.0
  %165 = vmatprep.subr.mxu0 0.0
  %166 = vmatpush1.msra.mxu0 0.0
  %167 = vmatprep.subr.mxu0 0.0
  %168 = vmatpush1.msra.mxu0 0.0
  %169 = vmatprep.mubr.f32.mxu0 %v67
  %170 = vmatmul.mubr.f32.gmra.mrb[0].mxu0 %v14
  %v171 = vpop.f32.mrb[0].mxu0
  %v172 = vadd.f32 %v63, %v171
  %v173 = vpop.f32.mrb[0].mxu0
  %174 = vmatprep.mubr.f32.mxu0 %v70
  %175 = vmatmul.mubr.f32.gmra.mrb[0].mxu0 %v16
  %v176 = vpop.f32.mrb[0].mxu0
  %v177 = vadd.f32 %v63, %v176
  %v178 = vpop.f32.mrb[0].mxu0
  %179 = vmatprep.mubr.f32.mxu0 %v73
  %180 = vmatmul.mubr.f32.gmra.mrb[0].mxu0 %v18
  %v181 = vpop.f32.mrb[0].mxu0
  %v182 = vadd.f32 %v63, %v181
  %v183 = vpop.f32.mrb[0].mxu0
  %184 = vmatprep.mubr.f32.mxu0 %v76
  %185 = vmatmul.mubr.f32.gmra.mrb[0].mxu0 %v20
  %v186 = vpop.f32.mrb[0].mxu0
  %v187 = vadd.f32 %v63, %v186
  %v188 = vpop.f32.mrb[0].mxu0
  %189 = vmatprep.mubr.f32.mxu0 %v79
  %190 = vmatmul.mubr.f32.gmra.mrb[0].mxu0 %v22
  %v191 = vpop.f32.mrb[0].mxu0
  %v192 = vadd.f32 %v63, %v191
  %v193 = vpop.f32.mrb[0].mxu0
  %194 = vmatprep.mubr.f32.mxu0 %v82
  %195 = vmatmul.mubr.f32.gmra.mrb[0].mxu0 %v24
  %v196 = vpop.f32.mrb[0].mxu0
  %v197 = vadd.f32 %v63, %v196
  %v198 = vpop.f32.mrb[0].mxu0
  %199 = vmatprep.mubr.f32.mxu0 %v85
  %200 = vmatmul.mubr.f32.gmra.mrb[0].mxu0 %v26
  %v201 = vpop.f32.mrb[0].mxu0
  %v202 = vadd.f32 %v63, %v201
  %v203 = vpop.f32.mrb[0].mxu0
  %204 = vmatprep.mubr.f32.mxu0 %v88
  %205 = vmatmul.mubr.f32.gmra.mrb[0].mxu0 %v28
  %v206 = vpop.f32.mrb[0].mxu0
  %v207 = vadd.f32 %v63, %v206
  %v208 = vpop.f32.mrb[0].mxu0
  %209 = vmatprep.mubr.f32.mxu0 %v91
  %210 = vmatmul.mubr.f32.gmra.mrb[0].mxu0 %v30
  %v211 = vpop.f32.mrb[0].mxu0
  %v212 = vadd.f32 %v63, %v211
  %v213 = vpop.f32.mrb[0].mxu0
  %214 = vmatprep.mubr.f32.mxu0 %v94
  %215 = vmatmul.mubr.f32.gmra.mrb[0].mxu0 %v32
  %v216 = vpop.f32.mrb[0].mxu0
  %v217 = vadd.f32 %v63, %v216
  %v218 = vpop.f32.mrb[0].mxu0
  %219 = vmatprep.mubr.f32.mxu0 %v97
  %220 = vmatmul.mubr.f32.gmra.mrb[0].mxu0 %v34
  %v221 = vpop.f32.mrb[0].mxu0
  %v222 = vadd.f32 %v63, %v221
  %v223 = vpop.f32.mrb[0].mxu0
  %224 = vmatprep.mubr.f32.mxu0 %v100
  %225 = vmatmul.mubr.f32.gmra.mrb[0].mxu0 %v36
  %v226 = vpop.f32.mrb[0].mxu0
  %v227 = vadd.f32 %v63, %v226
  %v228 = vpop.f32.mrb[0].mxu0
  %229 = vmatprep.mubr.f32.mxu0 %v103
  %230 = vmatmul.mubr.f32.gmra.mrb[0].mxu0 %v38
  %v231 = vpop.f32.mrb[0].mxu0
  %v232 = vadd.f32 %v63, %v231
  %v233 = vpop.f32.mrb[0].mxu0
  %234 = vdwg.mxu0
  %v235 = vmax.f32 %v172, 0.0
  %v236 = vmax.f32 %v177, 0.0
  %v237 = vmax.f32 %v182, 0.0
  %v238 = vmax.f32 %v187, 0.0
  %v239 = vmax.f32 %v192, 0.0
  %v240 = vmax.f32 %v197, 0.0
  %v241 = vmax.f32 %v202, 0.0
  %v242 = vmax.f32 %v207, 0.0
  %v243 = vmax.f32 %v212, 0.0
  %v244 = vmax.f32 %v217, 0.0
  %v245 = vmax.f32 %v222, 0.0
  %v246 = vmax.f32 %v227, 0.0
  %v247 = vmax.f32 %v232, 0.0
  %248 = vst [vmem:[%s3] sm:$0xff] %v235
  %249 = vst [vmem:[%s3 + $0x8] sm:$0xff] %v236
  %250 = vst [vmem:[%s3 + $0x10] sm:$0xff] %v237
  %251 = vst [vmem:[%s3 + $0x18] sm:$0xff] %v238
  %252 = vst [vmem:[%s3 + $0x20] sm:$0xff] %v239
  %253 = vst [vmem:[%s3 + $0x28] sm:$0xff] %v240
  %254 = vst [vmem:[%s3 + $0x30] sm:$0xff] %v241
  %255 = vst [vmem:[%s3 + $0x38] sm:$0xff] %v242
  %256 = vst [vmem:[%s3 + $0x40] sm:$0xff] %v243
  %257 = vst [vmem:[%s3 + $0x48] sm:$0xff] %v244
  %258 = vst [vmem:[%s3 + $0x50] sm:$0xff] %v245
  %259 = vst [vmem:[%s3 + $0x58] sm:$0xff] %v246
  %260 = vst [vmem:[%s3 + $0x60] sm:$0xff] %v247
  // Predicated region
  $region14: #{vae_forward.6} parent=0 // pred_check
    _
  $region15: #{vae_forward.6} parent=0 // pred_check_branch
    %262 = sbr.rel (0) target = $region17
  $region16: #{vae_forward.6} parent=0 // pred_region
    _
  $region17: #{vae_forward.6} parent=0 // pred_fallthru
    _
  // Predicated region
  $region18: #{vae_forward.6} parent=0 // pred_check
    _
  $region19: #{vae_forward.6} parent=0 // pred_check_branch
    %264 = sbr.rel (0) target = $region21
  $region20: #{vae_forward.6} parent=0 // pred_region
    _
  $region21: #{vae_forward.6} parent=0 // pred_fallthru
    _

// kernel: vae_forward.8
$region0: #{vae_forward.8}
  #allocation0 [shape = 'u32[]', space=smem, size = 0x4, offset = 0x4, fixed_abs, tag = 'smem constant byte address 0x4 - core index']
  #allocation1 [shape = 'u32[144,128]{1,0:T(1,128)}', space=vmem, size = 0x12000, scoped, tag = 'internal scratch']
  %s0 = inlined_call_operand.vmem [shape: f32[104,32], index: 0, kind: input, shape index: {}]
  %s1 = inlined_call_operand.vmem [shape: f32[32,128], index: 1, kind: input, shape index: {}]
  %s2 = inlined_call_operand.vmem [shape: f32[1,128], index: 2, kind: input, shape index: {}]
  %s3 = inlined_call_operand.vmem [shape: f32[104,128], index: 3, kind: output, shape index: {}]
  %s4 = sld [smem:[#allocation0]]
  $region22: #{vae_forward.8} parent=0
    _
  %s6 = ssub.s32 1, %s4
  %s7 = scalar_select 0, %s6, %s4
  // Predicated region
  $region2: #{vae_forward.8} parent=0 // pred_check
    _
  $region3: #{vae_forward.8} parent=0 // pred_check_branch
    %9 = sbr.rel (0) target = $region5
  $region4: #{vae_forward.8} parent=0 // pred_region
    _
  $region5: #{vae_forward.8} parent=0 // pred_fallthru
    _
  // Predicated region
  $region6: #{vae_forward.8} parent=0 // pred_check
    _
  $region7: #{vae_forward.8} parent=0 // pred_check_branch
    %11 = sbr.rel (0) target = $region9
  $region8: #{vae_forward.8} parent=0 // pred_region
    _
  $region9: #{vae_forward.8} parent=0 // pred_fallthru
    _
  // Predicated region
  $region10: #{vae_forward.8} parent=0 // pred_check
    _
  $region11: #{vae_forward.8} parent=0 // pred_check_branch
    %13 = sbr.rel (0) target = $region13
  $region12: #{vae_forward.8} parent=0 // pred_region
    _
  $region13: #{vae_forward.8} parent=0 // pred_fallthru
    _
  %v14 = vld [vmem:[%s0] sm:$0xff]
  %v15 = vld [vmem:[%s0 + $0x8] sm:$0xff]
  %v16 = vld [vmem:[%s0 + $0x10] sm:$0xff]
  %v17 = vld [vmem:[%s0 + $0x18] sm:$0xff]
  %v18 = vld [vmem:[%s0 + $0x20] sm:$0xff]
  %v19 = vld [vmem:[%s0 + $0x28] sm:$0xff]
  %v20 = vld [vmem:[%s0 + $0x30] sm:$0xff]
  %v21 = vld [vmem:[%s0 + $0x38] sm:$0xff]
  %v22 = vld [vmem:[%s0 + $0x40] sm:$0xff]
  %v23 = vld [vmem:[%s0 + $0x48] sm:$0xff]
  %v24 = vld [vmem:[%s0 + $0x50] sm:$0xff]
  %v25 = vld [vmem:[%s0 + $0x58] sm:$0xff]
  %v26 = vld [vmem:[%s0 + $0x60] sm:$0xff]
  %v27 = vld [vmem:[%s1] sm:$0xff]
  %v28 = vld [vmem:[%s1 + $0x8] sm:$0xff]
  %v29 = vld [vmem:[%s1 + $0x10] sm:$0xff]
  %v30 = vld [vmem:[%s1 + $0x18] sm:$0xff]
  %v31 = vld [vmem:[%s2] sm:$0x1]
  %v33 = vlaneseq
  %v34 = vshrl.u32 %v33, 7
  %v35 = vsub.s32 0, %v34
  %v36 = vrot.slane %v31, %v35
  %vm38 = vcmask 261120
  %v40 = vsel %vm38, %v14, 0
  %v43 = vsel %vm38, %v15, 0
  %v46 = vsel %vm38, %v16, 0
  %v49 = vsel %vm38, %v17, 0
  %v52 = vsel %vm38, %v18, 0
  %v55 = vsel %vm38, %v19, 0
  %v58 = vsel %vm38, %v20, 0
  %v61 = vsel %vm38, %v21, 0
  %v64 = vsel %vm38, %v22, 0
  %v67 = vsel %vm38, %v23, 0
  %v70 = vsel %vm38, %v24, 0
  %v73 = vsel %vm38, %v25, 0
  %v76 = vsel %vm38, %v26, 0
  %78 = vmatprep.subr.mxu0 0.0
  %79 = vmatpush1.msra.mxu0 %v27
  %80 = vmatprep.subr.mxu0 0.0
  %81 = vmatpush1.msra.mxu0 %v28
  %82 = vmatprep.subr.mxu0 0.0
  %83 = vmatpush1.msra.mxu0 %v29
  %84 = vmatprep.subr.mxu0 0.0
  %85 = vmatpush1.msra.mxu0 %v30
  %86 = vmatprep.subr.mxu0 0.0
  %87 = vmatpush1.msra.mxu0 0.0
  %88 = vmatprep.subr.mxu0 0.0
  %89 = vmatpush1.msra.mxu0 0.0
  %90 = vmatprep.subr.mxu0 0.0
  %91 = vmatpush1.msra.mxu0 0.0
  %92 = vmatprep.subr.mxu0 0.0
  %93 = vmatpush1.msra.mxu0 0.0
  %94 = vmatprep.subr.mxu0 0.0
  %95 = vmatpush1.msra.mxu0 0.0
  %96 = vmatprep.subr.mxu0 0.0
  %97 = vmatpush1.msra.mxu0 0.0
  %98 = vmatprep.subr.mxu0 0.0
  %99 = vmatpush1.msra.mxu0 0.0
  %100 = vmatprep.subr.mxu0 0.0
  %101 = vmatpush1.msra.mxu0 0.0
  %102 = vmatprep.subr.mxu0 0.0
  %103 = vmatpush1.msra.mxu0 0.0
  %104 = vmatprep.subr.mxu0 0.0
  %105 = vmatpush1.msra.mxu0 0.0
  %106 = vmatprep.subr.mxu0 0.0
  %107 = vmatpush1.msra.mxu0 0.0
  %108 = vmatprep.subr.mxu0 0.0
  %109 = vmatpush1.msra.mxu0 0.0
  %110 = vmatprep.subr.mxu0 0.0
  %111 = vmatpush1.msra.mxu0 0.0
  %112 = vmatprep.subr.mxu0 0.0
  %113 = vmatpush1.msra.mxu0 0.0
  %114 = vmatprep.subr.mxu0 0.0
  %115 = vmatpush1.msra.mxu0 0.0
  %116 = vmatprep.subr.mxu0 0.0
  %117 = vmatpush1.msra.mxu0 0.0
  %118 = vmatprep.subr.mxu0 0.0
  %119 = vmatpush1.msra.mxu0 0.0
  %120 = vmatprep.subr.mxu0 0.0
  %121 = vmatpush1.msra.mxu0 0.0
  %122 = vmatprep.subr.mxu0 0.0
  %123 = vmatpush1.msra.mxu0 0.0
  %124 = vmatprep.subr.mxu0 0.0
  %125 = vmatpush1.msra.mxu0 0.0
  %126 = vmatprep.subr.mxu0 0.0
  %127 = vmatpush1.msra.mxu0 0.0
  %128 = vmatprep.subr.mxu0 0.0
  %129 = vmatpush1.msra.mxu0 0.0
  %130 = vmatprep.subr.mxu0 0.0
  %131 = vmatpush1.msra.mxu0 0.0
  %132 = vmatprep.subr.mxu0 0.0
  %133 = vmatpush1.msra.mxu0 0.0
  %134 = vmatprep.subr.mxu0 0.0
  %135 = vmatpush1.msra.mxu0 0.0
  %136 = vmatprep.subr.mxu0 0.0
  %137 = vmatpush1.msra.mxu0 0.0
  %138 = vmatprep.subr.mxu0 0.0
  %139 = vmatpush1.msra.mxu0 0.0
  %140 = vmatprep.subr.mxu0 0.0
  %141 = vmatpush1.msra.mxu0 0.0
  %142 = vmatprep.mubr.f32.mxu0 0.0
  %143 = vmatmul.mubr.f32.gmra.mrb[0].mxu0 %v40
  %v144 = vpop.f32.mrb[0].mxu0
  %v145 = vadd.f32 %v36, %v144
  %v146 = vpop.f32.mrb[0].mxu0
  %147 = vmatprep.mubr.f32.mxu0 0.0
  %148 = vmatmul.mubr.f32.gmra.mrb[0].mxu0 %v43
  %v149 = vpop.f32.mrb[0].mxu0
  %v150 = vadd.f32 %v36, %v149
  %v151 = vpop.f32.mrb[0].mxu0
  %152 = vmatprep.mubr.f32.mxu0 0.0
  %153 = vmatmul.mubr.f32.gmra.mrb[0].mxu0 %v46
  %v154 = vpop.f32.mrb[0].mxu0
  %v155 = vadd.f32 %v36, %v154
  %v156 = vpop.f32.mrb[0].mxu0
  %157 = vmatprep.mubr.f32.mxu0 0.0
  %158 = vmatmul.mubr.f32.gmra.mrb[0].mxu0 %v49
  %v159 = vpop.f32.mrb[0].mxu0
  %v160 = vadd.f32 %v36, %v159
  %v161 = vpop.f32.mrb[0].mxu0
  %162 = vmatprep.mubr.f32.mxu0 0.0
  %163 = vmatmul.mubr.f32.gmra.mrb[0].mxu0 %v52
  %v164 = vpop.f32.mrb[0].mxu0
  %v165 = vadd.f32 %v36, %v164
  %v166 = vpop.f32.mrb[0].mxu0
  %167 = vmatprep.mubr.f32.mxu0 0.0
  %168 = vmatmul.mubr.f32.gmra.mrb[0].mxu0 %v55
  %v169 = vpop.f32.mrb[0].mxu0
  %v170 = vadd.f32 %v36, %v169
  %v171 = vpop.f32.mrb[0].mxu0
  %172 = vmatprep.mubr.f32.mxu0 0.0
  %173 = vmatmul.mubr.f32.gmra.mrb[0].mxu0 %v58
  %v174 = vpop.f32.mrb[0].mxu0
  %v175 = vadd.f32 %v36, %v174
  %v176 = vpop.f32.mrb[0].mxu0
  %177 = vmatprep.mubr.f32.mxu0 0.0
  %178 = vmatmul.mubr.f32.gmra.mrb[0].mxu0 %v61
  %v179 = vpop.f32.mrb[0].mxu0
  %v180 = vadd.f32 %v36, %v179
  %v181 = vpop.f32.mrb[0].mxu0
  %182 = vmatprep.mubr.f32.mxu0 0.0
  %183 = vmatmul.mubr.f32.gmra.mrb[0].mxu0 %v64
  %v184 = vpop.f32.mrb[0].mxu0
  %v185 = vadd.f32 %v36, %v184
  %v186 = vpop.f32.mrb[0].mxu0
  %187 = vmatprep.mubr.f32.mxu0 0.0
  %188 = vmatmul.mubr.f32.gmra.mrb[0].mxu0 %v67
  %v189 = vpop.f32.mrb[0].mxu0
  %v190 = vadd.f32 %v36, %v189
  %v191 = vpop.f32.mrb[0].mxu0
  %192 = vmatprep.mubr.f32.mxu0 0.0
  %193 = vmatmul.mubr.f32.gmra.mrb[0].mxu0 %v70
  %v194 = vpop.f32.mrb[0].mxu0
  %v195 = vadd.f32 %v36, %v194
  %v196 = vpop.f32.mrb[0].mxu0
  %197 = vmatprep.mubr.f32.mxu0 0.0
  %198 = vmatmul.mubr.f32.gmra.mrb[0].mxu0 %v73
  %v199 = vpop.f32.mrb[0].mxu0
  %v200 = vadd.f32 %v36, %v199
  %v201 = vpop.f32.mrb[0].mxu0
  %202 = vmatprep.mubr.f32.mxu0 0.0
  %203 = vmatmul.mubr.f32.gmra.mrb[0].mxu0 %v76
  %v204 = vpop.f32.mrb[0].mxu0
  %v205 = vadd.f32 %v36, %v204
  %v206 = vpop.f32.mrb[0].mxu0
  %207 = vdwg.mxu0
  %v208 = vmax.f32 %v145, 0.0
  %v209 = vmax.f32 %v150, 0.0
  %v210 = vmax.f32 %v155, 0.0
  %v211 = vmax.f32 %v160, 0.0
  %v212 = vmax.f32 %v165, 0.0
  %v213 = vmax.f32 %v170, 0.0
  %v214 = vmax.f32 %v175, 0.0
  %v215 = vmax.f32 %v180, 0.0
  %v216 = vmax.f32 %v185, 0.0
  %v217 = vmax.f32 %v190, 0.0
  %v218 = vmax.f32 %v195, 0.0
  %v219 = vmax.f32 %v200, 0.0
  %v220 = vmax.f32 %v205, 0.0
  %221 = vst [vmem:[%s3] sm:$0xff] %v208
  %222 = vst [vmem:[%s3 + $0x8] sm:$0xff] %v209
  %223 = vst [vmem:[%s3 + $0x10] sm:$0xff] %v210
  %224 = vst [vmem:[%s3 + $0x18] sm:$0xff] %v211
  %225 = vst [vmem:[%s3 + $0x20] sm:$0xff] %v212
  %226 = vst [vmem:[%s3 + $0x28] sm:$0xff] %v213
  %227 = vst [vmem:[%s3 + $0x30] sm:$0xff] %v214
  %228 = vst [vmem:[%s3 + $0x38] sm:$0xff] %v215
  %229 = vst [vmem:[%s3 + $0x40] sm:$0xff] %v216
  %230 = vst [vmem:[%s3 + $0x48] sm:$0xff] %v217
  %231 = vst [vmem:[%s3 + $0x50] sm:$0xff] %v218
  %232 = vst [vmem:[%s3 + $0x58] sm:$0xff] %v219
  %233 = vst [vmem:[%s3 + $0x60] sm:$0xff] %v220
  // Predicated region
  $region14: #{vae_forward.8} parent=0 // pred_check
    _
  $region15: #{vae_forward.8} parent=0 // pred_check_branch
    %235 = sbr.rel (0) target = $region17
  $region16: #{vae_forward.8} parent=0 // pred_region
    _
  $region17: #{vae_forward.8} parent=0 // pred_fallthru
    _
  // Predicated region
  $region18: #{vae_forward.8} parent=0 // pred_check
    _
  $region19: #{vae_forward.8} parent=0 // pred_check_branch
    %237 = sbr.rel (0) target = $region21
  $region20: #{vae_forward.8} parent=0 // pred_region
    _
  $region21: #{vae_forward.8} parent=0 // pred_fallthru
    _

// kernel: vae_forward.7
$region0: #{vae_forward.7}
  #allocation0 [shape = 'u32[]', space=smem, size = 0x4, offset = 0x4, fixed_abs, tag = 'smem constant byte address 0x4 - core index']
  #allocation1 [shape = 'u32[144,128]{1,0:T(1,128)}', space=vmem, size = 0x12000, scoped, tag = 'internal scratch']
  %s0 = inlined_call_operand.vmem [shape: f32[8,392], index: 0, kind: input, shape index: {}]
  %s1 = inlined_call_operand.vmem [shape: f32[8,128], index: 1, kind: input, shape index: {}]
  %s2 = inlined_call_operand.vmem [shape: f32[392,128], index: 2, kind: input, shape index: {}]
  %s3 = inlined_call_operand.vmem [shape: f32[1,128], index: 3, kind: input, shape index: {}]
  %s4 = inlined_call_operand.vmem [shape: f32[128,256], index: 4, kind: input, shape index: {}]
  %s5 = inlined_call_operand.vmem [shape: f32[1,256], index: 5, kind: input, shape index: {}]
  %s6 = inlined_call_operand.vmem [shape: f32[128,392], index: 6, kind: input, shape index: {}]
  %s7 = inlined_call_operand.vmem [shape: f32[1,392], index: 7, kind: input, shape index: {}]
  %s8 = inlined_call_operand.vmem [shape: f32[8,128], index: 8, kind: output, shape index: {0}]
  %s9 = inlined_call_operand.vmem [shape: f32[8,256], index: 9, kind: output, shape index: {1}]
  %s10 = inlined_call_operand.vmem [shape: f32[8,128], index: 10, kind: output, shape index: {2}]
  %s11 = inlined_call_operand.vmem [shape: f32[8,392], index: 11, kind: output, shape index: {3}]
  %12 = xla_tuple %s8, %s9, %s10, %s11
  %s13 = sld [smem:[#allocation0]]
  $region66: #{vae_forward.7} parent=0
    _
  %s15 = ssub.s32 1, %s13
  %s16 = scalar_select 0, %s15, %s13
  // Predicated region
  $region2: #{vae_forward.7} parent=0 // pred_check
    _
  $region3: #{vae_forward.7} parent=0 // pred_check_branch
    %18 = sbr.rel (0) target = $region5
  $region4: #{vae_forward.7} parent=0 // pred_region
    _
  $region5: #{vae_forward.7} parent=0 // pred_fallthru
    _
  // Predicated region
  $region6: #{vae_forward.7} parent=0 // pred_check
    _
  $region7: #{vae_forward.7} parent=0 // pred_check_branch
    %20 = sbr.rel (0) target = $region9
  $region8: #{vae_forward.7} parent=0 // pred_region
    _
  $region9: #{vae_forward.7} parent=0 // pred_fallthru
    _
  // Predicated region
  $region10: #{vae_forward.7} parent=0 // pred_check
    _
  $region11: #{vae_forward.7} parent=0 // pred_check_branch
    %22 = sbr.rel (0) target = $region13
  $region12: #{vae_forward.7} parent=0 // pred_region
    _
  $region13: #{vae_forward.7} parent=0 // pred_fallthru
    _
  // Predicated region
  $region14: #{vae_forward.7} parent=0 // pred_check
    _
  $region15: #{vae_forward.7} parent=0 // pred_check_branch
    %24 = sbr.rel (0) target = $region17
  $region16: #{vae_forward.7} parent=0 // pred_region
    _
  $region17: #{vae_forward.7} parent=0 // pred_fallthru
    _
  // Predicated region
  $region18: #{vae_forward.7} parent=0 // pred_check
    _
  $region19: #{vae_forward.7} parent=0 // pred_check_branch
    %26 = sbr.rel (0) target = $region21
  $region20: #{vae_forward.7} parent=0 // pred_region
    _
  $region21: #{vae_forward.7} parent=0 // pred_fallthru
    _
  // Predicated region
  $region22: #{vae_forward.7} parent=0 // pred_check
    _
  $region23: #{vae_forward.7} parent=0 // pred_check_branch
    %28 = sbr.rel (0) target = $region25
  $region24: #{vae_forward.7} parent=0 // pred_region
    _
  $region25: #{vae_forward.7} parent=0 // pred_fallthru
    _
  // Predicated region
  $region26: #{vae_forward.7} parent=0 // pred_check
    _
  $region27: #{vae_forward.7} parent=0 // pred_check_branch
    %30 = sbr.rel (0) target = $region29
  $region28: #{vae_forward.7} parent=0 // pred_region
    _
  $region29: #{vae_forward.7} parent=0 // pred_fallthru
    _
  // Predicated region
  $region30: #{vae_forward.7} parent=0 // pred_check
    _
  $region31: #{vae_forward.7} parent=0 // pred_check_branch
    %32 = sbr.rel (0) target = $region33
  $region32: #{vae_forward.7} parent=0 // pred_region
    _
  $region33: #{vae_forward.7} parent=0 // pred_fallthru
    _
  %v33 = vld [vmem:[%s0] sm:$0xff]
  %v34 = vld [vmem:[%s0 + $0x8] sm:$0xff]
  %v35 = vld [vmem:[%s0 + $0x10] sm:$0xff]
  %v36 = vld [vmem:[%s0 + $0x18] sm:$0xff]
  %v37 = vld [vmem:[%s2] sm:$0xff]
  %v38 = vld [vmem:[%s2 + $0x8] sm:$0xff]
  %v39 = vld [vmem:[%s2 + $0x10] sm:$0xff]
  %v40 = vld [vmem:[%s2 + $0x18] sm:$0xff]
  %v41 = vld [vmem:[%s2 + $0x20] sm:$0xff]
  %v42 = vld [vmem:[%s2 + $0x28] sm:$0xff]
  %v43 = vld [vmem:[%s2 + $0x30] sm:$0xff]
  %v44 = vld [vmem:[%s2 + $0x38] sm:$0xff]
  %v45 = vld [vmem:[%s2 + $0x40] sm:$0xff]
  %v46 = vld [vmem:[%s2 + $0x48] sm:$0xff]
  %v47 = vld [vmem:[%s2 + $0x50] sm:$0xff]
  %v48 = vld [vmem:[%s2 + $0x58] sm:$0xff]
  %v49 = vld [vmem:[%s2 + $0x60] sm:$0xff]
  %v50 = vld [vmem:[%s2 + $0x68] sm:$0xff]
  %v51 = vld [vmem:[%s2 + $0x70] sm:$0xff]
  %v52 = vld [vmem:[%s2 + $0x78] sm:$0xff]
  %v53 = vld [vmem:[%s2 + $0x80] sm:$0xff]
  %v54 = vld [vmem:[%s2 + $0x88] sm:$0xff]
  %v55 = vld [vmem:[%s2 + $0x90] sm:$0xff]
  %v56 = vld [vmem:[%s2 + $0x98] sm:$0xff]
  %v57 = vld [vmem:[%s2 + $0xa0] sm:$0xff]
  %v58 = vld [vmem:[%s2 + $0xa8] sm:$0xff]
  %v59 = vld [vmem:[%s2 + $0xb0] sm:$0xff]
  %v60 = vld [vmem:[%s2 + $0xb8] sm:$0xff]
  %v61 = vld [vmem:[%s2 + $0xc0] sm:$0xff]
  %v62 = vld [vmem:[%s2 + $0xc8] sm:$0xff]
  %v63 = vld [vmem:[%s2 + $0xd0] sm:$0xff]
  %v64 = vld [vmem:[%s2 + $0xd8] sm:$0xff]
  %v65 = vld [vmem:[%s2 + $0xe0] sm:$0xff]
  %v66 = vld [vmem:[%s2 + $0xe8] sm:$0xff]
  %v67 = vld [vmem:[%s2 + $0xf0] sm:$0xff]
  %v68 = vld [vmem:[%s2 + $0xf8] sm:$0xff]
  %v69 = vld [vmem:[%s2 + $0x100] sm:$0xff]
  %v70 = vld [vmem:[%s2 + $0x108] sm:$0xff]
  %v71 = vld [vmem:[%s2 + $0x110] sm:$0xff]
  %v72 = vld [vmem:[%s2 + $0x118] sm:$0xff]
  %v73 = vld [vmem:[%s2 + $0x120] sm:$0xff]
  %v74 = vld [vmem:[%s2 + $0x128] sm:$0xff]
  %v75 = vld [vmem:[%s2 + $0x130] sm:$0xff]
  %v76 = vld [vmem:[%s2 + $0x138] sm:$0xff]
  %v77 = vld [vmem:[%s2 + $0x140] sm:$0xff]
  %v78 = vld [vmem:[%s2 + $0x148] sm:$0xff]
  %v79 = vld [vmem:[%s2 + $0x150] sm:$0xff]
  %v80 = vld [vmem:[%s2 + $0x158] sm:$0xff]
  %v81 = vld [vmem:[%s2 + $0x160] sm:$0xff]
  %v82 = vld [vmem:[%s2 + $0x168] sm:$0xff]
  %v83 = vld [vmem:[%s2 + $0x170] sm:$0xff]
  %v84 = vld [vmem:[%s2 + $0x178] sm:$0xff]
  %v85 = vld [vmem:[%s2 + $0x180] sm:$0xff]
  %v86 = vld [vmem:[%s3] sm:$0x1]
  %v88 = vlaneseq
  %v89 = vshrl.u32 %v88, 7
  %v90 = vsub.s32 0, %v89
  %v91 = vrot.slane %v86, %v90
  %vm93 = vcmask 64512
  %v95 = vsel %vm93, %v36, 0
  %97 = vmatprep.subr.mxu0 0.0
  %98 = vmatpush1.msra.mxu0 %v37
  %99 = vmatprep.subr.mxu0 0.0
  %100 = vmatpush1.msra.mxu0 %v38
  %101 = vmatprep.subr.mxu0 0.0
  %102 = vmatpush1.msra.mxu0 %v39
  %103 = vmatprep.subr.mxu0 0.0
  %104 = vmatpush1.msra.mxu0 %v40
  %105 = vmatprep.subr.mxu0 0.0
  %106 = vmatpush1.msra.mxu0 %v41
  %107 = vmatprep.subr.mxu0 0.0
  %108 = vmatpush1.msra.mxu0 %v42
  %109 = vmatprep.subr.mxu0 0.0
  %110 = vmatpush1.msra.mxu0 %v43
  %111 = vmatprep.subr.mxu0 0.0
  %112 = vmatpush1.msra.mxu0 %v44
  %113 = vmatprep.subr.mxu0 0.0
  %114 = vmatpush1.msra.mxu0 %v45
  %115 = vmatprep.subr.mxu0 0.0
  %116 = vmatpush1.msra.mxu0 %v46
  %117 = vmatprep.subr.mxu0 0.0
  %118 = vmatpush1.msra.mxu0 %v47
  %119 = vmatprep.subr.mxu0 0.0
  %120 = vmatpush1.msra.mxu0 %v48
  %121 = vmatprep.subr.mxu0 0.0
  %122 = vmatpush1.msra.mxu0 %v49
  %123 = vmatprep.subr.mxu0 0.0
  %124 = vmatpush1.msra.mxu0 %v50
  %125 = vmatprep.subr.mxu0 0.0
  %126 = vmatpush1.msra.mxu0 %v51
  %127 = vmatprep.subr.mxu0 0.0
  %128 = vmatpush1.msra.mxu0 %v52
  %129 = vmatprep.subr.mxu0 0.0
  %130 = vmatpush1.msra.mxu0 %v53
  %131 = vmatprep.subr.mxu0 0.0
  %132 = vmatpush1.msra.mxu0 %v54
  %133 = vmatprep.subr.mxu0 0.0
  %134 = vmatpush1.msra.mxu0 %v55
  %135 = vmatprep.subr.mxu0 0.0
  %136 = vmatpush1.msra.mxu0 %v56
  %137 = vmatprep.subr.mxu0 0.0
  %138 = vmatpush1.msra.mxu0 %v57
  %139 = vmatprep.subr.mxu0 0.0
  %140 = vmatpush1.msra.mxu0 %v58
  %141 = vmatprep.subr.mxu0 0.0
  %142 = vmatpush1.msra.mxu0 %v59
  %143 = vmatprep.subr.mxu0 0.0
  %144 = vmatpush1.msra.mxu0 %v60
  %145 = vmatprep.subr.mxu0 0.0
  %146 = vmatpush1.msra.mxu0 %v61
  %147 = vmatprep.subr.mxu0 0.0
  %148 = vmatpush1.msra.mxu0 %v62
  %149 = vmatprep.subr.mxu0 0.0
  %150 = vmatpush1.msra.mxu0 %v63
  %151 = vmatprep.subr.mxu0 0.0
  %152 = vmatpush1.msra.mxu0 %v64
  %153 = vmatprep.subr.mxu0 0.0
  %154 = vmatpush1.msra.mxu0 %v65
  %155 = vmatprep.subr.mxu0 0.0
  %156 = vmatpush1.msra.mxu0 %v66
  %157 = vmatprep.subr.mxu0 0.0
  %158 = vmatpush1.msra.mxu0 %v67
  %159 = vmatprep.subr.mxu0 0.0
  %160 = vmatpush1.msra.mxu0 %v68
  %161 = vmatprep.mubr.f32.mxu0 %v34
  %162 = vmatmul.mubr.f32.gmra.mrb[0].mxu0 %v33
  %v163 = vpop.f32.mrb[0].mxu0
  %v164 = vadd.f32 %v91, %v163
  %v165 = vpop.f32.mrb[0].mxu0
  %166 = vdwg.mxu0
  %167 = vmatprep.subr.mxu0 0.0
  %168 = vmatpush1.msra.mxu0 %v69
  %169 = vmatprep.subr.mxu0 0.0
  %170 = vmatpush1.msra.mxu0 %v70
  %171 = vmatprep.subr.mxu0 0.0
  %172 = vmatpush1.msra.mxu0 %v71
  %173 = vmatprep.subr.mxu0 0.0
  %174 = vmatpush1.msra.mxu0 %v72
  %175 = vmatprep.subr.mxu0 0.0
  %176 = vmatpush1.msra.mxu0 %v73
  %177 = vmatprep.subr.mxu0 0.0
  %178 = vmatpush1.msra.mxu0 %v74
  %179 = vmatprep.subr.mxu0 0.0
  %180 = vmatpush1.msra.mxu0 %v75
  %181 = vmatprep.subr.mxu0 0.0
  %182 = vmatpush1.msra.mxu0 %v76
  %183 = vmatprep.subr.mxu0 0.0
  %184 = vmatpush1.msra.mxu0 %v77
  %185 = vmatprep.subr.mxu0 0.0
  %186 = vmatpush1.msra.mxu0 %v78
  %187 = vmatprep.subr.mxu0 0.0
  %188 = vmatpush1.msra.mxu0 %v79
  %189 = vmatprep.subr.mxu0 0.0
  %190 = vmatpush1.msra.mxu0 %v80
  %191 = vmatprep.subr.mxu0 0.0
  %192 = vmatpush1.msra.mxu0 %v81
  %193 = vmatprep.subr.mxu0 0.0
  %194 = vmatpush1.msra.mxu0 %v82
  %195 = vmatprep.subr.mxu0 0.0
  %196 = vmatpush1.msra.mxu0 %v83
  %197 = vmatprep.subr.mxu0 0.0
  %198 = vmatpush1.msra.mxu0 %v84
  %199 = vmatprep.subr.mxu0 0.0
  %200 = vmatpush1.msra.mxu0 %v85
  %201 = vmatprep.subr.mxu0 0.0
  %202 = vmatpush1.msra.mxu0 0.0
  %203 = vmatprep.subr.mxu0 0.0
  %204 = vmatpush1.msra.mxu0 0.0
  %205 = vmatprep.subr.mxu0 0.0
  %206 = vmatpush1.msra.mxu0 0.0
  %207 = vmatprep.subr.mxu0 0.0
  %208 = vmatpush1.msra.mxu0 0.0
  %209 = vmatprep.subr.mxu0 0.0
  %210 = vmatpush1.msra.mxu0 0.0
  %211 = vmatprep.subr.mxu0 0.0
  %212 = vmatpush1.msra.mxu0 0.0
  %213 = vmatprep.subr.mxu0 0.0
  %214 = vmatpush1.msra.mxu0 0.0
  %215 = vmatprep.subr.mxu0 0.0
  %216 = vmatpush1.msra.mxu0 0.0
  %217 = vmatprep.subr.mxu0 0.0
  %218 = vmatpush1.msra.mxu0 0.0
  %219 = vmatprep.subr.mxu0 0.0
  %220 = vmatpush1.msra.mxu0 0.0
  %221 = vmatprep.subr.mxu0 0.0
  %222 = vmatpush1.msra.mxu0 0.0
  %223 = vmatprep.subr.mxu0 0.0
  %224 = vmatpush1.msra.mxu0 0.0
  %225 = vmatprep.subr.mxu0 0.0
  %226 = vmatpush1.msra.mxu0 0.0
  %227 = vmatprep.subr.mxu0 0.0
  %228 = vmatpush1.msra.mxu0 0.0
  %229 = vmatprep.subr.mxu0 0.0
  %230 = vmatpush1.msra.mxu0 0.0
  %231 = vmatprep.mubr.f32.mxu0 %v95
  %232 = vmatmul.mubr.f32.gmra.mrb[0].mxu0 %v35
  %v233 = vpop.f32.mrb[0].mxu0
  %v234 = vadd.f32 %v164, %v233
  %v235 = vpop.f32.mrb[0].mxu0
  %236 = vdwg.mxu0
  %237 = vst [vmem:[%s8] sm:$0xff] %v234
  %v238 = vld [vmem:[%s4] sm:$0xff]
  %v239 = vld [vmem:[%s4 + $0x8] sm:$0xff]
  %v240 = vld [vmem:[%s4 + $0x10] sm:$0xff]
  %v241 = vld [vmem:[%s4 + $0x18] sm:$0xff]
  %v242 = vld [vmem:[%s4 + $0x20] sm:$0xff]
  %v243 = vld [vmem:[%s4 + $0x28] sm:$0xff]
  %v244 = vld [vmem:[%s4 + $0x30] sm:$0xff]
  %v245 = vld [vmem:[%s4 + $0x38] sm:$0xff]
  %v246 = vld [vmem:[%s4 + $0x40] sm:$0xff]
  %v247 = vld [vmem:[%s4 + $0x48] sm:$0xff]
  %v248 = vld [vmem:[%s4 + $0x50] sm:$0xff]
  %v249 = vld [vmem:[%s4 + $0x58] sm:$0xff]
  %v250 = vld [vmem:[%s4 + $0x60] sm:$0xff]
  %v251 = vld [vmem:[%s4 + $0x68] sm:$0xff]
  %v252 = vld [vmem:[%s4 + $0x70] sm:$0xff]
  %v253 = vld [vmem:[%s4 + $0x78] sm:$0xff]
  %v254 = vld [vmem:[%s4 + $0x80] sm:$0xff]
  %v255 = vld [vmem:[%s4 + $0x88] sm:$0xff]
  %v256 = vld [vmem:[%s4 + $0x90] sm:$0xff]
  %v257 = vld [vmem:[%s4 + $0x98] sm:$0xff]
  %v258 = vld [vmem:[%s4 + $0xa0] sm:$0xff]
  %v259 = vld [vmem:[%s4 + $0xa8] sm:$0xff]
  %v260 = vld [vmem:[%s4 + $0xb0] sm:$0xff]
  %v261 = vld [vmem:[%s4 + $0xb8] sm:$0xff]
  %v262 = vld [vmem:[%s4 + $0xc0] sm:$0xff]
  %v263 = vld [vmem:[%s4 + $0xc8] sm:$0xff]
  %v264 = vld [vmem:[%s4 + $0xd0] sm:$0xff]
  %v265 = vld [vmem:[%s4 + $0xd8] sm:$0xff]
  %v266 = vld [vmem:[%s4 + $0xe0] sm:$0xff]
  %v267 = vld [vmem:[%s4 + $0xe8] sm:$0xff]
  %v268 = vld [vmem:[%s4 + $0xf0] sm:$0xff]
  %v269 = vld [vmem:[%s4 + $0xf8] sm:$0xff]
  %v270 = vld [vmem:[%s5] sm:$0x3]
  %v272 = vlaneseq
  %v273 = vshrl.u32 %v272, 7
  %v274 = vsub.s32 0, %v273
  %v275 = vrot.slane %v270, %v274
  %v276 = vlaneseq
  %v277 = vshrl.u32 %v276, 7
  %v278 = vsub.s32 1, %v277
  %v279 = vrot.slane %v270, %v278
  %282 = vmatprep.subr.mxu0 %v239
  %283 = vmatpush1.msra.mxu0 %v238
  %284 = vmatprep.subr.mxu0 %v241
  %285 = vmatpush1.msra.mxu0 %v240
  %286 = vmatprep.subr.mxu0 %v243
  %287 = vmatpush1.msra.mxu0 %v242
  %288 = vmatprep.subr.mxu0 %v245
  %289 = vmatpush1.msra.mxu0 %v244
  %290 = vmatprep.subr.mxu0 %v247
  %291 = vmatpush1.msra.mxu0 %v246
  %292 = vmatprep.subr.mxu0 %v249
  %293 = vmatpush1.msra.mxu0 %v248
  %294 = vmatprep.subr.mxu0 %v251
  %295 = vmatpush1.msra.mxu0 %v250
  %296 = vmatprep.subr.mxu0 %v253
  %297 = vmatpush1.msra.mxu0 %v252
  %298 = vmatprep.subr.mxu0 %v255
  %299 = vmatpush1.msra.mxu0 %v254
  %300 = vmatprep.subr.mxu0 %v257
  %301 = vmatpush1.msra.mxu0 %v256
  %302 = vmatprep.subr.mxu0 %v259
  %303 = vmatpush1.msra.mxu0 %v258
  %304 = vmatprep.subr.mxu0 %v261
  %305 = vmatpush1.msra.mxu0 %v260
  %306 = vmatprep.subr.mxu0 %v263
  %307 = vmatpush1.msra.mxu0 %v262
  %308 = vmatprep.subr.mxu0 %v265
  %309 = vmatpush1.msra.mxu0 %v264
  %310 = vmatprep.subr.mxu0 %v267
  %311 = vmatpush1.msra.mxu0 %v266
  %312 = vmatprep.subr.mxu0 %v269
  %313 = vmatpush1.msra.mxu0 %v268
  %314 = vmatprep.subr.mxu0 0.0
  %315 = vmatpush1.msra.mxu0 0.0
  %316 = vmatprep.subr.mxu0 0.0
  %317 = vmatpush1.msra.mxu0 0.0
  %318 = vmatprep.subr.mxu0 0.0
  %319 = vmatpush1.msra.mxu0 0.0
  %320 = vmatprep.subr.mxu0 0.0
  %321 = vmatpush1.msra.mxu0 0.0
  %322 = vmatprep.subr.mxu0 0.0
  %323 = vmatpush1.msra.mxu0 0.0
  %324 = vmatprep.subr.mxu0 0.0
  %325 = vmatpush1.msra.mxu0 0.0
  %326 = vmatprep.subr.mxu0 0.0
  %327 = vmatpush1.msra.mxu0 0.0
  %328 = vmatprep.subr.mxu0 0.0
  %329 = vmatpush1.msra.mxu0 0.0
  %330 = vmatprep.subr.mxu0 0.0
  %331 = vmatpush1.msra.mxu0 0.0
  %332 = vmatprep.subr.mxu0 0.0
  %333 = vmatpush1.msra.mxu0 0.0
  %334 = vmatprep.subr.mxu0 0.0
  %335 = vmatpush1.msra.mxu0 0.0
  %336 = vmatprep.subr.mxu0 0.0
  %337 = vmatpush1.msra.mxu0 0.0
  %338 = vmatprep.subr.mxu0 0.0
  %339 = vmatpush1.msra.mxu0 0.0
  %340 = vmatprep.subr.mxu0 0.0
  %341 = vmatpush1.msra.mxu0 0.0
  %342 = vmatprep.subr.mxu0 0.0
  %343 = vmatpush1.msra.mxu0 0.0
  %344 = vmatprep.subr.mxu0 0.0
  %345 = vmatpush1.msra.mxu0 0.0
  %346 = vmatprep.mubr.f32.mxu0 0.0
  %347 = vmatmul.mubr.f32.gmra.mrb[0].mxu0 %v234
  %v348 = vpop.f32.mrb[0].mxu0
  %v349 = vadd.f32 %v275, %v348
  %v350 = vpop.f32.mrb[0].mxu0
  %v351 = vadd.f32 %v279, %v350
  %352 = vdwg.mxu0
  %353 = vst [vmem:[%s9] sm:$0xff] %v349
  %354 = vst [vmem:[%s9 + $0x8] sm:$0xff] %v351
  %v355 = vmul.f32 %v351, 0.5
  %v356 = vmul.f32 %v355, 1.442695
  %v357 = vpow.pop %v356
  %v358 = vld [vmem:[%s1] sm:$0xff]
  %v359 = vmul.f32 %v357, %v358
  %v360 = vadd.f32 %v349, %v359
  %361 = vst [vmem:[%s10] sm:$0xff] %v360
  %v362 = vld [vmem:[%s6] sm:$0xff]
  %v363 = vld [vmem:[%s6 + $0x8] sm:$0xff]
  %v364 = vld [vmem:[%s6 + $0x10] sm:$0xff]
  %v365 = vld [vmem:[%s6 + $0x18] sm:$0xff]
  %v366 = vld [vmem:[%s6 + $0x20] sm:$0xff]
  %v367 = vld [vmem:[%s6 + $0x28] sm:$0xff]
  %v368 = vld [vmem:[%s6 + $0x30] sm:$0xff]
  %v369 = vld [vmem:[%s6 + $0x38] sm:$0xff]
  %v370 = vld [vmem:[%s6 + $0x40] sm:$0xff]
  %v371 = vld [vmem:[%s6 + $0x48] sm:$0xff]
  %v372 = vld [vmem:[%s6 + $0x50] sm:$0xff]
  %v373 = vld [vmem:[%s6 + $0x58] sm:$0xff]
  %v374 = vld [vmem:[%s6 + $0x60] sm:$0xff]
  %v375 = vld [vmem:[%s6 + $0x68] sm:$0xff]
  %v376 = vld [vmem:[%s6 + $0x70] sm:$0xff]
  %v377 = vld [vmem:[%s6 + $0x78] sm:$0xff]
  %v378 = vld [vmem:[%s6 + $0x80] sm:$0xff]
  %v379 = vld [vmem:[%s6 + $0x88] sm:$0xff]
  %v380 = vld [vmem:[%s6 + $0x90] sm:$0xff]
  %v381 = vld [vmem:[%s6 + $0x98] sm:$0xff]
  %v382 = vld [vmem:[%s6 + $0xa0] sm:$0xff]
  %v383 = vld [vmem:[%s6 + $0xa8] sm:$0xff]
  %v384 = vld [vmem:[%s6 + $0xb0] sm:$0xff]
  %v385 = vld [vmem:[%s6 + $0xb8] sm:$0xff]
  %v386 = vld [vmem:[%s6 + $0xc0] sm:$0xff]
  %v387 = vld [vmem:[%s6 + $0xc8] sm:$0xff]
  %v388 = vld [vmem:[%s6 + $0xd0] sm:$0xff]
  %v389 = vld [vmem:[%s6 + $0xd8] sm:$0xff]
  %v390 = vld [vmem:[%s6 + $0xe0] sm:$0xff]
  %v391 = vld [vmem:[%s6 + $0xe8] sm:$0xff]
  %v392 = vld [vmem:[%s6 + $0xf0] sm:$0xff]
  %v393 = vld [vmem:[%s6 + $0xf8] sm:$0xff]
  %v394 = vld [vmem:[%s6 + $0x100] sm:$0xff]
  %v395 = vld [vmem:[%s6 + $0x108] sm:$0xff]
  %v396 = vld [vmem:[%s6 + $0x110] sm:$0xff]
  %v397 = vld [vmem:[%s6 + $0x118] sm:$0xff]
  %v398 = vld [vmem:[%s6 + $0x120] sm:$0xff]
  %v399 = vld [vmem:[%s6 + $0x128] sm:$0xff]
  %v400 = vld [vmem:[%s6 + $0x130] sm:$0xff]
  %v401 = vld [vmem:[%s6 + $0x138] sm:$0xff]
  %v402 = vld [vmem:[%s6 + $0x140] sm:$0xff]
  %v403 = vld [vmem:[%s6 + $0x148] sm:$0xff]
  %v404 = vld [vmem:[%s6 + $0x150] sm:$0xff]
  %v405 = vld [vmem:[%s6 + $0x158] sm:$0xff]
  %v406 = vld [vmem:[%s6 + $0x160] sm:$0xff]
  %v407 = vld [vmem:[%s6 + $0x168] sm:$0xff]
  %v408 = vld [vmem:[%s6 + $0x170] sm:$0xff]
  %v409 = vld [vmem:[%s6 + $0x178] sm:$0xff]
  %v410 = vld [vmem:[%s6 + $0x180] sm:$0xff]
  %v411 = vld [vmem:[%s6 + $0x188] sm:$0xff]
  %v412 = vld [vmem:[%s6 + $0x190] sm:$0xff]
  %v413 = vld [vmem:[%s6 + $0x198] sm:$0xff]
  %v414 = vld [vmem:[%s6 + $0x1a0] sm:$0xff]
  %v415 = vld [vmem:[%s6 + $0x1a8] sm:$0xff]
  %v416 = vld [vmem:[%s6 + $0x1b0] sm:$0xff]
  %v417 = vld [vmem:[%s6 + $0x1b8] sm:$0xff]
  %v418 = vld [vmem:[%s6 + $0x1c0] sm:$0xff]
  %v419 = vld [vmem:[%s6 + $0x1c8] sm:$0xff]
  %v420 = vld [vmem:[%s6 + $0x1d0] sm:$0xff]
  %v421 = vld [vmem:[%s6 + $0x1d8] sm:$0xff]
  %v422 = vld [vmem:[%s6 + $0x1e0] sm:$0xff]
  %v423 = vld [vmem:[%s6 + $0x1e8] sm:$0xff]
  %v424 = vld [vmem:[%s6 + $0x1f0] sm:$0xff]
  %v425 = vld [vmem:[%s6 + $0x1f8] sm:$0xff]
  %v426 = vld [vmem:[%s7] sm:$0xf]
  %v428 = vlaneseq
  %v429 = vshrl.u32 %v428, 7
  %v430 = vsub.s32 0, %v429
  %v431 = vrot.slane %v426, %v430
  %v432 = vlaneseq
  %v433 = vshrl.u32 %v432, 7
  %v434 = vsub.s32 1, %v433
  %v435 = vrot.slane %v426, %v434
  %v436 = vlaneseq
  %v437 = vshrl.u32 %v436, 7
  %v438 = vsub.s32 2, %v437
  %v439 = vrot.slane %v426, %v438
  %v440 = vlaneseq
  %v441 = vshrl.u32 %v440, 7
  %v442 = vsub.s32 3, %v441
  %v443 = vrot.slane %v426, %v442
  %448 = vmatprep.subr.mxu0 %v363
  %449 = vmatpush1.msra.mxu0 %v362
  %450 = vmatprep.subr.mxu0 %v367
  %451 = vmatpush1.msra.mxu0 %v366
  %452 = vmatprep.subr.mxu0 %v371
  %453 = vmatpush1.msra.mxu0 %v370
  %454 = vmatprep.subr.mxu0 %v375
  %455 = vmatpush1.msra.mxu0 %v374
  %456 = vmatprep.subr.mxu0 %v379
  %457 = vmatpush1.msra.mxu0 %v378
  %458 = vmatprep.subr.mxu0 %v383
  %459 = vmatpush1.msra.mxu0 %v382
  %460 = vmatprep.subr.mxu0 %v387
  %461 = vmatpush1.msra.mxu0 %v386
  %462 = vmatprep.subr.mxu0 %v391
  %463 = vmatpush1.msra.mxu0 %v390
  %464 = vmatprep.subr.mxu0 %v395
  %465 = vmatpush1.msra.mxu0 %v394
  %466 = vmatprep.subr.mxu0 %v399
  %467 = vmatpush1.msra.mxu0 %v398
  %468 = vmatprep.subr.mxu0 %v403
  %469 = vmatpush1.msra.mxu0 %v402
  %470 = vmatprep.subr.mxu0 %v407
  %471 = vmatpush1.msra.mxu0 %v406
  %472 = vmatprep.subr.mxu0 %v411
  %473 = vmatpush1.msra.mxu0 %v410
  %474 = vmatprep.subr.mxu0 %v415
  %475 = vmatpush1.msra.mxu0 %v414
  %476 = vmatprep.subr.mxu0 %v419
  %477 = vmatpush1.msra.mxu0 %v418
  %478 = vmatprep.subr.mxu0 %v423
  %479 = vmatpush1.msra.mxu0 %v422
  %480 = vmatprep.subr.mxu0 0.0
  %481 = vmatpush1.msra.mxu0 0.0
  %482 = vmatprep.subr.mxu0 0.0
  %483 = vmatpush1.msra.mxu0 0.0
  %484 = vmatprep.subr.mxu0 0.0
  %485 = vmatpush1.msra.mxu0 0.0
  %486 = vmatprep.subr.mxu0 0.0
  %487 = vmatpush1.msra.mxu0 0.0
  %488 = vmatprep.subr.mxu0 0.0
  %489 = vmatpush1.msra.mxu0 0.0
  %490 = vmatprep.subr.mxu0 0.0
  %491 = vmatpush1.msra.mxu0 0.0
  %492 = vmatprep.subr.mxu0 0.0
  %493 = vmatpush1.msra.mxu0 0.0
  %494 = vmatprep.subr.mxu0 0.0
  %495 = vmatpush1.msra.mxu0 0.0
  %496 = vmatprep.subr.mxu0 0.0
  %497 = vmatpush1.msra.mxu0 0.0
  %498 = vmatprep.subr.mxu0 0.0
  %499 = vmatpush1.msra.mxu0 0.0
  %500 = vmatprep.subr.mxu0 0.0
  %501 = vmatpush1.msra.mxu0 0.0
  %502 = vmatprep.subr.mxu0 0.0
  %503 = vmatpush1.msra.mxu0 0.0
  %504 = vmatprep.subr.mxu0 0.0
  %505 = vmatpush1.msra.mxu0 0.0
  %506 = vmatprep.subr.mxu0 0.0
  %507 = vmatpush1.msra.mxu0 0.0
  %508 = vmatprep.subr.mxu0 0.0
  %509 = vmatpush1.msra.mxu0 0.0
  %510 = vmatprep.subr.mxu0 0.0
  %511 = vmatpush1.msra.mxu0 0.0
  %512 = vmatprep.mubr.f32.mxu0 0.0
  %513 = vmatmul.mubr.f32.gmra.mrb[0].mxu0 %v360
  %v514 = vpop.f32.mrb[0].mxu0
  %v515 = vadd.f32 %v431, %v514
  %v516 = vpop.f32.mrb[0].mxu0
  %v517 = vadd.f32 %v435, %v516
  %518 = vdwg.mxu0
  %519 = vmatprep.subr.mxu0 %v365
  %520 = vmatpush1.msra.mxu0 %v364
  %521 = vmatprep.subr.mxu0 %v369
  %522 = vmatpush1.msra.mxu0 %v368
  %523 = vmatprep.subr.mxu0 %v373
  %524 = vmatpush1.msra.mxu0 %v372
  %525 = vmatprep.subr.mxu0 %v377
  %526 = vmatpush1.msra.mxu0 %v376
  %527 = vmatprep.subr.mxu0 %v381
  %528 = vmatpush1.msra.mxu0 %v380
  %529 = vmatprep.subr.mxu0 %v385
  %530 = vmatpush1.msra.mxu0 %v384
  %531 = vmatprep.subr.mxu0 %v389
  %532 = vmatpush1.msra.mxu0 %v388
  %533 = vmatprep.subr.mxu0 %v393
  %534 = vmatpush1.msra.mxu0 %v392
  %535 = vmatprep.subr.mxu0 %v397
  %536 = vmatpush1.msra.mxu0 %v396
  %537 = vmatprep.subr.mxu0 %v401
  %538 = vmatpush1.msra.mxu0 %v400
  %539 = vmatprep.subr.mxu0 %v405
  %540 = vmatpush1.msra.mxu0 %v404
  %541 = vmatprep.subr.mxu0 %v409
  %542 = vmatpush1.msra.mxu0 %v408
  %543 = vmatprep.subr.mxu0 %v413
  %544 = vmatpush1.msra.mxu0 %v412
  %545 = vmatprep.subr.mxu0 %v417
  %546 = vmatpush1.msra.mxu0 %v416
  %547 = vmatprep.subr.mxu0 %v421
  %548 = vmatpush1.msra.mxu0 %v420
  %549 = vmatprep.subr.mxu0 %v425
  %550 = vmatpush1.msra.mxu0 %v424
  %551 = vmatprep.subr.mxu0 0.0
  %552 = vmatpush1.msra.mxu0 0.0
  %553 = vmatprep.subr.mxu0 0.0
  %554 = vmatpush1.msra.mxu0 0.0
  %555 = vmatprep.subr.mxu0 0.0
  %556 = vmatpush1.msra.mxu0 0.0
  %557 = vmatprep.subr.mxu0 0.0
  %558 = vmatpush1.msra.mxu0 0.0
  %559 = vmatprep.subr.mxu0 0.0
  %560 = vmatpush1.msra.mxu0 0.0
  %561 = vmatprep.subr.mxu0 0.0
  %562 = vmatpush1.msra.mxu0 0.0
  %563 = vmatprep.subr.mxu0 0.0
  %564 = vmatpush1.msra.mxu0 0.0
  %565 = vmatprep.subr.mxu0 0.0
  %566 = vmatpush1.msra.mxu0 0.0
  %567 = vmatprep.subr.mxu0 0.0
  %568 = vmatpush1.msra.mxu0 0.0
  %569 = vmatprep.subr.mxu0 0.0
  %570 = vmatpush1.msra.mxu0 0.0
  %571 = vmatprep.subr.mxu0 0.0
  %572 = vmatpush1.msra.mxu0 0.0
  %573 = vmatprep.subr.mxu0 0.0
  %574 = vmatpush1.msra.mxu0 0.0
  %575 = vmatprep.subr.mxu0 0.0
  %576 = vmatpush1.msra.mxu0 0.0
  %577 = vmatprep.subr.mxu0 0.0
  %578 = vmatpush1.msra.mxu0 0.0
  %579 = vmatprep.subr.mxu0 0.0
  %580 = vmatpush1.msra.mxu0 0.0
  %581 = vmatprep.subr.mxu0 0.0
  %582 = vmatpush1.msra.mxu0 0.0
  %583 = vmatprep.mubr.f32.mxu0 0.0
  %584 = vmatmul.mubr.f32.gmra.mrb[0].mxu0 %v360
  %v585 = vpop.f32.mrb[0].mxu0
  %v586 = vadd.f32 %v439, %v585
  %v587 = vpop.f32.mrb[0].mxu0
  %v588 = vadd.f32 %v443, %v587
  %589 = vdwg.mxu0
  %v590 = vmax.f32 %v515, 0.0
  %v591 = vmax.f32 %v517, 0.0
  %v592 = vmax.f32 %v586, 0.0
  %v593 = vmax.f32 %v588, 0.0
  %594 = vst [vmem:[%s11] sm:$0xff] %v590
  %595 = vst [vmem:[%s11 + $0x8] sm:$0xff] %v591
  %596 = vst [vmem:[%s11 + $0x10] sm:$0xff] %v592
  %597 = vst.msk [vmem:[%s11 + $0x18] sm:$0xff] %vm93, %v593
  // Predicated region
  $region34: #{vae_forward.7} parent=0 // pred_check
    _
  $region35: #{vae_forward.7} parent=0 // pred_check_branch
    %599 = sbr.rel (0) target = $region37
  $region36: #{vae_forward.7} parent=0 // pred_region
    _
  $region37: #{vae_forward.7} parent=0 // pred_fallthru
    _
  // Predicated region
  $region38: #{vae_forward.7} parent=0 // pred_check
    _
  $region39: #{vae_forward.7} parent=0 // pred_check_branch
    %601 = sbr.rel (0) target = $region41
  $region40: #{vae_forward.7} parent=0 // pred_region
    _
  $region41: #{vae_forward.7} parent=0 // pred_fallthru
    _
  // Predicated region
  $region42: #{vae_forward.7} parent=0 // pred_check
    _
  $region43: #{vae_forward.7} parent=0 // pred_check_branch
    %603 = sbr.rel (0) target = $region45
  $region44: #{vae_forward.7} parent=0 // pred_region
    _
  $region45: #{vae_forward.7} parent=0 // pred_fallthru
    _
  // Predicated region
  $region46: #{vae_forward.7} parent=0 // pred_check
    _
  $region47: #{vae_forward.7} parent=0 // pred_check_branch
    %605 = sbr.rel (0) target = $region49
  $region48: #{vae_forward.7} parent=0 // pred_region
    _
  $region49: #{vae_forward.7} parent=0 // pred_fallthru
    _
  // Predicated region
  $region50: #{vae_forward.7} parent=0 // pred_check
    _
  $region51: #{vae_forward.7} parent=0 // pred_check_branch
    %607 = sbr.rel (0) target = $region53
  $region52: #{vae_forward.7} parent=0 // pred_region
    _
  $region53: #{vae_forward.7} parent=0 // pred_fallthru
    _
  // Predicated region
  $region54: #{vae_forward.7} parent=0 // pred_check
    _
  $region55: #{vae_forward.7} parent=0 // pred_check_branch
    %609 = sbr.rel (0) target = $region57
  $region56: #{vae_forward.7} parent=0 // pred_region
    _
  $region57: #{vae_forward.7} parent=0 // pred_fallthru
    _
  // Predicated region
  $region58: #{vae_forward.7} parent=0 // pred_check
    _
  $region59: #{vae_forward.7} parent=0 // pred_check_branch
    %611 = sbr.rel (0) target = $region61
  $region60: #{vae_forward.7} parent=0 // pred_region
    _
  $region61: #{vae_forward.7} parent=0 // pred_fallthru
    _
  // Predicated region
  $region62: #{vae_forward.7} parent=0 // pred_check
    _
  $region63: #{vae_forward.7} parent=0 // pred_check_branch
    %613 = sbr.rel (0) target = $region65
  $region64: #{vae_forward.7} parent=0 // pred_region
    _
  $region65: #{vae_forward.7} parent=0 // pred_fallthru
    _

// kernel: vae_forward.9
$region0: #{vae_forward.9}
  #allocation0 [shape = 'u32[]', space=smem, size = 0x4, offset = 0x4, fixed_abs, tag = 'smem constant byte address 0x4 - core index']
  #allocation1 [shape = 'u32[144,128]{1,0:T(1,128)}', space=vmem, size = 0x12000, scoped, tag = 'internal scratch']
  %s0 = inlined_call_operand.vmem [shape: f32[392,64], index: 0, kind: input, shape index: {}]
  %s1 = inlined_call_operand.vmem [shape: f32[64,128], index: 1, kind: input, shape index: {}]
  %s2 = inlined_call_operand.vmem [shape: f32[1,128], index: 2, kind: input, shape index: {}]
  %s3 = inlined_call_operand.vmem [shape: f32[392,128], index: 3, kind: output, shape index: {}]
  %s4 = sld [smem:[#allocation0]]
  $region22: #{vae_forward.9} parent=0
    _
  %s6 = ssub.s32 1, %s4
  %s7 = scalar_select 0, %s6, %s4
  // Predicated region
  $region2: #{vae_forward.9} parent=0 // pred_check
    _
  $region3: #{vae_forward.9} parent=0 // pred_check_branch
    %9 = sbr.rel (0) target = $region5
  $region4: #{vae_forward.9} parent=0 // pred_region
    _
  $region5: #{vae_forward.9} parent=0 // pred_fallthru
    _
  // Predicated region
  $region6: #{vae_forward.9} parent=0 // pred_check
    _
  $region7: #{vae_forward.9} parent=0 // pred_check_branch
    %11 = sbr.rel (0) target = $region9
  $region8: #{vae_forward.9} parent=0 // pred_region
    _
  $region9: #{vae_forward.9} parent=0 // pred_fallthru
    _
  // Predicated region
  $region10: #{vae_forward.9} parent=0 // pred_check
    _
  $region11: #{vae_forward.9} parent=0 // pred_check_branch
    %13 = sbr.rel (0) target = $region13
  $region12: #{vae_forward.9} parent=0 // pred_region
    _
  $region13: #{vae_forward.9} parent=0 // pred_fallthru
    _
  %v14 = vld [vmem:[%s0] sm:$0xff]
  %v15 = vld [vmem:[%s0 + $0x8] sm:$0xff]
  %v16 = vld [vmem:[%s0 + $0x10] sm:$0xff]
  %v17 = vld [vmem:[%s0 + $0x18] sm:$0xff]
  %v18 = vld [vmem:[%s0 + $0x20] sm:$0xff]
  %v19 = vld [vmem:[%s0 + $0x28] sm:$0xff]
  %v20 = vld [vmem:[%s0 + $0x30] sm:$0xff]
  %v21 = vld [vmem:[%s0 + $0x38] sm:$0xff]
  %v22 = vld [vmem:[%s0 + $0x40] sm:$0xff]
  %v23 = vld [vmem:[%s0 + $0x48] sm:$0xff]
  %v24 = vld [vmem:[%s0 + $0x50] sm:$0xff]
  %v25 = vld [vmem:[%s0 + $0x58] sm:$0xff]
  %v26 = vld [vmem:[%s0 + $0x60] sm:$0xff]
  %v27 = vld [vmem:[%s0 + $0x68] sm:$0xff]
  %v28 = vld [vmem:[%s0 + $0x70] sm:$0xff]
  %v29 = vld [vmem:[%s0 + $0x78] sm:$0xff]
  %v30 = vld [vmem:[%s0 + $0x80] sm:$0xff]
  %v31 = vld [vmem:[%s0 + $0x88] sm:$0xff]
  %v32 = vld [vmem:[%s0 + $0x90] sm:$0xff]
  %v33 = vld [vmem:[%s0 + $0x98] sm:$0xff]
  %v34 = vld [vmem:[%s0 + $0xa0] sm:$0xff]
  %v35 = vld [vmem:[%s0 + $0xa8] sm:$0xff]
  %v36 = vld [vmem:[%s0 + $0xb0] sm:$0xff]
  %v37 = vld [vmem:[%s0 + $0xb8] sm:$0xff]
  %v38 = vld [vmem:[%s0 + $0xc0] sm:$0xff]
  %v39 = vld [vmem:[%s0 + $0xc8] sm:$0xff]
  %v40 = vld [vmem:[%s0 + $0xd0] sm:$0xff]
  %v41 = vld [vmem:[%s0 + $0xd8] sm:$0xff]
  %v42 = vld [vmem:[%s0 + $0xe0] sm:$0xff]
  %v43 = vld [vmem:[%s0 + $0xe8] sm:$0xff]
  %v44 = vld [vmem:[%s0 + $0xf0] sm:$0xff]
  %v45 = vld [vmem:[%s0 + $0xf8] sm:$0xff]
  %v46 = vld [vmem:[%s0 + $0x100] sm:$0xff]
  %v47 = vld [vmem:[%s0 + $0x108] sm:$0xff]
  %v48 = vld [vmem:[%s0 + $0x110] sm:$0xff]
  %v49 = vld [vmem:[%s0 + $0x118] sm:$0xff]
  %v50 = vld [vmem:[%s0 + $0x120] sm:$0xff]
  %v51 = vld [vmem:[%s0 + $0x128] sm:$0xff]
  %v52 = vld [vmem:[%s0 + $0x130] sm:$0xff]
  %v53 = vld [vmem:[%s0 + $0x138] sm:$0xff]
  %v54 = vld [vmem:[%s0 + $0x140] sm:$0xff]
  %v55 = vld [vmem:[%s0 + $0x148] sm:$0xff]
  %v56 = vld [vmem:[%s0 + $0x150] sm:$0xff]
  %v57 = vld [vmem:[%s0 + $0x158] sm:$0xff]
  %v58 = vld [vmem:[%s0 + $0x160] sm:$0xff]
  %v59 = vld [vmem:[%s0 + $0x168] sm:$0xff]
  %v60 = vld [vmem:[%s0 + $0x170] sm:$0xff]
  %v61 = vld [vmem:[%s0 + $0x178] sm:$0xff]
  %v62 = vld [vmem:[%s0 + $0x180] sm:$0xff]
  %v63 = vld [vmem:[%s1] sm:$0xff]
  %v64 = vld [vmem:[%s1 + $0x8] sm:$0xff]
  %v65 = vld [vmem:[%s1 + $0x10] sm:$0xff]
  %v66 = vld [vmem:[%s1 + $0x18] sm:$0xff]
  %v67 = vld [vmem:[%s1 + $0x20] sm:$0xff]
  %v68 = vld [vmem:[%s1 + $0x28] sm:$0xff]
  %v69 = vld [vmem:[%s1 + $0x30] sm:$0xff]
  %v70 = vld [vmem:[%s1 + $0x38] sm:$0xff]
  %v71 = vld [vmem:[%s2] sm:$0x1]
  %v73 = vlaneseq
  %v74 = vshrl.u32 %v73, 7
  %v75 = vsub.s32 0, %v74
  %v76 = vrot.slane %v71, %v75
  %vm78 = vcmask 523264
  %v80 = vsel %vm78, %v14, 0
  %v83 = vsel %vm78, %v15, 0
  %v86 = vsel %vm78, %v16, 0
  %v89 = vsel %vm78, %v17, 0
  %v92 = vsel %vm78, %v18, 0
  %v95 = vsel %vm78, %v19, 0
  %v98 = vsel %vm78, %v20, 0
  %v101 = vsel %vm78, %v21, 0
  %v104 = vsel %vm78, %v22, 0
  %v107 = vsel %vm78, %v23, 0
  %v110 = vsel %vm78, %v24, 0
  %v113 = vsel %vm78, %v25, 0
  %v116 = vsel %vm78, %v26, 0
  %v119 = vsel %vm78, %v27, 0
  %v122 = vsel %vm78, %v28, 0
  %v125 = vsel %vm78, %v29, 0
  %v128 = vsel %vm78, %v30, 0
  %v131 = vsel %vm78, %v31, 0
  %v134 = vsel %vm78, %v32, 0
  %v137 = vsel %vm78, %v33, 0
  %v140 = vsel %vm78, %v34, 0
  %v143 = vsel %vm78, %v35, 0
  %v146 = vsel %vm78, %v36, 0
  %v149 = vsel %vm78, %v37, 0
  %v152 = vsel %vm78, %v38, 0
  %v155 = vsel %vm78, %v39, 0
  %v158 = vsel %vm78, %v40, 0
  %v161 = vsel %vm78, %v41, 0
  %v164 = vsel %vm78, %v42, 0
  %v167 = vsel %vm78, %v43, 0
  %v170 = vsel %vm78, %v44, 0
  %v173 = vsel %vm78, %v45, 0
  %v176 = vsel %vm78, %v46, 0
  %v179 = vsel %vm78, %v47, 0
  %v182 = vsel %vm78, %v48, 0
  %v185 = vsel %vm78, %v49, 0
  %v188 = vsel %vm78, %v50, 0
  %v191 = vsel %vm78, %v51, 0
  %v194 = vsel %vm78, %v52, 0
  %v197 = vsel %vm78, %v53, 0
  %v200 = vsel %vm78, %v54, 0
  %v203 = vsel %vm78, %v55, 0
  %v206 = vsel %vm78, %v56, 0
  %v209 = vsel %vm78, %v57, 0
  %v212 = vsel %vm78, %v58, 0
  %v215 = vsel %vm78, %v59, 0
  %v218 = vsel %vm78, %v60, 0
  %v221 = vsel %vm78, %v61, 0
  %v224 = vsel %vm78, %v62, 0
  %226 = vmatprep.subr.mxu0 0.0
  %227 = vmatpush1.msra.mxu0 %v63
  %228 = vmatprep.subr.mxu0 0.0
  %229 = vmatpush1.msra.mxu0 %v64
  %230 = vmatprep.subr.mxu0 0.0
  %231 = vmatpush1.msra.mxu0 %v65
  %232 = vmatprep.subr.mxu0 0.0
  %233 = vmatpush1.msra.mxu0 %v66
  %234 = vmatprep.subr.mxu0 0.0
  %235 = vmatpush1.msra.mxu0 %v67
  %236 = vmatprep.subr.mxu0 0.0
  %237 = vmatpush1.msra.mxu0 %v68
  %238 = vmatprep.subr.mxu0 0.0
  %239 = vmatpush1.msra.mxu0 %v69
  %240 = vmatprep.subr.mxu0 0.0
  %241 = vmatpush1.msra.mxu0 %v70
  %242 = vmatprep.subr.mxu0 0.0
  %243 = vmatpush1.msra.mxu0 0.0
  %244 = vmatprep.subr.mxu0 0.0
  %245 = vmatpush1.msra.mxu0 0.0
  %246 = vmatprep.subr.mxu0 0.0
  %247 = vmatpush1.msra.mxu0 0.0
  %248 = vmatprep.subr.mxu0 0.0
  %249 = vmatpush1.msra.mxu0 0.0
  %250 = vmatprep.subr.mxu0 0.0
  %251 = vmatpush1.msra.mxu0 0.0
  %252 = vmatprep.subr.mxu0 0.0
  %253 = vmatpush1.msra.mxu0 0.0
  %254 = vmatprep.subr.mxu0 0.0
  %255 = vmatpush1.msra.mxu0 0.0
  %256 = vmatprep.subr.mxu0 0.0
  %257 = vmatpush1.msra.mxu0 0.0
  %258 = vmatprep.subr.mxu0 0.0
  %259 = vmatpush1.msra.mxu0 0.0
  %260 = vmatprep.subr.mxu0 0.0
  %261 = vmatpush1.msra.mxu0 0.0
  %262 = vmatprep.subr.mxu0 0.0
  %263 = vmatpush1.msra.mxu0 0.0
  %264 = vmatprep.subr.mxu0 0.0
  %265 = vmatpush1.msra.mxu0 0.0
  %266 = vmatprep.subr.mxu0 0.0
  %267 = vmatpush1.msra.mxu0 0.0
  %268 = vmatprep.subr.mxu0 0.0
  %269 = vmatpush1.msra.mxu0 0.0
  %270 = vmatprep.subr.mxu0 0.0
  %271 = vmatpush1.msra.mxu0 0.0
  %272 = vmatprep.subr.mxu0 0.0
  %273 = vmatpush1.msra.mxu0 0.0
  %274 = vmatprep.subr.mxu0 0.0
  %275 = vmatpush1.msra.mxu0 0.0
  %276 = vmatprep.subr.mxu0 0.0
  %277 = vmatpush1.msra.mxu0 0.0
  %278 = vmatprep.subr.mxu0 0.0
  %279 = vmatpush1.msra.mxu0 0.0
  %280 = vmatprep.subr.mxu0 0.0
  %281 = vmatpush1.msra.mxu0 0.0
  %282 = vmatprep.subr.mxu0 0.0
  %283 = vmatpush1.msra.mxu0 0.0
  %284 = vmatprep.subr.mxu0 0.0
  %285 = vmatpush1.msra.mxu0 0.0
  %286 = vmatprep.subr.mxu0 0.0
  %287 = vmatpush1.msra.mxu0 0.0
  %288 = vmatprep.subr.mxu0 0.0
  %289 = vmatpush1.msra.mxu0 0.0
  %290 = vmatprep.mubr.f32.mxu0 0.0
  %291 = vmatmul.mubr.f32.gmra.mrb[0].mxu0 %v80
  %v292 = vpop.f32.mrb[0].mxu0
  %v293 = vadd.f32 %v76, %v292
  %v294 = vpop.f32.mrb[0].mxu0
  %295 = vmatprep.mubr.f32.mxu0 0.0
  %296 = vmatmul.mubr.f32.gmra.mrb[0].mxu0 %v83
  %v297 = vpop.f32.mrb[0].mxu0
  %v298 = vadd.f32 %v76, %v297
  %v299 = vpop.f32.mrb[0].mxu0
  %300 = vmatprep.mubr.f32.mxu0 0.0
  %301 = vmatmul.mubr.f32.gmra.mrb[0].mxu0 %v86
  %v302 = vpop.f32.mrb[0].mxu0
  %v303 = vadd.f32 %v76, %v302
  %v304 = vpop.f32.mrb[0].mxu0
  %305 = vmatprep.mubr.f32.mxu0 0.0
  %306 = vmatmul.mubr.f32.gmra.mrb[0].mxu0 %v89
  %v307 = vpop.f32.mrb[0].mxu0
  %v308 = vadd.f32 %v76, %v307
  %v309 = vpop.f32.mrb[0].mxu0
  %310 = vmatprep.mubr.f32.mxu0 0.0
  %311 = vmatmul.mubr.f32.gmra.mrb[0].mxu0 %v92
  %v312 = vpop.f32.mrb[0].mxu0
  %v313 = vadd.f32 %v76, %v312
  %v314 = vpop.f32.mrb[0].mxu0
  %315 = vmatprep.mubr.f32.mxu0 0.0
  %316 = vmatmul.mubr.f32.gmra.mrb[0].mxu0 %v95
  %v317 = vpop.f32.mrb[0].mxu0
  %v318 = vadd.f32 %v76, %v317
  %v319 = vpop.f32.mrb[0].mxu0
  %320 = vmatprep.mubr.f32.mxu0 0.0
  %321 = vmatmul.mubr.f32.gmra.mrb[0].mxu0 %v98
  %v322 = vpop.f32.mrb[0].mxu0
  %v323 = vadd.f32 %v76, %v322
  %v324 = vpop.f32.mrb[0].mxu0
  %325 = vmatprep.mubr.f32.mxu0 0.0
  %326 = vmatmul.mubr.f32.gmra.mrb[0].mxu0 %v101
  %v327 = vpop.f32.mrb[0].mxu0
  %v328 = vadd.f32 %v76, %v327
  %v329 = vpop.f32.mrb[0].mxu0
  %330 = vmatprep.mubr.f32.mxu0 0.0
  %331 = vmatmul.mubr.f32.gmra.mrb[0].mxu0 %v104
  %v332 = vpop.f32.mrb[0].mxu0
  %v333 = vadd.f32 %v76, %v332
  %v334 = vpop.f32.mrb[0].mxu0
  %335 = vmatprep.mubr.f32.mxu0 0.0
  %336 = vmatmul.mubr.f32.gmra.mrb[0].mxu0 %v107
  %v337 = vpop.f32.mrb[0].mxu0
  %v338 = vadd.f32 %v76, %v337
  %v339 = vpop.f32.mrb[0].mxu0
  %340 = vmatprep.mubr.f32.mxu0 0.0
  %341 = vmatmul.mubr.f32.gmra.mrb[0].mxu0 %v110
  %v342 = vpop.f32.mrb[0].mxu0
  %v343 = vadd.f32 %v76, %v342
  %v344 = vpop.f32.mrb[0].mxu0
  %345 = vmatprep.mubr.f32.mxu0 0.0
  %346 = vmatmul.mubr.f32.gmra.mrb[0].mxu0 %v113
  %v347 = vpop.f32.mrb[0].mxu0
  %v348 = vadd.f32 %v76, %v347
  %v349 = vpop.f32.mrb[0].mxu0
  %350 = vmatprep.mubr.f32.mxu0 0.0
  %351 = vmatmul.mubr.f32.gmra.mrb[0].mxu0 %v116
  %v352 = vpop.f32.mrb[0].mxu0
  %v353 = vadd.f32 %v76, %v352
  %v354 = vpop.f32.mrb[0].mxu0
  %355 = vmatprep.mubr.f32.mxu0 0.0
  %356 = vmatmul.mubr.f32.gmra.mrb[0].mxu0 %v119
  %v357 = vpop.f32.mrb[0].mxu0
  %v358 = vadd.f32 %v76, %v357
  %v359 = vpop.f32.mrb[0].mxu0
  %360 = vmatprep.mubr.f32.mxu0 0.0
  %361 = vmatmul.mubr.f32.gmra.mrb[0].mxu0 %v122
  %v362 = vpop.f32.mrb[0].mxu0
  %v363 = vadd.f32 %v76, %v362
  %v364 = vpop.f32.mrb[0].mxu0
  %365 = vmatprep.mubr.f32.mxu0 0.0
  %366 = vmatmul.mubr.f32.gmra.mrb[0].mxu0 %v125
  %v367 = vpop.f32.mrb[0].mxu0
  %v368 = vadd.f32 %v76, %v367
  %v369 = vpop.f32.mrb[0].mxu0
  %370 = vmatprep.mubr.f32.mxu0 0.0
  %371 = vmatmul.mubr.f32.gmra.mrb[0].mxu0 %v128
  %v372 = vpop.f32.mrb[0].mxu0
  %v373 = vadd.f32 %v76, %v372
  %v374 = vpop.f32.mrb[0].mxu0
  %375 = vmatprep.mubr.f32.mxu0 0.0
  %376 = vmatmul.mubr.f32.gmra.mrb[0].mxu0 %v131
  %v377 = vpop.f32.mrb[0].mxu0
  %v378 = vadd.f32 %v76, %v377
  %v379 = vpop.f32.mrb[0].mxu0
  %380 = vmatprep.mubr.f32.mxu0 0.0
  %381 = vmatmul.mubr.f32.gmra.mrb[0].mxu0 %v134
  %v382 = vpop.f32.mrb[0].mxu0
  %v383 = vadd.f32 %v76, %v382
  %v384 = vpop.f32.mrb[0].mxu0
  %385 = vmatprep.mubr.f32.mxu0 0.0
  %386 = vmatmul.mubr.f32.gmra.mrb[0].mxu0 %v137
  %v387 = vpop.f32.mrb[0].mxu0
  %v388 = vadd.f32 %v76, %v387
  %v389 = vpop.f32.mrb[0].mxu0
  %390 = vmatprep.mubr.f32.mxu0 0.0
  %391 = vmatmul.mubr.f32.gmra.mrb[0].mxu0 %v140
  %v392 = vpop.f32.mrb[0].mxu0
  %v393 = vadd.f32 %v76, %v392
  %v394 = vpop.f32.mrb[0].mxu0
  %395 = vmatprep.mubr.f32.mxu0 0.0
  %396 = vmatmul.mubr.f32.gmra.mrb[0].mxu0 %v143
  %v397 = vpop.f32.mrb[0].mxu0
  %v398 = vadd.f32 %v76, %v397
  %v399 = vpop.f32.mrb[0].mxu0
  %400 = vmatprep.mubr.f32.mxu0 0.0
  %401 = vmatmul.mubr.f32.gmra.mrb[0].mxu0 %v146
  %v402 = vpop.f32.mrb[0].mxu0
  %v403 = vadd.f32 %v76, %v402
  %v404 = vpop.f32.mrb[0].mxu0
  %405 = vmatprep.mubr.f32.mxu0 0.0
  %406 = vmatmul.mubr.f32.gmra.mrb[0].mxu0 %v149
  %v407 = vpop.f32.mrb[0].mxu0
  %v408 = vadd.f32 %v76, %v407
  %v409 = vpop.f32.mrb[0].mxu0
  %410 = vmatprep.mubr.f32.mxu0 0.0
  %411 = vmatmul.mubr.f32.gmra.mrb[0].mxu0 %v152
  %v412 = vpop.f32.mrb[0].mxu0
  %v413 = vadd.f32 %v76, %v412
  %v414 = vpop.f32.mrb[0].mxu0
  %415 = vmatprep.mubr.f32.mxu0 0.0
  %416 = vmatmul.mubr.f32.gmra.mrb[0].mxu0 %v155
  %v417 = vpop.f32.mrb[0].mxu0
  %v418 = vadd.f32 %v76, %v417
  %v419 = vpop.f32.mrb[0].mxu0
  %420 = vmatprep.mubr.f32.mxu0 0.0
  %421 = vmatmul.mubr.f32.gmra.mrb[0].mxu0 %v158
  %v422 = vpop.f32.mrb[0].mxu0
  %v423 = vadd.f32 %v76, %v422
  %v424 = vpop.f32.mrb[0].mxu0
  %425 = vmatprep.mubr.f32.mxu0 0.0
  %426 = vmatmul.mubr.f32.gmra.mrb[0].mxu0 %v161
  %v427 = vpop.f32.mrb[0].mxu0
  %v428 = vadd.f32 %v76, %v427
  %v429 = vpop.f32.mrb[0].mxu0
  %430 = vmatprep.mubr.f32.mxu0 0.0
  %431 = vmatmul.mubr.f32.gmra.mrb[0].mxu0 %v164
  %v432 = vpop.f32.mrb[0].mxu0
  %v433 = vadd.f32 %v76, %v432
  %v434 = vpop.f32.mrb[0].mxu0
  %435 = vmatprep.mubr.f32.mxu0 0.0
  %436 = vmatmul.mubr.f32.gmra.mrb[0].mxu0 %v167
  %v437 = vpop.f32.mrb[0].mxu0
  %v438 = vadd.f32 %v76, %v437
  %v439 = vpop.f32.mrb[0].mxu0
  %440 = vmatprep.mubr.f32.mxu0 0.0
  %441 = vmatmul.mubr.f32.gmra.mrb[0].mxu0 %v170
  %v442 = vpop.f32.mrb[0].mxu0
  %v443 = vadd.f32 %v76, %v442
  %v444 = vpop.f32.mrb[0].mxu0
  %445 = vmatprep.mubr.f32.mxu0 0.0
  %446 = vmatmul.mubr.f32.gmra.mrb[0].mxu0 %v173
  %v447 = vpop.f32.mrb[0].mxu0
  %v448 = vadd.f32 %v76, %v447
  %v449 = vpop.f32.mrb[0].mxu0
  %450 = vmatprep.mubr.f32.mxu0 0.0
  %451 = vmatmul.mubr.f32.gmra.mrb[0].mxu0 %v176
  %v452 = vpop.f32.mrb[0].mxu0
  %v453 = vadd.f32 %v76, %v452
  %v454 = vpop.f32.mrb[0].mxu0
  %455 = vmatprep.mubr.f32.mxu0 0.0
  %456 = vmatmul.mubr.f32.gmra.mrb[0].mxu0 %v179
  %v457 = vpop.f32.mrb[0].mxu0
  %v458 = vadd.f32 %v76, %v457
  %v459 = vpop.f32.mrb[0].mxu0
  %460 = vmatprep.mubr.f32.mxu0 0.0
  %461 = vmatmul.mubr.f32.gmra.mrb[0].mxu0 %v182
  %v462 = vpop.f32.mrb[0].mxu0
  %v463 = vadd.f32 %v76, %v462
  %v464 = vpop.f32.mrb[0].mxu0
  %465 = vmatprep.mubr.f32.mxu0 0.0
  %466 = vmatmul.mubr.f32.gmra.mrb[0].mxu0 %v185
  %v467 = vpop.f32.mrb[0].mxu0
  %v468 = vadd.f32 %v76, %v467
  %v469 = vpop.f32.mrb[0].mxu0
  %470 = vmatprep.mubr.f32.mxu0 0.0
  %471 = vmatmul.mubr.f32.gmra.mrb[0].mxu0 %v188
  %v472 = vpop.f32.mrb[0].mxu0
  %v473 = vadd.f32 %v76, %v472
  %v474 = vpop.f32.mrb[0].mxu0
  %475 = vmatprep.mubr.f32.mxu0 0.0
  %476 = vmatmul.mubr.f32.gmra.mrb[0].mxu0 %v191
  %v477 = vpop.f32.mrb[0].mxu0
  %v478 = vadd.f32 %v76, %v477
  %v479 = vpop.f32.mrb[0].mxu0
  %480 = vmatprep.mubr.f32.mxu0 0.0
  %481 = vmatmul.mubr.f32.gmra.mrb[0].mxu0 %v194
  %v482 = vpop.f32.mrb[0].mxu0
  %v483 = vadd.f32 %v76, %v482
  %v484 = vpop.f32.mrb[0].mxu0
  %485 = vmatprep.mubr.f32.mxu0 0.0
  %486 = vmatmul.mubr.f32.gmra.mrb[0].mxu0 %v197
  %v487 = vpop.f32.mrb[0].mxu0
  %v488 = vadd.f32 %v76, %v487
  %v489 = vpop.f32.mrb[0].mxu0
  %490 = vmatprep.mubr.f32.mxu0 0.0
  %491 = vmatmul.mubr.f32.gmra.mrb[0].mxu0 %v200
  %v492 = vpop.f32.mrb[0].mxu0
  %v493 = vadd.f32 %v76, %v492
  %v494 = vpop.f32.mrb[0].mxu0
  %495 = vmatprep.mubr.f32.mxu0 0.0
  %496 = vmatmul.mubr.f32.gmra.mrb[0].mxu0 %v203
  %v497 = vpop.f32.mrb[0].mxu0
  %v498 = vadd.f32 %v76, %v497
  %v499 = vpop.f32.mrb[0].mxu0
  %500 = vmatprep.mubr.f32.mxu0 0.0
  %501 = vmatmul.mubr.f32.gmra.mrb[0].mxu0 %v206
  %v502 = vpop.f32.mrb[0].mxu0
  %v503 = vadd.f32 %v76, %v502
  %v504 = vpop.f32.mrb[0].mxu0
  %505 = vmatprep.mubr.f32.mxu0 0.0
  %506 = vmatmul.mubr.f32.gmra.mrb[0].mxu0 %v209
  %v507 = vpop.f32.mrb[0].mxu0
  %v508 = vadd.f32 %v76, %v507
  %v509 = vpop.f32.mrb[0].mxu0
  %510 = vmatprep.mubr.f32.mxu0 0.0
  %511 = vmatmul.mubr.f32.gmra.mrb[0].mxu0 %v212
  %v512 = vpop.f32.mrb[0].mxu0
  %v513 = vadd.f32 %v76, %v512
  %v514 = vpop.f32.mrb[0].mxu0
  %515 = vmatprep.mubr.f32.mxu0 0.0
  %516 = vmatmul.mubr.f32.gmra.mrb[0].mxu0 %v215
  %v517 = vpop.f32.mrb[0].mxu0
  %v518 = vadd.f32 %v76, %v517
  %v519 = vpop.f32.mrb[0].mxu0
  %520 = vmatprep.mubr.f32.mxu0 0.0
  %521 = vmatmul.mubr.f32.gmra.mrb[0].mxu0 %v218
  %v522 = vpop.f32.mrb[0].mxu0
  %v523 = vadd.f32 %v76, %v522
  %v524 = vpop.f32.mrb[0].mxu0
  %525 = vmatprep.mubr.f32.mxu0 0.0
  %526 = vmatmul.mubr.f32.gmra.mrb[0].mxu0 %v221
  %v527 = vpop.f32.mrb[0].mxu0
  %v528 = vadd.f32 %v76, %v527
  %v529 = vpop.f32.mrb[0].mxu0
  %530 = vmatprep.mubr.f32.mxu0 0.0
  %531 = vmatmul.mubr.f32.gmra.mrb[0].mxu0 %v224
  %v532 = vpop.f32.mrb[0].mxu0
  %v533 = vadd.f32 %v76, %v532
  %v534 = vpop.f32.mrb[0].mxu0
  %535 = vdwg.mxu0
  %v536 = vxor.u32 %v293, 2147483648
  %v537 = vxor.u32 %v298, 2147483648
  %v538 = vxor.u32 %v303, 2147483648
  %v539 = vxor.u32 %v308, 2147483648
  %v540 = vxor.u32 %v313, 2147483648
  %v541 = vxor.u32 %v318, 2147483648
  %v542 = vxor.u32 %v323, 2147483648
  %v543 = vxor.u32 %v328, 2147483648
  %v544 = vxor.u32 %v333, 2147483648
  %v545 = vxor.u32 %v338, 2147483648
  %v546 = vxor.u32 %v343, 2147483648
  %v547 = vxor.u32 %v348, 2147483648
  %v548 = vxor.u32 %v353, 2147483648
  %v549 = vxor.u32 %v358, 2147483648
  %v550 = vxor.u32 %v363, 2147483648
  %v551 = vxor.u32 %v368, 2147483648
  %v552 = vxor.u32 %v373, 2147483648
  %v553 = vxor.u32 %v378, 2147483648
  %v554 = vxor.u32 %v383, 2147483648
  %v555 = vxor.u32 %v388, 2147483648
  %v556 = vxor.u32 %v393, 2147483648
  %v557 = vxor.u32 %v398, 2147483648
  %v558 = vxor.u32 %v403, 2147483648
  %v559 = vxor.u32 %v408, 2147483648
  %v560 = vxor.u32 %v413, 2147483648
  %v561 = vxor.u32 %v418, 2147483648
  %v562 = vxor.u32 %v423, 2147483648
  %v563 = vxor.u32 %v428, 2147483648
  %v564 = vxor.u32 %v433, 2147483648
  %v565 = vxor.u32 %v438, 2147483648
  %v566 = vxor.u32 %v443, 2147483648
  %v567 = vxor.u32 %v448, 2147483648
  %v568 = vxor.u32 %v453, 2147483648
  %v569 = vxor.u32 %v458, 2147483648
  %v570 = vxor.u32 %v463, 2147483648
  %v571 = vxor.u32 %v468, 2147483648
  %v572 = vxor.u32 %v473, 2147483648
  %v573 = vxor.u32 %v478, 2147483648
  %v574 = vxor.u32 %v483, 2147483648
  %v575 = vxor.u32 %v488, 2147483648
  %v576 = vxor.u32 %v493, 2147483648
  %v577 = vxor.u32 %v498, 2147483648
  %v578 = vxor.u32 %v503, 2147483648
  %v579 = vxor.u32 %v508, 2147483648
  %v580 = vxor.u32 %v513, 2147483648
  %v581 = vxor.u32 %v518, 2147483648
  %v582 = vxor.u32 %v523, 2147483648
  %v583 = vxor.u32 %v528, 2147483648
  %v584 = vxor.u32 %v533, 2147483648
  %v585 = vmul.f32 %v536, 1.442695
  %v586 = vpow.pop %v585
  %v587 = vmul.f32 %v537, 1.442695
  %v588 = vpow.pop %v587
  %v589 = vmul.f32 %v538, 1.442695
  %v590 = vpow.pop %v589
  %v591 = vmul.f32 %v539, 1.442695
  %v592 = vpow.pop %v591
  %v593 = vmul.f32 %v540, 1.442695
  %v594 = vpow.pop %v593
  %v595 = vmul.f32 %v541, 1.442695
  %v596 = vpow.pop %v595
  %v597 = vmul.f32 %v542, 1.442695
  %v598 = vpow.pop %v597
  %v599 = vmul.f32 %v543, 1.442695
  %v600 = vpow.pop %v599
  %v601 = vmul.f32 %v544, 1.442695
  %v602 = vpow.pop %v601
  %v603 = vmul.f32 %v545, 1.442695
  %v604 = vpow.pop %v603
  %v605 = vmul.f32 %v546, 1.442695
  %v606 = vpow.pop %v605
  %v607 = vmul.f32 %v547, 1.442695
  %v608 = vpow.pop %v607
  %v609 = vmul.f32 %v548, 1.442695
  %v610 = vpow.pop %v609
  %v611 = vmul.f32 %v549, 1.442695
  %v612 = vpow.pop %v611
  %v613 = vmul.f32 %v550, 1.442695
  %v614 = vpow.pop %v613
  %v615 = vmul.f32 %v551, 1.442695
  %v616 = vpow.pop %v615
  %v617 = vmul.f32 %v552, 1.442695
  %v618 = vpow.pop %v617
  %v619 = vmul.f32 %v553, 1.442695
  %v620 = vpow.pop %v619
  %v621 = vmul.f32 %v554, 1.442695
  %v622 = vpow.pop %v621
  %v623 = vmul.f32 %v555, 1.442695
  %v624 = vpow.pop %v623
  %v625 = vmul.f32 %v556, 1.442695
  %v626 = vpow.pop %v625
  %v627 = vmul.f32 %v557, 1.442695
  %v628 = vpow.pop %v627
  %v629 = vmul.f32 %v558, 1.442695
  %v630 = vpow.pop %v629
  %v631 = vmul.f32 %v559, 1.442695
  %v632 = vpow.pop %v631
  %v633 = vmul.f32 %v560, 1.442695
  %v634 = vpow.pop %v633
  %v635 = vmul.f32 %v561, 1.442695
  %v636 = vpow.pop %v635
  %v637 = vmul.f32 %v562, 1.442695
  %v638 = vpow.pop %v637
  %v639 = vmul.f32 %v563, 1.442695
  %v640 = vpow.pop %v639
  %v641 = vmul.f32 %v564, 1.442695
  %v642 = vpow.pop %v641
  %v643 = vmul.f32 %v565, 1.442695
  %v644 = vpow.pop %v643
  %v645 = vmul.f32 %v566, 1.442695
  %v646 = vpow.pop %v645
  %v647 = vmul.f32 %v567, 1.442695
  %v648 = vpow.pop %v647
  %v649 = vmul.f32 %v568, 1.442695
  %v650 = vpow.pop %v649
  %v651 = vmul.f32 %v569, 1.442695
  %v652 = vpow.pop %v651
  %v653 = vmul.f32 %v570, 1.442695
  %v654 = vpow.pop %v653
  %v655 = vmul.f32 %v571, 1.442695
  %v656 = vpow.pop %v655
  %v657 = vmul.f32 %v572, 1.442695
  %v658 = vpow.pop %v657
  %v659 = vmul.f32 %v573, 1.442695
  %v660 = vpow.pop %v659
  %v661 = vmul.f32 %v574, 1.442695
  %v662 = vpow.pop %v661
  %v663 = vmul.f32 %v575, 1.442695
  %v664 = vpow.pop %v663
  %v665 = vmul.f32 %v576, 1.442695
  %v666 = vpow.pop %v665
  %v667 = vmul.f32 %v577, 1.442695
  %v668 = vpow.pop %v667
  %v669 = vmul.f32 %v578, 1.442695
  %v670 = vpow.pop %v669
  %v671 = vmul.f32 %v579, 1.442695
  %v672 = vpow.pop %v671
  %v673 = vmul.f32 %v580, 1.442695
  %v674 = vpow.pop %v673
  %v675 = vmul.f32 %v581, 1.442695
  %v676 = vpow.pop %v675
  %v677 = vmul.f32 %v582, 1.442695
  %v678 = vpow.pop %v677
  %v679 = vmul.f32 %v583, 1.442695
  %v680 = vpow.pop %v679
  %v681 = vmul.f32 %v584, 1.442695
  %v682 = vpow.pop %v681
  %v683 = vadd.f32 %v586, 1.0
  %v684 = vadd.f32 %v588, 1.0
  %v685 = vadd.f32 %v590, 1.0
  %v686 = vadd.f32 %v592, 1.0
  %v687 = vadd.f32 %v594, 1.0
  %v688 = vadd.f32 %v596, 1.0
  %v689 = vadd.f32 %v598, 1.0
  %v690 = vadd.f32 %v600, 1.0
  %v691 = vadd.f32 %v602, 1.0
  %v692 = vadd.f32 %v604, 1.0
  %v693 = vadd.f32 %v606, 1.0
  %v694 = vadd.f32 %v608, 1.0
  %v695 = vadd.f32 %v610, 1.0
  %v696 = vadd.f32 %v612, 1.0
  %v697 = vadd.f32 %v614, 1.0
  %v698 = vadd.f32 %v616, 1.0
  %v699 = vadd.f32 %v618, 1.0
  %v700 = vadd.f32 %v620, 1.0
  %v701 = vadd.f32 %v622, 1.0
  %v702 = vadd.f32 %v624, 1.0
  %v703 = vadd.f32 %v626, 1.0
  %v704 = vadd.f32 %v628, 1.0
  %v705 = vadd.f32 %v630, 1.0
  %v706 = vadd.f32 %v632, 1.0
  %v707 = vadd.f32 %v634, 1.0
  %v708 = vadd.f32 %v636, 1.0
  %v709 = vadd.f32 %v638, 1.0
  %v710 = vadd.f32 %v640, 1.0
  %v711 = vadd.f32 %v642, 1.0
  %v712 = vadd.f32 %v644, 1.0
  %v713 = vadd.f32 %v646, 1.0
  %v714 = vadd.f32 %v648, 1.0
  %v715 = vadd.f32 %v650, 1.0
  %v716 = vadd.f32 %v652, 1.0
  %v717 = vadd.f32 %v654, 1.0
  %v718 = vadd.f32 %v656, 1.0
  %v719 = vadd.f32 %v658, 1.0
  %v720 = vadd.f32 %v660, 1.0
  %v721 = vadd.f32 %v662, 1.0
  %v722 = vadd.f32 %v664, 1.0
  %v723 = vadd.f32 %v666, 1.0
  %v724 = vadd.f32 %v668, 1.0
  %v725 = vadd.f32 %v670, 1.0
  %v726 = vadd.f32 %v672, 1.0
  %v727 = vadd.f32 %v674, 1.0
  %v728 = vadd.f32 %v676, 1.0
  %v729 = vadd.f32 %v678, 1.0
  %v730 = vadd.f32 %v680, 1.0
  %v731 = vadd.f32 %v682, 1.0
  %v732 = vrcp.pop %v683
  %v733 = vmul.f32 1.0, %v732
  %v734 = vrcp.pop %v684
  %v735 = vmul.f32 1.0, %v734
  %v736 = vrcp.pop %v685
  %v737 = vmul.f32 1.0, %v736
  %v738 = vrcp.pop %v686
  %v739 = vmul.f32 1.0, %v738
  %v740 = vrcp.pop %v687
  %v741 = vmul.f32 1.0, %v740
  %v742 = vrcp.pop %v688
  %v743 = vmul.f32 1.0, %v742
  %v744 = vrcp.pop %v689
  %v745 = vmul.f32 1.0, %v744
  %v746 = vrcp.pop %v690
  %v747 = vmul.f32 1.0, %v746
  %v748 = vrcp.pop %v691
  %v749 = vmul.f32 1.0, %v748
  %v750 = vrcp.pop %v692
  %v751 = vmul.f32 1.0, %v750
  %v752 = vrcp.pop %v693
  %v753 = vmul.f32 1.0, %v752
  %v754 = vrcp.pop %v694
  %v755 = vmul.f32 1.0, %v754
  %v756 = vrcp.pop %v695
  %v757 = vmul.f32 1.0, %v756
  %v758 = vrcp.pop %v696
  %v759 = vmul.f32 1.0, %v758
  %v760 = vrcp.pop %v697
  %v761 = vmul.f32 1.0, %v760
  %v762 = vrcp.pop %v698
  %v763 = vmul.f32 1.0, %v762
  %v764 = vrcp.pop %v699
  %v765 = vmul.f32 1.0, %v764
  %v766 = vrcp.pop %v700
  %v767 = vmul.f32 1.0, %v766
  %v768 = vrcp.pop %v701
  %v769 = vmul.f32 1.0, %v768
  %v770 = vrcp.pop %v702
  %v771 = vmul.f32 1.0, %v770
  %v772 = vrcp.pop %v703
  %v773 = vmul.f32 1.0, %v772
  %v774 = vrcp.pop %v704
  %v775 = vmul.f32 1.0, %v774
  %v776 = vrcp.pop %v705
  %v777 = vmul.f32 1.0, %v776
  %v778 = vrcp.pop %v706
  %v779 = vmul.f32 1.0, %v778
  %v780 = vrcp.pop %v707
  %v781 = vmul.f32 1.0, %v780
  %v782 = vrcp.pop %v708
  %v783 = vmul.f32 1.0, %v782
  %v784 = vrcp.pop %v709
  %v785 = vmul.f32 1.0, %v784
  %v786 = vrcp.pop %v710
  %v787 = vmul.f32 1.0, %v786
  %v788 = vrcp.pop %v711
  %v789 = vmul.f32 1.0, %v788
  %v790 = vrcp.pop %v712
  %v791 = vmul.f32 1.0, %v790
  %v792 = vrcp.pop %v713
  %v793 = vmul.f32 1.0, %v792
  %v794 = vrcp.pop %v714
  %v795 = vmul.f32 1.0, %v794
  %v796 = vrcp.pop %v715
  %v797 = vmul.f32 1.0, %v796
  %v798 = vrcp.pop %v716
  %v799 = vmul.f32 1.0, %v798
  %v800 = vrcp.pop %v717
  %v801 = vmul.f32 1.0, %v800
  %v802 = vrcp.pop %v718
  %v803 = vmul.f32 1.0, %v802
  %v804 = vrcp.pop %v719
  %v805 = vmul.f32 1.0, %v804
  %v806 = vrcp.pop %v720
  %v807 = vmul.f32 1.0, %v806
  %v808 = vrcp.pop %v721
  %v809 = vmul.f32 1.0, %v808
  %v810 = vrcp.pop %v722
  %v811 = vmul.f32 1.0, %v810
  %v812 = vrcp.pop %v723
  %v813 = vmul.f32 1.0, %v812
  %v814 = vrcp.pop %v724
  %v815 = vmul.f32 1.0, %v814
  %v816 = vrcp.pop %v725
  %v817 = vmul.f32 1.0, %v816
  %v818 = vrcp.pop %v726
  %v819 = vmul.f32 1.0, %v818
  %v820 = vrcp.pop %v727
  %v821 = vmul.f32 1.0, %v820
  %v822 = vrcp.pop %v728
  %v823 = vmul.f32 1.0, %v822
  %v824 = vrcp.pop %v729
  %v825 = vmul.f32 1.0, %v824
  %v826 = vrcp.pop %v730
  %v827 = vmul.f32 1.0, %v826
  %v828 = vrcp.pop %v731
  %v829 = vmul.f32 1.0, %v828
  %830 = vst [vmem:[%s3] sm:$0xff] %v733
  %831 = vst [vmem:[%s3 + $0x8] sm:$0xff] %v735
  %832 = vst [vmem:[%s3 + $0x10] sm:$0xff] %v737
  %833 = vst [vmem:[%s3 + $0x18] sm:$0xff] %v739
  %834 = vst [vmem:[%s3 + $0x20] sm:$0xff] %v741
  %835 = vst [vmem:[%s3 + $0x28] sm:$0xff] %v743
  %836 = vst [vmem:[%s3 + $0x30] sm:$0xff] %v745
  %837 = vst [vmem:[%s3 + $0x38] sm:$0xff] %v747
  %838 = vst [vmem:[%s3 + $0x40] sm:$0xff] %v749
  %839 = vst [vmem:[%s3 + $0x48] sm:$0xff] %v751
  %840 = vst [vmem:[%s3 + $0x50] sm:$0xff] %v753
  %841 = vst [vmem:[%s3 + $0x58] sm:$0xff] %v755
  %842 = vst [vmem:[%s3 + $0x60] sm:$0xff] %v757
  %843 = vst [vmem:[%s3 + $0x68] sm:$0xff] %v759
  %844 = vst [vmem:[%s3 + $0x70] sm:$0xff] %v761
  %845 = vst [vmem:[%s3 + $0x78] sm:$0xff] %v763
  %846 = vst [vmem:[%s3 + $0x80] sm:$0xff] %v765
  %847 = vst [vmem:[%s3 + $0x88] sm:$0xff] %v767
  %848 = vst [vmem:[%s3 + $0x90] sm:$0xff] %v769
  %849 = vst [vmem:[%s3 + $0x98] sm:$0xff] %v771
  %850 = vst [vmem:[%s3 + $0xa0] sm:$0xff] %v773
  %851 = vst [vmem:[%s3 + $0xa8] sm:$0xff] %v775
  %852 = vst [vmem:[%s3 + $0xb0] sm:$0xff] %v777
  %853 = vst [vmem:[%s3 + $0xb8] sm:$0xff] %v779
  %854 = vst [vmem:[%s3 + $0xc0] sm:$0xff] %v781
  %855 = vst [vmem:[%s3 + $0xc8] sm:$0xff] %v783
  %856 = vst [vmem:[%s3 + $0xd0] sm:$0xff] %v785
  %857 = vst [vmem:[%s3 + $0xd8] sm:$0xff] %v787
  %858 = vst [vmem:[%s3 + $0xe0] sm:$0xff] %v789
  %859 = vst [vmem:[%s3 + $0xe8] sm:$0xff] %v791
  %860 = vst [vmem:[%s3 + $0xf0] sm:$0xff] %v793
  %861 = vst [vmem:[%s3 + $0xf8] sm:$0xff] %v795
  %862 = vst [vmem:[%s3 + $0x100] sm:$0xff] %v797
  %863 = vst [vmem:[%s3 + $0x108] sm:$0xff] %v799
  %864 = vst [vmem:[%s3 + $0x110] sm:$0xff] %v801
  %865 = vst [vmem:[%s3 + $0x118] sm:$0xff] %v803
  %866 = vst [vmem:[%s3 + $0x120] sm:$0xff] %v805
  %867 = vst [vmem:[%s3 + $0x128] sm:$0xff] %v807
  %868 = vst [vmem:[%s3 + $0x130] sm:$0xff] %v809
  %869 = vst [vmem:[%s3 + $0x138] sm:$0xff] %v811
  %870 = vst [vmem:[%s3 + $0x140] sm:$0xff] %v813
  %871 = vst [vmem:[%s3 + $0x148] sm:$0xff] %v815
  %872 = vst [vmem:[%s3 + $0x150] sm:$0xff] %v817
  %873 = vst [vmem:[%s3 + $0x158] sm:$0xff] %v819
  %874 = vst [vmem:[%s3 + $0x160] sm:$0xff] %v821
  %875 = vst [vmem:[%s3 + $0x168] sm:$0xff] %v823
  %876 = vst [vmem:[%s3 + $0x170] sm:$0xff] %v825
  %877 = vst [vmem:[%s3 + $0x178] sm:$0xff] %v827
  %878 = vst [vmem:[%s3 + $0x180] sm:$0xff] %v829
  // Predicated region
  $region14: #{vae_forward.9} parent=0 // pred_check
    _
  $region15: #{vae_forward.9} parent=0 // pred_check_branch
    %880 = sbr.rel (0) target = $region17
  $region16: #{vae_forward.9} parent=0 // pred_region
    _
  $region17: #{vae_forward.9} parent=0 // pred_fallthru
    _
  // Predicated region
  $region18: #{vae_forward.9} parent=0 // pred_check
    _
  $region19: #{vae_forward.9} parent=0 // pred_check_branch
    %882 = sbr.rel (0) target = $region21
  $region20: #{vae_forward.9} parent=0 // pred_region
    _
  $region21: #{vae_forward.9} parent=0 // pred_fallthru
    _

</llo_original>
